<compile_context>
chip_gen: v7x
topology: tpu7x:2x2x1
jax: 0.10.0
libtpu: 0.0.40
codegen_flags: <defaults>
</compile_context>

<pallas_src>
import functools

import jax
import jax.numpy as jnp
import numpy as np
from jax import lax
from jax.experimental import pallas as pl
from jax.experimental.pallas import tpu as pltpu

_LANE = 128
_UNROLL_MAXITER = 64   # static Python unroll below this, lax.fori_loop above


def _vmem_capacity_bytes():
    """Per-core VMEM capacity; conservative 64 MiB (v7x) if the query fails."""
    try:
        cap = getattr(pltpu.get_tpu_info(), "vmem_capacity_bytes", None)
        if cap:
            return int(cap)
    except Exception:
        pass
    return 64 * 1024 * 1024


def _err_sq(xsol, x):
    """Squared per-batch Frobenius norm of (xsol - x), shape (tb, 1)."""
    d = xsol - x
    return jnp.sum(d * d, axis=-1, keepdims=True)


def _sor_kernel(g_ref, f_ref, x0_ref, xsol_ref, *rest, maxiter, out_width, gated):
    """SOR iteration hot loop.

    Refs: G (tb,n,n); f/x0/xsol (tb,1,n); history out (tb,1,out_width).
    Gated variant also gets xtol_sq (tb,1) and reproduces the whole-batch early
    stop of the torch while-loop by masking the *stored* columns only: x is
    always advanced, so the serial chain is just matvec -> matvec, and once
    `active` drops it stays False and every later column is zeroed -- identical
    output to gating the update itself.
    """
    if gated:
        xtolsq_ref, hist_ref = rest
    else:
        (hist_ref,) = rest

    G = g_ref[...]                               # (tb, n, n)
    f = jnp.squeeze(f_ref[...], axis=1)          # (tb, n)
    xsol = jnp.squeeze(xsol_ref[...], axis=1)    # (tb, n)
    x = jnp.squeeze(x0_ref[...], axis=1)         # (tb, n)
    tb = x.shape[0]

    lane = lax.broadcasted_iota(jnp.int32, (1, out_width), 1)
    e0 = _err_sq(xsol, x)                        # squared norm (sqrt deferred)
    hist = jnp.where(lane == 0, e0, jnp.zeros((tb, out_width), jnp.float32))

    if gated:
        xtol_sq = xtolsq_ref[...]                # (tb, 1), sign-preserving square
        carry = (x, hist, jnp.any(e0 > xtol_sq))
    else:
        carry = (x, hist)

    def body(t, carry):
        if gated:
            x, hist, active = carry
        else:
            x, hist = carry
        # Width-1-RHS matvec: broadcast-multiply + lane reduce on VPU/XLU.
        # Deliberately NOT jnp.dot: a (n x n)@(n x 1) MXU matmul would be
        # <1/256 utilized and put its fill/drain latency on the serial x chain.
        x = jnp.sum(G * x[:, None, :], axis=-1) + f
        e = _err_sq(xsol, x)                     # off the x critical path
        if gated:
            col = jnp.where(active, e, jnp.zeros_like(e))
            hist = jnp.where(lane == t, col, hist)
            active = jnp.logical_and(active, jnp.any(e > xtol_sq))
            return x, hist, active
        hist = jnp.where(lane == t, e, hist)
        return x, hist

    if maxiter <= _UNROLL_MAXITER:
        for t in range(1, maxiter + 1):          # static unroll: LLO visibility
            carry = body(t, carry)
    else:
        carry = lax.fori_loop(1, maxiter + 1, body, carry, unroll=8)

    # One deferred tile-wide sqrt + one lane-dense full-tile store.
    hist_ref[...] = jnp.sqrt(carry[1])[:, None, :]


def _build_sor_operators(tau, theta, omega):
    """Plain-JAX setup glue (SOR splitting); mirrors the PyTorch forward prologue."""
    A = jnp.asarray(tau["A"], jnp.float32)
    maxiter = int(np.asarray(tau["maxiter"]).max())
    rtol = jnp.asarray(tau["rtol"], jnp.float32)
    try:
        # Trace-time decision (same spirit as `int(tau['maxiter'].max())`).
        early_stop = bool(np.any(np.asarray(tau["rtol"]) > 0))
    except (jax.errors.ConcretizationTypeError, TypeError):
        early_stop = True      # rtol traced under jit: gated kernel is correct for any rtol
    bs, n, _ = A.shape

    b = jnp.asarray(tau["b"], jnp.float32).reshape(bs, n, 1)
    x0 = jnp.asarray(theta, jnp.float32).reshape(bs, n)
    xsol = jnp.asarray(tau["x_sol"], jnp.float32).reshape(bs, n)

    diag = jnp.diagonal(A, axis1=1, axis2=2)                   # (bs, n)
    D = diag[:, :, None] * jnp.eye(n, dtype=A.dtype)           # diag_embed
    L = jnp.tril(A, -1)
    U = jnp.triu(A, 1)

    G1 = D + omega * L
    G2 = omega * U + (omega - 1.0) * D

    # TODO(synk): batched triangular solve has no clean Pallas primitive; it is
    # one-time operator setup (not the per-iteration hot path), kept in JAX.
    solve_lower = jax.vmap(
        lambda a, c: jax.scipy.linalg.solve_triangular(a, c, lower=True))
    G = solve_lower(G1, -G2)                                   # (bs, n, n)
    f = solve_lower(G1, b * omega)[:, :, 0]                    # (bs, n)

    xtol = (jnp.linalg.norm(xsol, axis=1) * rtol).reshape(bs, 1)   # (bs, 1)
    return G, f, x0, xsol, xtol, maxiter, early_stop


def _batch_tile(bs, n, budget_bytes):
    """Largest divisor of bs whose double-buffered G tile fits `budget_bytes`,
    preferring >= 2 grid steps (keeps both v7x TensorCores busy; ~free on the
    single-core v5e/v6e)."""
    per_sample = 2 * n * n * 4            # double-buffered f32 G bytes per sample
    divisors = [d for d in range(1, bs + 1) if bs % d == 0]
    fitting = [d for d in divisors if d * per_sample <= budget_bytes] or [1]
    multi = [d for d in fitting if bs // d >= 2]
    return max(multi) if multi else max(fitting)


def sor_jit_forward(tau, theta, omega):
    """Equivalent of SORJit.forward: returns history_err of shape (bs, maxiter+1)."""
    G, f, x0, xsol, xtol, maxiter, early_stop = _build_sor_operators(tau, theta, omega)
    bs, n, _ = G.shape
    out_width = pl.cdiv(maxiter + 1, _LANE) * _LANE            # lane-dense output

    # Vectors as (bs, 1, n): last-two block dims (1, n) equal the full array
    # extents, so ANY batch tile (including tb=1) is a legal block shape.
    f3 = f.reshape(bs, 1, n)
    x03 = x0.reshape(bs, 1, n)
    xsol3 = xsol.reshape(bs, 1, n)

    cap = _vmem_capacity_bytes()
    cost = pl.CostEstimate(
        flops=2 * maxiter * bs * n * n + 3 * (maxiter + 1) * bs * n,
        transcendentals=bs * out_width,          # one deferred epilogue sqrt tile
        bytes_accessed=4 * (bs * n * n + 3 * bs * n + bs + bs * out_width))
    out_shape = jax.ShapeDtypeStruct((bs, 1, out_width), jnp.float32)

    if not early_stop:
        # rtol == 0: no early stop -> ungated kernel, batch-gridded with
        # "parallel" semantics and a generation-aware G-tile budget.
        budget = int(0.375 * cap)                # ~24 MiB v7x, ~48 MiB v5e/v6e
        tb = _batch_tile(bs, n, budget)
        needed = 2 * 4 * (tb * n * n + 3 * tb * n + tb * out_width)   # double-buffered
        vmem_limit = int(min(0.85 * cap, max(32 << 20, needed + (8 << 20))))
        kernel = functools.partial(_sor_kernel, maxiter=maxiter,
                                   out_width=out_width, gated=False)
        hist3 = pl.pallas_call(
            kernel,
            out_shape=out_shape,
            grid=(bs // tb,),
            in_specs=[
                pl.BlockSpec((tb, n, n), lambda i: (i, 0, 0)),
                pl.BlockSpec((tb, 1, n), lambda i: (i, 0, 0)),
                pl.BlockSpec((tb, 1, n), lambda i: (i, 0, 0)),
                pl.BlockSpec((tb, 1, n), lambda i: (i, 0, 0)),
            ],
            out_specs=pl.BlockSpec((tb, 1, out_width), lambda i: (i, 0, 0)),
            compiler_params=pltpu.CompilerParams(
                dimension_semantics=("parallel",),
                vmem_limit_bytes=vmem_limit),
            cost_estimate=cost,
        )(G, f3, x03, xsol3)
    else:
        # rtol > 0: whole batch in one block so the early-stop gate is a
        # whole-batch `any`, exactly matching the PyTorch while-loop.  With
        # grid=(1,) there is nothing to pipeline -> single-buffer the inputs
        # (halves the G VMEM footprint; matters on v7x's 64 MiB VMEM).
        # TODO(synk): for bs*n*n too large for one VMEM block, switch G to
        # memory_space=pl.ANY and emit_pipeline over batch chunks in-kernel.
        xtol_sq = xtol * jnp.abs(xtol)           # sign-preserving square
        kernel = functools.partial(_sor_kernel, maxiter=maxiter,
                                   out_width=out_width, gated=True)
        needed = 4 * (bs * n * n + 3 * bs * n + bs + 2 * bs * out_width)
        vmem_limit = int(min(0.85 * cap, max(32 << 20, 2 * needed + (8 << 20))))

        def gated_call(single_buffer):
            pm = {"pipeline_mode": pl.Buffered(1)} if single_buffer else {}
            return pl.pallas_call(
                kernel,
                out_shape=out_shape,
                grid=(1,),
                in_specs=[
                    pl.BlockSpec((bs, n, n), lambda i: (0, 0, 0), **pm),
                    pl.BlockSpec((bs, 1, n), lambda i: (0, 0, 0), **pm),
                    pl.BlockSpec((bs, 1, n), lambda i: (0, 0, 0), **pm),
                    pl.BlockSpec((bs, 1, n), lambda i: (0, 0, 0), **pm),
                    pl.BlockSpec((bs, 1), lambda i: (0, 0), **pm),
                ],
                out_specs=pl.BlockSpec((bs, 1, out_width), lambda i: (0, 0, 0)),
                compiler_params=pltpu.CompilerParams(
                    dimension_semantics=("arbitrary",),
                    vmem_limit_bytes=vmem_limit),
                cost_estimate=cost,
            )(G, f3, x03, xsol3, xtol_sq)

        try:
            hist3 = gated_call(True)
        except Exception:
            # Fallback for runtimes without Buffered(1) pipeline_mode support.
            hist3 = gated_call(False)

    return hist3.reshape(bs, out_width)[:, : maxiter + 1]


def _reference_history(G, f, x0, xsol, xtol, maxiter):
    """NumPy float64 reference of the iteration loop (same semantics as PyTorch)."""
    G = np.asarray(G, np.float64)
    f = np.asarray(f, np.float64)
    x = np.asarray(x0, np.float64)
    xsol = np.asarray(xsol, np.float64)
    xtol = np.asarray(xtol, np.float64).reshape(-1)
    bs = x.shape[0]
    hist = np.zeros((bs, maxiter + 1), np.float64)
    err = np.linalg.norm(xsol - x, axis=1)
    hist[:, 0] = err
    i = 0
    while i < maxiter and np.any(err > xtol):
        x = np.einsum("bij,bj->bi", G, x) + f
        err = np.linalg.norm(xsol - x, axis=1)
        i += 1
        hist[:, i] = err
    return hist


if __name__ == "__main__":
    key = jax.random.PRNGKey(0)
    bs, n = 2, 16
    maxiter = 12
    params_fix = {"omega": 1.3}          # SORJit.__init__: omega taken from params_fix
    omega = params_fix["omega"]

    k1, k2, k3 = jax.random.split(key, 3)
    M = jax.random.normal(k1, (bs, n, n), jnp.float32)
    # SPD + diagonally dominant -> SOR converges for omega in (0, 2)
    A = jnp.einsum("bij,bkj->bik", M, M) + n * jnp.eye(n, dtype=jnp.float32)
    b = jax.random.normal(k2, (bs, n), jnp.float32)
    x_sol = jnp.linalg.solve(A, b[..., None])[..., 0]
    theta = jax.random.normal(k3, (bs, n), jnp.float32)   # initial guess x0

    tau = {
        "A": A,
        "b": b,
        "x_sol": x_sol,
        "maxiter": jnp.array([maxiter], jnp.int32),
        "rtol": jnp.float32(0.0),   # no early stop -> fully deterministic history
    }

    # Primary run (rtol = 0 -> ungated, batch-gridded kernel).
    hist = jax.block_until_ready(sor_jit_forward(tau, theta, omega))
    assert hist.shape == (bs, maxiter + 1)

    # Cross-check the in-kernel iteration against a float64 NumPy reference.
    G, f, x0, xsol, xtol, mi, _ = _build_sor_operators(tau, theta, omega)
    ref = _reference_history(G, f, x0, xsol, xtol, mi)
    np.testing.assert_allclose(np.asarray(hist), ref, rtol=5e-3, atol=1e-4)

    # Exercise the gated (rtol > 0) path as well:
    # (a) vanishingly small rtol never triggers early stop -> identical history.
    tau_tiny = dict(tau, rtol=jnp.float32(1e-30))
    hist_tiny = jax.block_until_ready(sor_jit_forward(tau_tiny, theta, omega))
    np.testing.assert_allclose(np.asarray(hist_tiny), np.asarray(hist),
                               rtol=1e-5, atol=1e-6)
    # (b) huge rtol stops immediately: column 0 is the initial error, rest zero.
    tau_huge = dict(tau, rtol=jnp.float32(1e6))
    hist_huge = jax.block_until_ready(sor_jit_forward(tau_huge, theta, omega))
    np.testing.assert_allclose(np.asarray(hist_huge)[:, 0],
                               np.linalg.norm(np.asarray(xsol) - np.asarray(x0), axis=1),
                               rtol=1e-4, atol=1e-5)
    np.testing.assert_array_equal(np.asarray(hist_huge)[:, 1:],
                                  np.zeros((bs, maxiter), np.float32))

    print("KERNEL_OK")
</pallas_src>

<mosaic_0001>
module attributes {stable_mosaic.version = 11 : i64} {
  func.func @_sor_kernel(%arg0: i32, %arg1: memref<1x16x16xf32, #tpu.memory_space<vmem>>, %arg2: memref<1x1x16xf32, #tpu.memory_space<vmem>>, %arg3: memref<1x1x16xf32, #tpu.memory_space<vmem>>, %arg4: memref<1x1x16xf32, #tpu.memory_space<vmem>>, %arg5: memref<1x1x128xf32, #tpu.memory_space<vmem>>) attributes {dimension_semantics = [#tpu.dimension_semantics<parallel>], iteration_bounds = array<i64: 2>, scalar_prefetch = 0 : i64, scratch_operands = 0 : i64, tpu.core_type = #tpu.core_type<tc>, window_params = [{transform_indices = @transform_0, window_bounds = array<i64: 1, 16, 16>}, {transform_indices = @transform_1, window_bounds = array<i64: 1, 1, 16>}, {transform_indices = @transform_2, window_bounds = array<i64: 1, 1, 16>}, {transform_indices = @transform_3, window_bounds = array<i64: 1, 1, 16>}, {transform_indices = @transform_4, window_bounds = array<i64: 1, 1, 128>}]} {
    %c0 = arith.constant 0 : index
    %c0_0 = arith.constant 0 : index
    %c0_1 = arith.constant 0 : index
    %0 = vector.load %arg1[%c0, %c0_0, %c0_1] : memref<1x16x16xf32, #tpu.memory_space<vmem>>, vector<1x16x16xf32>
    %c0_2 = arith.constant 0 : index
    %c0_3 = arith.constant 0 : index
    %c0_4 = arith.constant 0 : index
    %1 = vector.load %arg2[%c0_2, %c0_3, %c0_4] : memref<1x1x16xf32, #tpu.memory_space<vmem>>, vector<1x1x16xf32>
    %2 = vector.shape_cast %1 : vector<1x1x16xf32> to vector<1x16xf32>
    %c0_5 = arith.constant 0 : index
    %c0_6 = arith.constant 0 : index
    %c0_7 = arith.constant 0 : index
    %3 = vector.load %arg4[%c0_5, %c0_6, %c0_7] : memref<1x1x16xf32, #tpu.memory_space<vmem>>, vector<1x1x16xf32>
    %4 = vector.shape_cast %3 : vector<1x1x16xf32> to vector<1x16xf32>
    %c0_8 = arith.constant 0 : index
    %c0_9 = arith.constant 0 : index
    %c0_10 = arith.constant 0 : index
    %5 = vector.load %arg3[%c0_8, %c0_9, %c0_10] : memref<1x1x16xf32, #tpu.memory_space<vmem>>, vector<1x1x16xf32>
    %6 = vector.shape_cast %5 : vector<1x1x16xf32> to vector<1x16xf32>
    %7 = tpu.iota {dimensions = array<i32: 1>} : vector<1x128xi32>
    %8 = arith.subf %4, %6 : vector<1x16xf32>
    %9 = arith.mulf %8, %8 : vector<1x16xf32>
    %cst = arith.constant dense<0.000000e+00> : vector<1xf32>
    %10 = vector.multi_reduction <add>, %9, %cst [1] : vector<1x16xf32> to vector<1xf32>
    %11 = vector.shape_cast %10 : vector<1xf32> to vector<1x1xf32>
    %c0_i32 = arith.constant 0 : i32
    %12 = vector.broadcast %c0_i32 : i32 to vector<1x128xi32>
    %13 = arith.cmpi eq, %7, %12 : vector<1x128xi32>
    %cst_11 = arith.constant 0.000000e+00 : f32
    %14 = vector.broadcast %cst_11 : f32 to vector<1x128xf32>
    %15 = vector.shape_cast %11 : vector<1x1xf32> to vector<1x1xf32>
    %16 = vector.broadcast %15 : vector<1x1xf32> to vector<1x128xf32>
    %17 = arith.select %13, %16, %14 : vector<1x128xi1>, vector<1x128xf32>
    %18 = vector.shape_cast %6 : vector<1x16xf32> to vector<1x1x16xf32>
    %19 = vector.broadcast %18 : vector<1x1x16xf32> to vector<1x16x16xf32>
    %20 = arith.mulf %0, %19 : vector<1x16x16xf32>
    %cst_12 = arith.constant dense<0.000000e+00> : vector<1x16xf32>
    %21 = vector.multi_reduction <add>, %20, %cst_12 [2] : vector<1x16x16xf32> to vector<1x16xf32>
    %22 = arith.addf %21, %2 : vector<1x16xf32>
    %23 = arith.subf %4, %22 : vector<1x16xf32>
    %24 = arith.mulf %23, %23 : vector<1x16xf32>
    %cst_13 = arith.constant dense<0.000000e+00> : vector<1xf32>
    %25 = vector.multi_reduction <add>, %24, %cst_13 [1] : vector<1x16xf32> to vector<1xf32>
    %26 = vector.shape_cast %25 : vector<1xf32> to vector<1x1xf32>
    %c1_i32 = arith.constant 1 : i32
    %27 = vector.broadcast %c1_i32 : i32 to vector<1x128xi32>
    %28 = arith.cmpi eq, %7, %27 : vector<1x128xi32>
    %29 = vector.shape_cast %26 : vector<1x1xf32> to vector<1x1xf32>
    %30 = vector.broadcast %29 : vector<1x1xf32> to vector<1x128xf32>
    %31 = arith.select %28, %30, %17 : vector<1x128xi1>, vector<1x128xf32>
    %32 = vector.shape_cast %22 : vector<1x16xf32> to vector<1x1x16xf32>
    %33 = vector.broadcast %32 : vector<1x1x16xf32> to vector<1x16x16xf32>
    %34 = arith.mulf %0, %33 : vector<1x16x16xf32>
    %cst_14 = arith.constant dense<0.000000e+00> : vector<1x16xf32>
    %35 = vector.multi_reduction <add>, %34, %cst_14 [2] : vector<1x16x16xf32> to vector<1x16xf32>
    %36 = arith.addf %35, %2 : vector<1x16xf32>
    %37 = arith.subf %4, %36 : vector<1x16xf32>
    %38 = arith.mulf %37, %37 : vector<1x16xf32>
    %cst_15 = arith.constant dense<0.000000e+00> : vector<1xf32>
    %39 = vector.multi_reduction <add>, %38, %cst_15 [1] : vector<1x16xf32> to vector<1xf32>
    %40 = vector.shape_cast %39 : vector<1xf32> to vector<1x1xf32>
    %c2_i32 = arith.constant 2 : i32
    %41 = vector.broadcast %c2_i32 : i32 to vector<1x128xi32>
    %42 = arith.cmpi eq, %7, %41 : vector<1x128xi32>
    %43 = vector.shape_cast %40 : vector<1x1xf32> to vector<1x1xf32>
    %44 = vector.broadcast %43 : vector<1x1xf32> to vector<1x128xf32>
    %45 = arith.select %42, %44, %31 : vector<1x128xi1>, vector<1x128xf32>
    %46 = vector.shape_cast %36 : vector<1x16xf32> to vector<1x1x16xf32>
    %47 = vector.broadcast %46 : vector<1x1x16xf32> to vector<1x16x16xf32>
    %48 = arith.mulf %0, %47 : vector<1x16x16xf32>
    %cst_16 = arith.constant dense<0.000000e+00> : vector<1x16xf32>
    %49 = vector.multi_reduction <add>, %48, %cst_16 [2] : vector<1x16x16xf32> to vector<1x16xf32>
    %50 = arith.addf %49, %2 : vector<1x16xf32>
    %51 = arith.subf %4, %50 : vector<1x16xf32>
    %52 = arith.mulf %51, %51 : vector<1x16xf32>
    %cst_17 = arith.constant dense<0.000000e+00> : vector<1xf32>
    %53 = vector.multi_reduction <add>, %52, %cst_17 [1] : vector<1x16xf32> to vector<1xf32>
    %54 = vector.shape_cast %53 : vector<1xf32> to vector<1x1xf32>
    %c3_i32 = arith.constant 3 : i32
    %55 = vector.broadcast %c3_i32 : i32 to vector<1x128xi32>
    %56 = arith.cmpi eq, %7, %55 : vector<1x128xi32>
    %57 = vector.shape_cast %54 : vector<1x1xf32> to vector<1x1xf32>
    %58 = vector.broadcast %57 : vector<1x1xf32> to vector<1x128xf32>
    %59 = arith.select %56, %58, %45 : vector<1x128xi1>, vector<1x128xf32>
    %60 = vector.shape_cast %50 : vector<1x16xf32> to vector<1x1x16xf32>
    %61 = vector.broadcast %60 : vector<1x1x16xf32> to vector<1x16x16xf32>
    %62 = arith.mulf %0, %61 : vector<1x16x16xf32>
    %cst_18 = arith.constant dense<0.000000e+00> : vector<1x16xf32>
    %63 = vector.multi_reduction <add>, %62, %cst_18 [2] : vector<1x16x16xf32> to vector<1x16xf32>
    %64 = arith.addf %63, %2 : vector<1x16xf32>
    %65 = arith.subf %4, %64 : vector<1x16xf32>
    %66 = arith.mulf %65, %65 : vector<1x16xf32>
    %cst_19 = arith.constant dense<0.000000e+00> : vector<1xf32>
    %67 = vector.multi_reduction <add>, %66, %cst_19 [1] : vector<1x16xf32> to vector<1xf32>
    %68 = vector.shape_cast %67 : vector<1xf32> to vector<1x1xf32>
    %c4_i32 = arith.constant 4 : i32
    %69 = vector.broadcast %c4_i32 : i32 to vector<1x128xi32>
    %70 = arith.cmpi eq, %7, %69 : vector<1x128xi32>
    %71 = vector.shape_cast %68 : vector<1x1xf32> to vector<1x1xf32>
    %72 = vector.broadcast %71 : vector<1x1xf32> to vector<1x128xf32>
    %73 = arith.select %70, %72, %59 : vector<1x128xi1>, vector<1x128xf32>
    %74 = vector.shape_cast %64 : vector<1x16xf32> to vector<1x1x16xf32>
    %75 = vector.broadcast %74 : vector<1x1x16xf32> to vector<1x16x16xf32>
    %76 = arith.mulf %0, %75 : vector<1x16x16xf32>
    %cst_20 = arith.constant dense<0.000000e+00> : vector<1x16xf32>
    %77 = vector.multi_reduction <add>, %76, %cst_20 [2] : vector<1x16x16xf32> to vector<1x16xf32>
    %78 = arith.addf %77, %2 : vector<1x16xf32>
    %79 = arith.subf %4, %78 : vector<1x16xf32>
    %80 = arith.mulf %79, %79 : vector<1x16xf32>
    %cst_21 = arith.constant dense<0.000000e+00> : vector<1xf32>
    %81 = vector.multi_reduction <add>, %80, %cst_21 [1] : vector<1x16xf32> to vector<1xf32>
    %82 = vector.shape_cast %81 : vector<1xf32> to vector<1x1xf32>
    %c5_i32 = arith.constant 5 : i32
    %83 = vector.broadcast %c5_i32 : i32 to vector<1x128xi32>
    %84 = arith.cmpi eq, %7, %83 : vector<1x128xi32>
    %85 = vector.shape_cast %82 : vector<1x1xf32> to vector<1x1xf32>
    %86 = vector.broadcast %85 : vector<1x1xf32> to vector<1x128xf32>
    %87 = arith.select %84, %86, %73 : vector<1x128xi1>, vector<1x128xf32>
    %88 = vector.shape_cast %78 : vector<1x16xf32> to vector<1x1x16xf32>
    %89 = vector.broadcast %88 : vector<1x1x16xf32> to vector<1x16x16xf32>
    %90 = arith.mulf %0, %89 : vector<1x16x16xf32>
    %cst_22 = arith.constant dense<0.000000e+00> : vector<1x16xf32>
    %91 = vector.multi_reduction <add>, %90, %cst_22 [2] : vector<1x16x16xf32> to vector<1x16xf32>
    %92 = arith.addf %91, %2 : vector<1x16xf32>
    %93 = arith.subf %4, %92 : vector<1x16xf32>
    %94 = arith.mulf %93, %93 : vector<1x16xf32>
    %cst_23 = arith.constant dense<0.000000e+00> : vector<1xf32>
    %95 = vector.multi_reduction <add>, %94, %cst_23 [1] : vector<1x16xf32> to vector<1xf32>
    %96 = vector.shape_cast %95 : vector<1xf32> to vector<1x1xf32>
    %c6_i32 = arith.constant 6 : i32
    %97 = vector.broadcast %c6_i32 : i32 to vector<1x128xi32>
    %98 = arith.cmpi eq, %7, %97 : vector<1x128xi32>
    %99 = vector.shape_cast %96 : vector<1x1xf32> to vector<1x1xf32>
    %100 = vector.broadcast %99 : vector<1x1xf32> to vector<1x128xf32>
    %101 = arith.select %98, %100, %87 : vector<1x128xi1>, vector<1x128xf32>
    %102 = vector.shape_cast %92 : vector<1x16xf32> to vector<1x1x16xf32>
    %103 = vector.broadcast %102 : vector<1x1x16xf32> to vector<1x16x16xf32>
    %104 = arith.mulf %0, %103 : vector<1x16x16xf32>
    %cst_24 = arith.constant dense<0.000000e+00> : vector<1x16xf32>
    %105 = vector.multi_reduction <add>, %104, %cst_24 [2] : vector<1x16x16xf32> to vector<1x16xf32>
    %106 = arith.addf %105, %2 : vector<1x16xf32>
    %107 = arith.subf %4, %106 : vector<1x16xf32>
    %108 = arith.mulf %107, %107 : vector<1x16xf32>
    %cst_25 = arith.constant dense<0.000000e+00> : vector<1xf32>
    %109 = vector.multi_reduction <add>, %108, %cst_25 [1] : vector<1x16xf32> to vector<1xf32>
    %110 = vector.shape_cast %109 : vector<1xf32> to vector<1x1xf32>
    %c7_i32 = arith.constant 7 : i32
    %111 = vector.broadcast %c7_i32 : i32 to vector<1x128xi32>
    %112 = arith.cmpi eq, %7, %111 : vector<1x128xi32>
    %113 = vector.shape_cast %110 : vector<1x1xf32> to vector<1x1xf32>
    %114 = vector.broadcast %113 : vector<1x1xf32> to vector<1x128xf32>
    %115 = arith.select %112, %114, %101 : vector<1x128xi1>, vector<1x128xf32>
    %116 = vector.shape_cast %106 : vector<1x16xf32> to vector<1x1x16xf32>
    %117 = vector.broadcast %116 : vector<1x1x16xf32> to vector<1x16x16xf32>
    %118 = arith.mulf %0, %117 : vector<1x16x16xf32>
    %cst_26 = arith.constant dense<0.000000e+00> : vector<1x16xf32>
    %119 = vector.multi_reduction <add>, %118, %cst_26 [2] : vector<1x16x16xf32> to vector<1x16xf32>
    %120 = arith.addf %119, %2 : vector<1x16xf32>
    %121 = arith.subf %4, %120 : vector<1x16xf32>
    %122 = arith.mulf %121, %121 : vector<1x16xf32>
    %cst_27 = arith.constant dense<0.000000e+00> : vector<1xf32>
    %123 = vector.multi_reduction <add>, %122, %cst_27 [1] : vector<1x16xf32> to vector<1xf32>
    %124 = vector.shape_cast %123 : vector<1xf32> to vector<1x1xf32>
    %c8_i32 = arith.constant 8 : i32
    %125 = vector.broadcast %c8_i32 : i32 to vector<1x128xi32>
    %126 = arith.cmpi eq, %7, %125 : vector<1x128xi32>
    %127 = vector.shape_cast %124 : vector<1x1xf32> to vector<1x1xf32>
    %128 = vector.broadcast %127 : vector<1x1xf32> to vector<1x128xf32>
    %129 = arith.select %126, %128, %115 : vector<1x128xi1>, vector<1x128xf32>
    %130 = vector.shape_cast %120 : vector<1x16xf32> to vector<1x1x16xf32>
    %131 = vector.broadcast %130 : vector<1x1x16xf32> to vector<1x16x16xf32>
    %132 = arith.mulf %0, %131 : vector<1x16x16xf32>
    %cst_28 = arith.constant dense<0.000000e+00> : vector<1x16xf32>
    %133 = vector.multi_reduction <add>, %132, %cst_28 [2] : vector<1x16x16xf32> to vector<1x16xf32>
    %134 = arith.addf %133, %2 : vector<1x16xf32>
    %135 = arith.subf %4, %134 : vector<1x16xf32>
    %136 = arith.mulf %135, %135 : vector<1x16xf32>
    %cst_29 = arith.constant dense<0.000000e+00> : vector<1xf32>
    %137 = vector.multi_reduction <add>, %136, %cst_29 [1] : vector<1x16xf32> to vector<1xf32>
    %138 = vector.shape_cast %137 : vector<1xf32> to vector<1x1xf32>
    %c9_i32 = arith.constant 9 : i32
    %139 = vector.broadcast %c9_i32 : i32 to vector<1x128xi32>
    %140 = arith.cmpi eq, %7, %139 : vector<1x128xi32>
    %141 = vector.shape_cast %138 : vector<1x1xf32> to vector<1x1xf32>
    %142 = vector.broadcast %141 : vector<1x1xf32> to vector<1x128xf32>
    %143 = arith.select %140, %142, %129 : vector<1x128xi1>, vector<1x128xf32>
    %144 = vector.shape_cast %134 : vector<1x16xf32> to vector<1x1x16xf32>
    %145 = vector.broadcast %144 : vector<1x1x16xf32> to vector<1x16x16xf32>
    %146 = arith.mulf %0, %145 : vector<1x16x16xf32>
    %cst_30 = arith.constant dense<0.000000e+00> : vector<1x16xf32>
    %147 = vector.multi_reduction <add>, %146, %cst_30 [2] : vector<1x16x16xf32> to vector<1x16xf32>
    %148 = arith.addf %147, %2 : vector<1x16xf32>
    %149 = arith.subf %4, %148 : vector<1x16xf32>
    %150 = arith.mulf %149, %149 : vector<1x16xf32>
    %cst_31 = arith.constant dense<0.000000e+00> : vector<1xf32>
    %151 = vector.multi_reduction <add>, %150, %cst_31 [1] : vector<1x16xf32> to vector<1xf32>
    %152 = vector.shape_cast %151 : vector<1xf32> to vector<1x1xf32>
    %c10_i32 = arith.constant 10 : i32
    %153 = vector.broadcast %c10_i32 : i32 to vector<1x128xi32>
    %154 = arith.cmpi eq, %7, %153 : vector<1x128xi32>
    %155 = vector.shape_cast %152 : vector<1x1xf32> to vector<1x1xf32>
    %156 = vector.broadcast %155 : vector<1x1xf32> to vector<1x128xf32>
    %157 = arith.select %154, %156, %143 : vector<1x128xi1>, vector<1x128xf32>
    %158 = vector.shape_cast %148 : vector<1x16xf32> to vector<1x1x16xf32>
    %159 = vector.broadcast %158 : vector<1x1x16xf32> to vector<1x16x16xf32>
    %160 = arith.mulf %0, %159 : vector<1x16x16xf32>
    %cst_32 = arith.constant dense<0.000000e+00> : vector<1x16xf32>
    %161 = vector.multi_reduction <add>, %160, %cst_32 [2] : vector<1x16x16xf32> to vector<1x16xf32>
    %162 = arith.addf %161, %2 : vector<1x16xf32>
    %163 = arith.subf %4, %162 : vector<1x16xf32>
    %164 = arith.mulf %163, %163 : vector<1x16xf32>
    %cst_33 = arith.constant dense<0.000000e+00> : vector<1xf32>
    %165 = vector.multi_reduction <add>, %164, %cst_33 [1] : vector<1x16xf32> to vector<1xf32>
    %166 = vector.shape_cast %165 : vector<1xf32> to vector<1x1xf32>
    %c11_i32 = arith.constant 11 : i32
    %167 = vector.broadcast %c11_i32 : i32 to vector<1x128xi32>
    %168 = arith.cmpi eq, %7, %167 : vector<1x128xi32>
    %169 = vector.shape_cast %166 : vector<1x1xf32> to vector<1x1xf32>
    %170 = vector.broadcast %169 : vector<1x1xf32> to vector<1x128xf32>
    %171 = arith.select %168, %170, %157 : vector<1x128xi1>, vector<1x128xf32>
    %172 = vector.shape_cast %162 : vector<1x16xf32> to vector<1x1x16xf32>
    %173 = vector.broadcast %172 : vector<1x1x16xf32> to vector<1x16x16xf32>
    %174 = arith.mulf %0, %173 : vector<1x16x16xf32>
    %cst_34 = arith.constant dense<0.000000e+00> : vector<1x16xf32>
    %175 = vector.multi_reduction <add>, %174, %cst_34 [2] : vector<1x16x16xf32> to vector<1x16xf32>
    %176 = arith.addf %175, %2 : vector<1x16xf32>
    %177 = arith.subf %4, %176 : vector<1x16xf32>
    %178 = arith.mulf %177, %177 : vector<1x16xf32>
    %cst_35 = arith.constant dense<0.000000e+00> : vector<1xf32>
    %179 = vector.multi_reduction <add>, %178, %cst_35 [1] : vector<1x16xf32> to vector<1xf32>
    %180 = vector.shape_cast %179 : vector<1xf32> to vector<1x1xf32>
    %c12_i32 = arith.constant 12 : i32
    %181 = vector.broadcast %c12_i32 : i32 to vector<1x128xi32>
    %182 = arith.cmpi eq, %7, %181 : vector<1x128xi32>
    %183 = vector.shape_cast %180 : vector<1x1xf32> to vector<1x1xf32>
    %184 = vector.broadcast %183 : vector<1x1xf32> to vector<1x128xf32>
    %185 = arith.select %182, %184, %171 : vector<1x128xi1>, vector<1x128xf32>
    %186 = math.sqrt %185 : vector<1x128xf32>
    %187 = vector.shape_cast %186 : vector<1x128xf32> to vector<1x1x128xf32>
    %c0_36 = arith.constant 0 : index
    %c0_37 = arith.constant 0 : index
    %c0_38 = arith.constant 0 : index
    %188 = vector.load %arg5[%c0_36, %c0_37, %c0_38] : memref<1x1x128xf32, #tpu.memory_space<vmem>>, vector<1x1x128xf32>
    tpu.vector_store %arg5[%c0_36, %c0_37, %c0_38], %187 {strides = array<i32>} : memref<1x1x128xf32, #tpu.memory_space<vmem>>, vector<1x1x128xf32>,
    return
  }
  func.func @transform_0(%arg0: i32) -> (i32, i32, i32) {
    %c0_i32 = arith.constant 0 : i32
    %c0_i32_0 = arith.constant 0 : i32
    %c0_i32_1 = arith.constant 0 : i32
    return %arg0, %c0_i32, %c0_i32_0 : i32, i32, i32
  }
  func.func @transform_1(%arg0: i32) -> (i32, i32, i32) {
    %c0_i32 = arith.constant 0 : i32
    %c0_i32_0 = arith.constant 0 : i32
    %c0_i32_1 = arith.constant 0 : i32
    return %arg0, %c0_i32, %c0_i32_0 : i32, i32, i32
  }
  func.func @transform_2(%arg0: i32) -> (i32, i32, i32) {
    %c0_i32 = arith.constant 0 : i32
    %c0_i32_0 = arith.constant 0 : i32
    %c0_i32_1 = arith.constant 0 : i32
    return %arg0, %c0_i32, %c0_i32_0 : i32, i32, i32
  }
  func.func @transform_3(%arg0: i32) -> (i32, i32, i32) {
    %c0_i32 = arith.constant 0 : i32
    %c0_i32_0 = arith.constant 0 : i32
    %c0_i32_1 = arith.constant 0 : i32
    return %arg0, %c0_i32, %c0_i32_0 : i32, i32, i32
  }
  func.func @transform_4(%arg0: i32) -> (i32, i32, i32) {
    %c0_i32 = arith.constant 0 : i32
    %c0_i32_0 = arith.constant 0 : i32
    %c0_i32_1 = arith.constant 0 : i32
    return %arg0, %c0_i32, %c0_i32_0 : i32, i32, i32
  }
}

</mosaic_0001>

<llo_original>
// kernel: tpu_custom_call.1
$region0: #{tpu_custom_call.1}
  #allocation0 [shape = 'u32[]', space=smem, size = 0x4, offset = 0x4, fixed_abs, tag = 'smem constant byte address 0x4 - core index']
  #allocation1 [shape = 'u32[144,128]{1,0:T(1,128)}', space=vmem, size = 0x12000, scoped, tag = 'internal scratch']
  %s0 = inlined_call_operand.hbm [shape: f32[2,16,16], index: 0, kind: input, shape index: {}]
  %s1 = inlined_call_operand.vmem [shape: f32[2,1,16], index: 1, kind: input, shape index: {}]
  %s2 = inlined_call_operand.vmem [shape: f32[2,1,16], index: 2, kind: input, shape index: {}]
  %s3 = inlined_call_operand.vmem [shape: f32[2,1,16], index: 3, kind: input, shape index: {}]
  %s4 = inlined_call_operand.hbm [shape: f32[2,1,128], index: 4, kind: output, shape index: {}]
  %s5 = sld [smem:[#allocation0]]
  $region53: #{tpu_custom_call.1} parent=0
    _
  %s7 = ssub.s32 1, %s5
  %s8 = scalar_select 0, %s7, %s5
  $region1: #{tpu_custom_call.1} parent=0
    #allocation2 [shape = 'u8[16384]{0}', space=vmem, size = 0x4000, scoped, tag = 'input window, operand 0']
    #allocation3 [shape = 's32[2]{0}', space=sflag, size = 0x8, scoped, tag = 'scoped memory for tpu_custom_call.1']
    #allocation4 [shape = 's32[2]{0}', space=sflag, size = 0x8, scoped, tag = 'scoped memory for tpu_custom_call.1']
    #allocation5 [shape = 'u8[1024]{0}', space=vmem, size = 0x400, scoped, tag = 'output window, operand 0']
    %9 = vsyncpa [#allocation3], 0
    %s10 = scalar_lea.sflag [#allocation3], 1
    %11 = vsyncpa %s10, 0
    %12 = vsyncpa [#allocation4], 0
    %s13 = scalar_lea.sflag [#allocation4], 1
    %14 = vsyncpa %s13, 0
    loop: start=0, step=1, limit=4
    $region2: #{tpu_custom_call.1} parent=1 // loop_pre_header
      _
    $region3: #{tpu_custom_call.1} parent=1 // loop_header
      %s16 = sphi 0, %s20
      %p17 = scmp.ge.s32.totalorder %s16, 4
      %s26 = sphi 0, %s28
      %s29 = sphi 0, %s26
      %s30 = sphi 0, %s29
      %s46 = sphi 0, %s30
      %s52 = sphi 0, %s54
      %s55 = sphi 0, %s52
      %s56 = sphi 0, %s55
      %s72 = sphi 0, %s56
      %s78 = sphi 0, %s80
      %s81 = sphi 0, %s78
      %s82 = sphi 0, %s81
      %s98 = sphi 0, %s82
      %s104 = sphi 0, %s106
      %s107 = sphi 0, %s104
      %s108 = sphi 0, %s107
      %s124 = sphi 0, %s108
      %s130 = sphi 0, %s132
      %s133 = sphi 0, %s130
      %s134 = sphi 0, %s133
      %s150 = sphi 0, %s134
    $region4: #{tpu_custom_call.1} parent=1 // loop_header_branch
      %19 = sbr.rel (%p17) target = $region8
    $region5: #{tpu_custom_call.1} parent=1 // loop_body
      %s21 = ssub.s32 %s16, 1
      %s22 = ssub.s32 %s16, 2
      %s23 = sadd.s32 %s16, 1
      %s24 = ssub.s32 %s16, %s23
      %p25 = scmp.eq.s32.totalorder %s24, 0
      %s27 = sadd.s32 %s26, 1
      %s28 = scalar_select %p25, %s26, %s27
      %p31 = pneg %p25
      %p32 = scmp.eq.s32.totalorder %s16, 1
      %p33 = por %p31, %p32
      %p34 = scmp.ne.s32.totalorder %s26, %s29
      %p35 = scmp.eq.s32.totalorder %s16, 0
      %p36 = por %p34, %p35
      %p37 = scmp.ne.s32.totalorder %s26, %s29
      %p38 = scmp.eq.s32.totalorder %s21, 1
      %p39 = por %p37, %p38
      %p40 = scmp.ne.s32.totalorder %s29, %s30
      %p41 = scmp.eq.s32.totalorder %s21, 0
      %p42 = por %p40, %p41
      %p43 = scmp.ne.s32.totalorder %s29, %s30
      %p44 = scmp.eq.s32.totalorder %s22, 1
      %p45 = por %p43, %p44
      %p47 = scmp.ne.s32.totalorder %s30, %s46
      %p48 = scmp.eq.s32.totalorder %s22, 0
      %p49 = por %p47, %p48
      %s50 = ssub.s32 %s16, %s23
      %p51 = scmp.eq.s32.totalorder %s50, 0
      %s53 = sadd.s32 %s52, 1
      %s54 = scalar_select %p51, %s52, %s53
      %p57 = pneg %p51
      %p58 = scmp.eq.s32.totalorder %s16, 1
      %p59 = por %p57, %p58
      %p60 = scmp.ne.s32.totalorder %s52, %s55
      %p61 = scmp.eq.s32.totalorder %s16, 0
      %p62 = por %p60, %p61
      %p63 = scmp.ne.s32.totalorder %s52, %s55
      %p64 = scmp.eq.s32.totalorder %s21, 1
      %p65 = por %p63, %p64
      %p66 = scmp.ne.s32.totalorder %s55, %s56
      %p67 = scmp.eq.s32.totalorder %s21, 0
      %p68 = por %p66, %p67
      %p69 = scmp.ne.s32.totalorder %s55, %s56
      %p70 = scmp.eq.s32.totalorder %s22, 1
      %p71 = por %p69, %p70
      %p73 = scmp.ne.s32.totalorder %s56, %s72
      %p74 = scmp.eq.s32.totalorder %s22, 0
      %p75 = por %p73, %p74
      %s76 = ssub.s32 %s16, %s23
      %p77 = scmp.eq.s32.totalorder %s76, 0
      %s79 = sadd.s32 %s78, 1
      %s80 = scalar_select %p77, %s78, %s79
      %p83 = pneg %p77
      %p84 = scmp.eq.s32.totalorder %s16, 1
      %p85 = por %p83, %p84
      %p86 = scmp.ne.s32.totalorder %s78, %s81
      %p87 = scmp.eq.s32.totalorder %s16, 0
      %p88 = por %p86, %p87
      %p89 = scmp.ne.s32.totalorder %s78, %s81
      %p90 = scmp.eq.s32.totalorder %s21, 1
      %p91 = por %p89, %p90
      %p92 = scmp.ne.s32.totalorder %s81, %s82
      %p93 = scmp.eq.s32.totalorder %s21, 0
      %p94 = por %p92, %p93
      %p95 = scmp.ne.s32.totalorder %s81, %s82
      %p96 = scmp.eq.s32.totalorder %s22, 1
      %p97 = por %p95, %p96
      %p99 = scmp.ne.s32.totalorder %s82, %s98
      %p100 = scmp.eq.s32.totalorder %s22, 0
      %p101 = por %p99, %p100
      %s102 = ssub.s32 %s16, %s23
      %p103 = scmp.eq.s32.totalorder %s102, 0
      %s105 = sadd.s32 %s104, 1
      %s106 = scalar_select %p103, %s104, %s105
      %p109 = pneg %p103
      %p110 = scmp.eq.s32.totalorder %s16, 1
      %p111 = por %p109, %p110
      %p112 = scmp.ne.s32.totalorder %s104, %s107
      %p113 = scmp.eq.s32.totalorder %s16, 0
      %p114 = por %p112, %p113
      %p115 = scmp.ne.s32.totalorder %s104, %s107
      %p116 = scmp.eq.s32.totalorder %s21, 1
      %p117 = por %p115, %p116
      %p118 = scmp.ne.s32.totalorder %s107, %s108
      %p119 = scmp.eq.s32.totalorder %s21, 0
      %p120 = por %p118, %p119
      %p121 = scmp.ne.s32.totalorder %s107, %s108
      %p122 = scmp.eq.s32.totalorder %s22, 1
      %p123 = por %p121, %p122
      %p125 = scmp.ne.s32.totalorder %s108, %s124
      %p126 = scmp.eq.s32.totalorder %s22, 0
      %p127 = por %p125, %p126
      %s128 = ssub.s32 %s16, %s23
      %p129 = scmp.eq.s32.totalorder %s128, 0
      %s131 = sadd.s32 %s130, 1
      %s132 = scalar_select %p129, %s130, %s131
      %p135 = pneg %p129
      %p136 = scmp.eq.s32.totalorder %s16, 1
      %p137 = por %p135, %p136
      %p138 = scmp.ne.s32.totalorder %s130, %s133
      %p139 = scmp.eq.s32.totalorder %s16, 0
      %p140 = por %p138, %p139
      %p141 = scmp.ne.s32.totalorder %s130, %s133
      %p142 = scmp.eq.s32.totalorder %s21, 1
      %p143 = por %p141, %p142
      %p144 = scmp.ne.s32.totalorder %s133, %s134
      %p145 = scmp.eq.s32.totalorder %s21, 0
      %p146 = por %p144, %p145
      %p147 = scmp.ne.s32.totalorder %s133, %s134
      %p148 = scmp.eq.s32.totalorder %s22, 1
      %p149 = por %p147, %p148
      %p151 = scmp.ne.s32.totalorder %s134, %s150
      %p152 = scmp.eq.s32.totalorder %s22, 0
      %p153 = por %p151, %p152
      %p154 = scmp.le.s32.totalorder 1, %s16
      %p155 = scmp.lt.s32.totalorder %s16, 3
      %p156 = pnand %p154, %p155
      %p157 = pneg %p156
      // Predicated region
      $region9: #{tpu_custom_call.1} parent=5 // pred_check
        _
      $region10: #{tpu_custom_call.1} parent=5 // pred_check_branch
        %159 = sbr.rel (%p156) target = $region12
      $region11: #{tpu_custom_call.1} parent=5 // pred_region
        %s160 = ssub.s32 %s16, 1
      $region12: #{tpu_custom_call.1} parent=5 // pred_fallthru
        _
      %p161 = scmp.lt.s32.totalorder %s16, 2
      // Predicated region
      $region13: #{tpu_custom_call.1} parent=5 // pred_check
        %p162 = pneg %p161
      $region14: #{tpu_custom_call.1} parent=5 // pred_check_branch
        %164 = sbr.rel (%p162) target = $region16
      $region15: #{tpu_custom_call.1} parent=5 // pred_region
        // Predicated region
        $region17: #{tpu_custom_call.1} parent=15 // pred_check
          %p165 = pneg %p36
        $region18: #{tpu_custom_call.1} parent=15 // pred_check_branch
          %167 = sbr.rel (%p165) target = $region20
        $region19: #{tpu_custom_call.1} parent=15 // pred_region
          %s168 = sand.u32 %s26, 1
          %s169 = scalar_lea.sflag [#allocation3], %s168
          %s170 = sand.u32 %s26, 1
          %s171 = smul.addr %s170, 16
          %s172 = scalar_lea.vmem [#allocation2], %s171
          %s174 = ssub.s32 256, 256
          %175 = vsyncadd %s169, %s174
          %s176 = smul.addr %s16, 2
          %s177 = smul.addr %s176, 128
          %s178 = scalar_lea.hbm %s0, %s177
          %s179 = sshll.u32 %s172, 4
          %s180 = int_to_ptr.vmem [resolvable:$true] %s179
          %185 = dma.hbm_to_vmem [thread:$0]  %s178, 256, %s180, %s169, 128, 128, 8
        $region20: #{tpu_custom_call.1} parent=15 // pred_fallthru
          _
        // Predicated region
        $region21: #{tpu_custom_call.1} parent=15 // pred_check
          %p186 = pneg %p62
        $region22: #{tpu_custom_call.1} parent=15 // pred_check_branch
          %188 = sbr.rel (%p186) target = $region24
        $region23: #{tpu_custom_call.1} parent=15 // pred_region
          %p189 = scmp.lt.s32.totalorder %s16, 1
          %s190 = scalar_select %p189, %s16, 1
          %s191 = scalar_lea.vmem %s1, %s190
        $region24: #{tpu_custom_call.1} parent=15 // pred_fallthru
          _
        // Predicated region
        $region25: #{tpu_custom_call.1} parent=15 // pred_check
          %p192 = pneg %p88
        $region26: #{tpu_custom_call.1} parent=15 // pred_check_branch
          %194 = sbr.rel (%p192) target = $region28
        $region27: #{tpu_custom_call.1} parent=15 // pred_region
          %p195 = scmp.lt.s32.totalorder %s16, 1
          %s196 = scalar_select %p195, %s16, 1
          %s197 = scalar_lea.vmem %s2, %s196
        $region28: #{tpu_custom_call.1} parent=15 // pred_fallthru
          _
        // Predicated region
        $region29: #{tpu_custom_call.1} parent=15 // pred_check
          %p198 = pneg %p114
        $region30: #{tpu_custom_call.1} parent=15 // pred_check_branch
          %200 = sbr.rel (%p198) target = $region32
        $region31: #{tpu_custom_call.1} parent=15 // pred_region
          %p201 = scmp.lt.s32.totalorder %s16, 1
          %s202 = scalar_select %p201, %s16, 1
          %s203 = scalar_lea.vmem %s3, %s202
        $region32: #{tpu_custom_call.1} parent=15 // pred_fallthru
          _
      $region16: #{tpu_custom_call.1} parent=5 // pred_fallthru
        _
      %p204 = scmp.le.s32.totalorder 1, %s16
      %p205 = scmp.lt.s32.totalorder %s16, 3
      %p206 = pnand %p204, %p205
      %p207 = pneg %p206
      // Predicated region
      $region33: #{tpu_custom_call.1} parent=5 // pred_check
        _
      $region34: #{tpu_custom_call.1} parent=5 // pred_check_branch
        %209 = sbr.rel (%p206) target = $region36
      $region35: #{tpu_custom_call.1} parent=5 // pred_region
        %s210 = ssub.s32 %s16, 1
        %s211 = sand.u32 %s29, 1
        %s212 = scalar_lea.sflag [#allocation3], %s211
        %s213 = sand.u32 %s29, 1
        %s214 = smul.addr %s213, 16
        %s215 = scalar_lea.vmem [#allocation2], %s214
        // Predicated region
        $region37: #{tpu_custom_call.1} parent=35 // pred_check
          %p216 = pneg %p42
        $region38: #{tpu_custom_call.1} parent=35 // pred_check_branch
          %218 = sbr.rel (%p216) target = $region40
        $region39: #{tpu_custom_call.1} parent=35 // pred_region
          %219 = dma.done %s212, 256
        $region40: #{tpu_custom_call.1} parent=35 // pred_fallthru
          _
        %s220 = sand.u32 %s29, 1
        %s221 = scalar_lea.sflag [#allocation3], %s220
        %s222 = sand.u32 %s29, 1
        %s223 = smul.addr %s222, 16
        %s224 = scalar_lea.vmem [#allocation2], %s223
        %p225 = pneg %p42
        %p226 = pneg %p39
        %p227 = scmp.lt.s32.totalorder %s21, 1
        %s228 = scalar_select %p227, %s21, 1
        %s229 = scalar_lea.vmem %s1, %s228
        %p230 = pneg %p68
        %p231 = pneg %p65
        %p232 = scmp.lt.s32.totalorder %s21, 1
        %s233 = scalar_select %p232, %s21, 1
        %s234 = scalar_lea.vmem %s2, %s233
        %p235 = pneg %p94
        %p236 = pneg %p91
        %p237 = scmp.lt.s32.totalorder %s21, 1
        %s238 = scalar_select %p237, %s21, 1
        %s239 = scalar_lea.vmem %s3, %s238
        %p240 = pneg %p120
        %p241 = pneg %p117
        %p242 = pneg %p146
        %p243 = pneg %p143
        %s244 = sand.u32 %s133, 1
        %s245 = scalar_lea.sflag [#allocation4], %s244
        %s246 = sand.u32 %s133, 1
        %s247 = scalar_lea.vmem [#allocation5], %s246
        %p248 = scmp.lt.s32.totalorder %s21, 1
        %s249 = scalar_select %p248, %s21, 1
        %s250 = scalar_lea.vmem %s1, %s249
        %p251 = scmp.lt.s32.totalorder %s21, 1
        %s252 = scalar_select %p251, %s21, 1
        %s253 = scalar_lea.vmem %s2, %s252
        %p254 = scmp.lt.s32.totalorder %s21, 1
        %s255 = scalar_select %p254, %s21, 1
        %s256 = scalar_lea.vmem %s3, %s255
        %v257 = vld [vmem:[%s215] sm:$0xff]
        %v258 = vld [vmem:[%s215 + $0x8] sm:$0xff]
        %v259 = vld [vmem:[%s250] sm:$0x1]
        %v260 = vld [vmem:[%s256] sm:$0x1]
        %v261 = vld [vmem:[%s253] sm:$0x1]
        %v262 = vlaneseq
        %v263 = vand.u32 %v262, 127
        %v264 = vsub.f32 %v260, %v261
        %v265 = vmul.f32 %v264, %v264
        %vm266 = vcmask 122880
        %v267 = vsel %vm266, %v265, 0.0
        %268 = vadd.xlane.f32.xlu0 %v267
        %v269 = vpop.xlane.xlu0 %268
        %vm270 = vcmp.eq.s32.totalorder %v263, 0
        %v271 = vsel %vm270, %v269, 0.0
        %v273 = vlaneseq
        %v274 = vshrl.u32 %v273, 7
        %v275 = vsub.s32 0, %v274
        %v276 = vrot.slane %v261, %v275
        %v278 = vmul.f32 %v257, %v276
        %v279 = vmul.f32 %v258, %v276
        %vm280 = vcmask 130048
        %v281 = vsel %vm280, %v278, 0.0
        %282 = vadd.xlane.f32.xlu0 %v281
        %v283 = vpop.xlane.xlu0 %282
        %v284 = vsel %vm280, %v279, 0.0
        %285 = vadd.xlane.f32.xlu0 %v284
        %v286 = vpop.xlane.xlu0 %285
        %v288 = vlaneseq
        %v289 = vshrl.u32 %v288, 7
        %v290 = vsub.s32 0, %v289
        %v291 = vrot.slane %v259, %v290
        %293 = vbcast.lane.b32.xlu0 %v291, 256
        %v294 = vpop.permute.xlu0 %293
        %s296 = sor.u32 256, 8
        %297 = vbcast.lane.b32.xlu0 %v291, %s296
        %v298 = vpop.permute.xlu0 %297
        %v301 = vadd.f32 %v283, %v294
        %v302 = vadd.f32 %v286, %v298
        %v305 = vcombine.high %v301, %v301
        %v307 = vunpack.c.l.s4 1966171168
        %v308 = vunpack.c.0.s8 %v307
        %v309 = vlaneseq
        %v310 = vshrl.u32 %v309, 7
        %v311 = vsub.s32 %v308, %v310
        %v312 = vrot.slane %v301, %v311
        %v314 = vunpack.c.l.s4 1966171168
        %v315 = vunpack.c.0.s8 %v314
        %v316 = vlaneseq
        %v317 = vshrl.u32 %v316, 7
        %v318 = vsub.s32 %v315, %v317
        %v319 = vrot.slane %v305, %v318
        %v320 = vcombine.high %v312, %v312
        %v321 = vcombine.high %v319, %v319
        %v323 = vunpack.c.l.s4 1966171168
        %v324 = vunpack.c.0.s8 %v323
        %v325 = vlaneseq
        %v326 = vshrl.u32 %v325, 7
        %v327 = vsub.s32 %v324, %v326
        %v328 = vrot.slane %v312, %v327
        %v330 = vunpack.c.l.s4 1966171168
        %v331 = vunpack.c.0.s8 %v330
        %v332 = vlaneseq
        %v333 = vshrl.u32 %v332, 7
        %v334 = vsub.s32 %v331, %v333
        %v335 = vrot.slane %v319, %v334
        %v337 = vunpack.c.l.s4 1966171168
        %v338 = vunpack.c.0.s8 %v337
        %v339 = vlaneseq
        %v340 = vshrl.u32 %v339, 7
        %v341 = vsub.s32 %v338, %v340
        %v342 = vrot.slane %v320, %v341
        %v344 = vunpack.c.l.s4 1966171168
        %v345 = vunpack.c.0.s8 %v344
        %v346 = vlaneseq
        %v347 = vshrl.u32 %v346, 7
        %v348 = vsub.s32 %v345, %v347
        %v349 = vrot.slane %v321, %v348
        %v350 = vcombine.high %v328, %v328
        %v351 = vcombine.high %v335, %v335
        %v352 = vcombine.high %v342, %v342
        %v353 = vcombine.high %v349, %v349
        %v354 = vcombine.high %v302, %v302
        %v356 = vunpack.c.l.s4 1966171168
        %v357 = vunpack.c.0.s8 %v356
        %v358 = vlaneseq
        %v359 = vshrl.u32 %v358, 7
        %v360 = vsub.s32 %v357, %v359
        %v361 = vrot.slane %v302, %v360
        %v363 = vunpack.c.l.s4 1966171168
        %v364 = vunpack.c.0.s8 %v363
        %v365 = vlaneseq
        %v366 = vshrl.u32 %v365, 7
        %v367 = vsub.s32 %v364, %v366
        %v368 = vrot.slane %v354, %v367
        %v369 = vcombine.high %v361, %v361
        %v370 = vcombine.high %v368, %v368
        %v372 = vunpack.c.l.s4 1966171168
        %v373 = vunpack.c.0.s8 %v372
        %v374 = vlaneseq
        %v375 = vshrl.u32 %v374, 7
        %v376 = vsub.s32 %v373, %v375
        %v377 = vrot.slane %v361, %v376
        %v379 = vunpack.c.l.s4 1966171168
        %v380 = vunpack.c.0.s8 %v379
        %v381 = vlaneseq
        %v382 = vshrl.u32 %v381, 7
        %v383 = vsub.s32 %v380, %v382
        %v384 = vrot.slane %v368, %v383
        %v386 = vunpack.c.l.s4 1966171168
        %v387 = vunpack.c.0.s8 %v386
        %v388 = vlaneseq
        %v389 = vshrl.u32 %v388, 7
        %v390 = vsub.s32 %v387, %v389
        %v391 = vrot.slane %v369, %v390
        %v393 = vunpack.c.l.s4 1966171168
        %v394 = vunpack.c.0.s8 %v393
        %v395 = vlaneseq
        %v396 = vshrl.u32 %v395, 7
        %v397 = vsub.s32 %v394, %v396
        %v398 = vrot.slane %v370, %v397
        %v399 = vcombine.high %v377, %v377
        %v400 = vcombine.high %v384, %v384
        %v401 = vcombine.high %v391, %v391
        %v402 = vcombine.high %v398, %v398
        %v403 = vcombine.low %v328, %v342
        %v404 = vcombine.low %v350, %v352
        %v405 = vcombine.low %v335, %v349
        %v406 = vcombine.low %v351, %v353
        %v408 = vunpack.c.l.s4 1966171168
        %v409 = vunpack.c.0.s8 %v408
        %v410 = vlaneseq
        %v411 = vshrl.u32 %v410, 7
        %v412 = vsub.s32 %v409, %v411
        %v413 = vrot.slane %v403, %v412
        %v415 = vunpack.c.l.s4 1966171168
        %v416 = vunpack.c.0.s8 %v415
        %v417 = vlaneseq
        %v418 = vshrl.u32 %v417, 7
        %v419 = vsub.s32 %v416, %v418
        %v420 = vrot.slane %v404, %v419
        %v422 = vunpack.c.l.s4 1966171168
        %v423 = vunpack.c.0.s8 %v422
        %v424 = vlaneseq
        %v425 = vshrl.u32 %v424, 7
        %v426 = vsub.s32 %v423, %v425
        %v427 = vrot.slane %v405, %v426
        %v429 = vunpack.c.l.s4 1966171168
        %v430 = vunpack.c.0.s8 %v429
        %v431 = vlaneseq
        %v432 = vshrl.u32 %v431, 7
        %v433 = vsub.s32 %v430, %v432
        %v434 = vrot.slane %v406, %v433
        %v435 = vcombine.low %v413, %v420
        %v436 = vcombine.low %v427, %v434
        %v438 = vunpack.c.l.s4 1966171168
        %v439 = vunpack.c.0.s8 %v438
        %v440 = vlaneseq
        %v441 = vshrl.u32 %v440, 7
        %v442 = vsub.s32 %v439, %v441
        %v443 = vrot.slane %v435, %v442
        %v445 = vunpack.c.l.s4 1966171168
        %v446 = vunpack.c.0.s8 %v445
        %v447 = vlaneseq
        %v448 = vshrl.u32 %v447, 7
        %v449 = vsub.s32 %v446, %v448
        %v450 = vrot.slane %v436, %v449
        %v451 = vcombine.low %v443, %v450
        %v452 = vcombine.low %v377, %v391
        %v453 = vcombine.low %v399, %v401
        %v454 = vcombine.low %v384, %v398
        %v455 = vcombine.low %v400, %v402
        %v457 = vunpack.c.l.s4 1966171168
        %v458 = vunpack.c.0.s8 %v457
        %v459 = vlaneseq
        %v460 = vshrl.u32 %v459, 7
        %v461 = vsub.s32 %v458, %v460
        %v462 = vrot.slane %v452, %v461
        %v464 = vunpack.c.l.s4 1966171168
        %v465 = vunpack.c.0.s8 %v464
        %v466 = vlaneseq
        %v467 = vshrl.u32 %v466, 7
        %v468 = vsub.s32 %v465, %v467
        %v469 = vrot.slane %v453, %v468
        %v471 = vunpack.c.l.s4 1966171168
        %v472 = vunpack.c.0.s8 %v471
        %v473 = vlaneseq
        %v474 = vshrl.u32 %v473, 7
        %v475 = vsub.s32 %v472, %v474
        %v476 = vrot.slane %v454, %v475
        %v478 = vunpack.c.l.s4 1966171168
        %v479 = vunpack.c.0.s8 %v478
        %v480 = vlaneseq
        %v481 = vshrl.u32 %v480, 7
        %v482 = vsub.s32 %v479, %v481
        %v483 = vrot.slane %v455, %v482
        %v484 = vcombine.low %v462, %v469
        %v485 = vcombine.low %v476, %v483
        %v487 = vunpack.c.l.s4 1966171168
        %v488 = vunpack.c.0.s8 %v487
        %v489 = vlaneseq
        %v490 = vshrl.u32 %v489, 7
        %v491 = vsub.s32 %v488, %v490
        %v492 = vrot.slane %v484, %v491
        %v494 = vunpack.c.l.s4 1966171168
        %v495 = vunpack.c.0.s8 %v494
        %v496 = vlaneseq
        %v497 = vshrl.u32 %v496, 7
        %v498 = vsub.s32 %v495, %v497
        %v499 = vrot.slane %v485, %v498
        %v500 = vcombine.low %v492, %v499
        %501 = vset.pattern.permute.xlu0 0
        %502 = vperm.xlu0 %501, %v451
        %v503 = vpop.permute.xlu0 %502
        %504 = vset.pattern.permute.xlu0 0
        %505 = vperm.xlu0 %504, %v500
        %v506 = vpop.permute.xlu0 %505
        %v507 = vlaneseq
        %v508 = vshrl.u32 %v507, 7
        %v509 = vsub.s32 %v263, %v508
        %v510 = vrot.slane %v503, %v509
        %v511 = vadd.s32 %v263, 4294967288
        %v512 = vlaneseq
        %v513 = vshrl.u32 %v512, 7
        %v514 = vsub.s32 %v511, %v513
        %v515 = vrot.slane %v506, %v514
        %vm516 = vcmask 130112
        %v517 = vsel %vm516, %v515, %v510
        %v519 = vunpack.c.l.s4 1966171168
        %v520 = vunpack.c.0.s8 %v519
        %v521 = vlaneseq
        %v522 = vshrl.u32 %v521, 7
        %v523 = vsub.s32 %v520, %v522
        %v524 = vrot.slane %v517, %v523
        %v526 = vunpack.c.l.s4 1966171168
        %v527 = vunpack.c.0.s8 %v526
        %v528 = vlaneseq
        %v529 = vshrl.u32 %v528, 7
        %v530 = vsub.s32 %v527, %v529
        %v531 = vrot.slane %v524, %v530
        %v533 = vsub.f32 %v260, %v531
        %v534 = vmul.f32 %v533, %v533
        %v535 = vsel %vm266, %v534, 0.0
        %536 = vadd.xlane.f32.xlu0 %v535
        %v537 = vpop.xlane.xlu0 %536
        %vm538 = vcmp.eq.s32.totalorder %v263, 1
        %v539 = vsel %vm538, %v537, %v271
        %540 = vset.pattern.permute.xlu0 0
        %541 = vperm.xlu0 %540, %v301
        %v542 = vpop.permute.xlu0 %541
        %543 = vset.pattern.permute.xlu0 0
        %544 = vperm.xlu0 %543, %v302
        %v545 = vpop.permute.xlu0 %544
        %v546 = vlaneseq
        %v547 = vshrl.u32 %v546, 7
        %v548 = vsub.s32 %v263, %v547
        %v549 = vrot.slane %v542, %v548
        %v550 = vlaneseq
        %v551 = vshrl.u32 %v550, 7
        %v552 = vsub.s32 %v511, %v551
        %v553 = vrot.slane %v545, %v552
        %v554 = vsel %vm516, %v553, %v549
        %vm555 = vcmask 1042434
        %v556 = vsel %vm555, %v554, %v554
        %vm557 = vcmask 1043459
        %v558 = vsel %vm557, %v554, %v556
        %vm559 = vcmask 1044484
        %v560 = vsel %vm559, %v554, %v558
        %vm561 = vcmask 1045509
        %v562 = vsel %vm561, %v554, %v560
        %vm563 = vcmask 1046534
        %v564 = vsel %vm563, %v554, %v562
        %vm565 = vcmask 1047559
        %v566 = vsel %vm565, %v554, %v564
        %v568 = vmul.f32 %v257, %v566
        %v569 = vmul.f32 %v258, %v566
        %v570 = vsel %vm280, %v568, 0.0
        %571 = vadd.xlane.f32.xlu0 %v570
        %v572 = vpop.xlane.xlu0 %571
        %v573 = vsel %vm280, %v569, 0.0
        %574 = vadd.xlane.f32.xlu0 %v573
        %v575 = vpop.xlane.xlu0 %574
        %v576 = vadd.f32 %v572, %v294
        %v577 = vadd.f32 %v575, %v298
        %v580 = vcombine.high %v576, %v576
        %v582 = vunpack.c.l.s4 1966171168
        %v583 = vunpack.c.0.s8 %v582
        %v584 = vlaneseq
        %v585 = vshrl.u32 %v584, 7
        %v586 = vsub.s32 %v583, %v585
        %v587 = vrot.slane %v576, %v586
        %v589 = vunpack.c.l.s4 1966171168
        %v590 = vunpack.c.0.s8 %v589
        %v591 = vlaneseq
        %v592 = vshrl.u32 %v591, 7
        %v593 = vsub.s32 %v590, %v592
        %v594 = vrot.slane %v580, %v593
        %v595 = vcombine.high %v587, %v587
        %v596 = vcombine.high %v594, %v594
        %v598 = vunpack.c.l.s4 1966171168
        %v599 = vunpack.c.0.s8 %v598
        %v600 = vlaneseq
        %v601 = vshrl.u32 %v600, 7
        %v602 = vsub.s32 %v599, %v601
        %v603 = vrot.slane %v587, %v602
        %v605 = vunpack.c.l.s4 1966171168
        %v606 = vunpack.c.0.s8 %v605
        %v607 = vlaneseq
        %v608 = vshrl.u32 %v607, 7
        %v609 = vsub.s32 %v606, %v608
        %v610 = vrot.slane %v594, %v609
        %v612 = vunpack.c.l.s4 1966171168
        %v613 = vunpack.c.0.s8 %v612
        %v614 = vlaneseq
        %v615 = vshrl.u32 %v614, 7
        %v616 = vsub.s32 %v613, %v615
        %v617 = vrot.slane %v595, %v616
        %v619 = vunpack.c.l.s4 1966171168
        %v620 = vunpack.c.0.s8 %v619
        %v621 = vlaneseq
        %v622 = vshrl.u32 %v621, 7
        %v623 = vsub.s32 %v620, %v622
        %v624 = vrot.slane %v596, %v623
        %v625 = vcombine.high %v603, %v603
        %v626 = vcombine.high %v610, %v610
        %v627 = vcombine.high %v617, %v617
        %v628 = vcombine.high %v624, %v624
        %v629 = vcombine.high %v577, %v577
        %v631 = vunpack.c.l.s4 1966171168
        %v632 = vunpack.c.0.s8 %v631
        %v633 = vlaneseq
        %v634 = vshrl.u32 %v633, 7
        %v635 = vsub.s32 %v632, %v634
        %v636 = vrot.slane %v577, %v635
        %v638 = vunpack.c.l.s4 1966171168
        %v639 = vunpack.c.0.s8 %v638
        %v640 = vlaneseq
        %v641 = vshrl.u32 %v640, 7
        %v642 = vsub.s32 %v639, %v641
        %v643 = vrot.slane %v629, %v642
        %v644 = vcombine.high %v636, %v636
        %v645 = vcombine.high %v643, %v643
        %v647 = vunpack.c.l.s4 1966171168
        %v648 = vunpack.c.0.s8 %v647
        %v649 = vlaneseq
        %v650 = vshrl.u32 %v649, 7
        %v651 = vsub.s32 %v648, %v650
        %v652 = vrot.slane %v636, %v651
        %v654 = vunpack.c.l.s4 1966171168
        %v655 = vunpack.c.0.s8 %v654
        %v656 = vlaneseq
        %v657 = vshrl.u32 %v656, 7
        %v658 = vsub.s32 %v655, %v657
        %v659 = vrot.slane %v643, %v658
        %v661 = vunpack.c.l.s4 1966171168
        %v662 = vunpack.c.0.s8 %v661
        %v663 = vlaneseq
        %v664 = vshrl.u32 %v663, 7
        %v665 = vsub.s32 %v662, %v664
        %v666 = vrot.slane %v644, %v665
        %v668 = vunpack.c.l.s4 1966171168
        %v669 = vunpack.c.0.s8 %v668
        %v670 = vlaneseq
        %v671 = vshrl.u32 %v670, 7
        %v672 = vsub.s32 %v669, %v671
        %v673 = vrot.slane %v645, %v672
        %v674 = vcombine.high %v652, %v652
        %v675 = vcombine.high %v659, %v659
        %v676 = vcombine.high %v666, %v666
        %v677 = vcombine.high %v673, %v673
        %v678 = vcombine.low %v603, %v617
        %v679 = vcombine.low %v625, %v627
        %v680 = vcombine.low %v610, %v624
        %v681 = vcombine.low %v626, %v628
        %v683 = vunpack.c.l.s4 1966171168
        %v684 = vunpack.c.0.s8 %v683
        %v685 = vlaneseq
        %v686 = vshrl.u32 %v685, 7
        %v687 = vsub.s32 %v684, %v686
        %v688 = vrot.slane %v678, %v687
        %v690 = vunpack.c.l.s4 1966171168
        %v691 = vunpack.c.0.s8 %v690
        %v692 = vlaneseq
        %v693 = vshrl.u32 %v692, 7
        %v694 = vsub.s32 %v691, %v693
        %v695 = vrot.slane %v679, %v694
        %v697 = vunpack.c.l.s4 1966171168
        %v698 = vunpack.c.0.s8 %v697
        %v699 = vlaneseq
        %v700 = vshrl.u32 %v699, 7
        %v701 = vsub.s32 %v698, %v700
        %v702 = vrot.slane %v680, %v701
        %v704 = vunpack.c.l.s4 1966171168
        %v705 = vunpack.c.0.s8 %v704
        %v706 = vlaneseq
        %v707 = vshrl.u32 %v706, 7
        %v708 = vsub.s32 %v705, %v707
        %v709 = vrot.slane %v681, %v708
        %v710 = vcombine.low %v688, %v695
        %v711 = vcombine.low %v702, %v709
        %v713 = vunpack.c.l.s4 1966171168
        %v714 = vunpack.c.0.s8 %v713
        %v715 = vlaneseq
        %v716 = vshrl.u32 %v715, 7
        %v717 = vsub.s32 %v714, %v716
        %v718 = vrot.slane %v710, %v717
        %v720 = vunpack.c.l.s4 1966171168
        %v721 = vunpack.c.0.s8 %v720
        %v722 = vlaneseq
        %v723 = vshrl.u32 %v722, 7
        %v724 = vsub.s32 %v721, %v723
        %v725 = vrot.slane %v711, %v724
        %v726 = vcombine.low %v718, %v725
        %v727 = vcombine.low %v652, %v666
        %v728 = vcombine.low %v674, %v676
        %v729 = vcombine.low %v659, %v673
        %v730 = vcombine.low %v675, %v677
        %v732 = vunpack.c.l.s4 1966171168
        %v733 = vunpack.c.0.s8 %v732
        %v734 = vlaneseq
        %v735 = vshrl.u32 %v734, 7
        %v736 = vsub.s32 %v733, %v735
        %v737 = vrot.slane %v727, %v736
        %v739 = vunpack.c.l.s4 1966171168
        %v740 = vunpack.c.0.s8 %v739
        %v741 = vlaneseq
        %v742 = vshrl.u32 %v741, 7
        %v743 = vsub.s32 %v740, %v742
        %v744 = vrot.slane %v728, %v743
        %v746 = vunpack.c.l.s4 1966171168
        %v747 = vunpack.c.0.s8 %v746
        %v748 = vlaneseq
        %v749 = vshrl.u32 %v748, 7
        %v750 = vsub.s32 %v747, %v749
        %v751 = vrot.slane %v729, %v750
        %v753 = vunpack.c.l.s4 1966171168
        %v754 = vunpack.c.0.s8 %v753
        %v755 = vlaneseq
        %v756 = vshrl.u32 %v755, 7
        %v757 = vsub.s32 %v754, %v756
        %v758 = vrot.slane %v730, %v757
        %v759 = vcombine.low %v737, %v744
        %v760 = vcombine.low %v751, %v758
        %v762 = vunpack.c.l.s4 1966171168
        %v763 = vunpack.c.0.s8 %v762
        %v764 = vlaneseq
        %v765 = vshrl.u32 %v764, 7
        %v766 = vsub.s32 %v763, %v765
        %v767 = vrot.slane %v759, %v766
        %v769 = vunpack.c.l.s4 1966171168
        %v770 = vunpack.c.0.s8 %v769
        %v771 = vlaneseq
        %v772 = vshrl.u32 %v771, 7
        %v773 = vsub.s32 %v770, %v772
        %v774 = vrot.slane %v760, %v773
        %v775 = vcombine.low %v767, %v774
        %776 = vset.pattern.permute.xlu0 0
        %777 = vperm.xlu0 %776, %v726
        %v778 = vpop.permute.xlu0 %777
        %779 = vset.pattern.permute.xlu0 0
        %780 = vperm.xlu0 %779, %v775
        %v781 = vpop.permute.xlu0 %780
        %v782 = vlaneseq
        %v783 = vshrl.u32 %v782, 7
        %v784 = vsub.s32 %v263, %v783
        %v785 = vrot.slane %v778, %v784
        %v786 = vlaneseq
        %v787 = vshrl.u32 %v786, 7
        %v788 = vsub.s32 %v511, %v787
        %v789 = vrot.slane %v781, %v788
        %v790 = vsel %vm516, %v789, %v785
        %v792 = vunpack.c.l.s4 1966171168
        %v793 = vunpack.c.0.s8 %v792
        %v794 = vlaneseq
        %v795 = vshrl.u32 %v794, 7
        %v796 = vsub.s32 %v793, %v795
        %v797 = vrot.slane %v790, %v796
        %v799 = vunpack.c.l.s4 1966171168
        %v800 = vunpack.c.0.s8 %v799
        %v801 = vlaneseq
        %v802 = vshrl.u32 %v801, 7
        %v803 = vsub.s32 %v800, %v802
        %v804 = vrot.slane %v797, %v803
        %v806 = vsub.f32 %v260, %v804
        %v807 = vmul.f32 %v806, %v806
        %v808 = vsel %vm266, %v807, 0.0
        %809 = vadd.xlane.f32.xlu0 %v808
        %v810 = vpop.xlane.xlu0 %809
        %vm811 = vcmp.eq.s32.totalorder %v263, 2
        %v812 = vsel %vm811, %v810, %v539
        %813 = vset.pattern.permute.xlu0 0
        %814 = vperm.xlu0 %813, %v576
        %v815 = vpop.permute.xlu0 %814
        %816 = vset.pattern.permute.xlu0 0
        %817 = vperm.xlu0 %816, %v577
        %v818 = vpop.permute.xlu0 %817
        %v819 = vlaneseq
        %v820 = vshrl.u32 %v819, 7
        %v821 = vsub.s32 %v263, %v820
        %v822 = vrot.slane %v815, %v821
        %v823 = vlaneseq
        %v824 = vshrl.u32 %v823, 7
        %v825 = vsub.s32 %v511, %v824
        %v826 = vrot.slane %v818, %v825
        %v827 = vsel %vm516, %v826, %v822
        %v828 = vsel %vm555, %v827, %v827
        %v829 = vsel %vm557, %v827, %v828
        %v830 = vsel %vm559, %v827, %v829
        %v831 = vsel %vm561, %v827, %v830
        %v832 = vsel %vm563, %v827, %v831
        %v833 = vsel %vm565, %v827, %v832
        %v835 = vmul.f32 %v257, %v833
        %v836 = vmul.f32 %v258, %v833
        %v837 = vsel %vm280, %v835, 0.0
        %838 = vadd.xlane.f32.xlu0 %v837
        %v839 = vpop.xlane.xlu0 %838
        %v840 = vsel %vm280, %v836, 0.0
        %841 = vadd.xlane.f32.xlu0 %v840
        %v842 = vpop.xlane.xlu0 %841
        %v843 = vadd.f32 %v839, %v294
        %v844 = vadd.f32 %v842, %v298
        %v847 = vcombine.high %v843, %v843
        %v849 = vunpack.c.l.s4 1966171168
        %v850 = vunpack.c.0.s8 %v849
        %v851 = vlaneseq
        %v852 = vshrl.u32 %v851, 7
        %v853 = vsub.s32 %v850, %v852
        %v854 = vrot.slane %v843, %v853
        %v856 = vunpack.c.l.s4 1966171168
        %v857 = vunpack.c.0.s8 %v856
        %v858 = vlaneseq
        %v859 = vshrl.u32 %v858, 7
        %v860 = vsub.s32 %v857, %v859
        %v861 = vrot.slane %v847, %v860
        %v862 = vcombine.high %v854, %v854
        %v863 = vcombine.high %v861, %v861
        %v865 = vunpack.c.l.s4 1966171168
        %v866 = vunpack.c.0.s8 %v865
        %v867 = vlaneseq
        %v868 = vshrl.u32 %v867, 7
        %v869 = vsub.s32 %v866, %v868
        %v870 = vrot.slane %v854, %v869
        %v872 = vunpack.c.l.s4 1966171168
        %v873 = vunpack.c.0.s8 %v872
        %v874 = vlaneseq
        %v875 = vshrl.u32 %v874, 7
        %v876 = vsub.s32 %v873, %v875
        %v877 = vrot.slane %v861, %v876
        %v879 = vunpack.c.l.s4 1966171168
        %v880 = vunpack.c.0.s8 %v879
        %v881 = vlaneseq
        %v882 = vshrl.u32 %v881, 7
        %v883 = vsub.s32 %v880, %v882
        %v884 = vrot.slane %v862, %v883
        %v886 = vunpack.c.l.s4 1966171168
        %v887 = vunpack.c.0.s8 %v886
        %v888 = vlaneseq
        %v889 = vshrl.u32 %v888, 7
        %v890 = vsub.s32 %v887, %v889
        %v891 = vrot.slane %v863, %v890
        %v892 = vcombine.high %v870, %v870
        %v893 = vcombine.high %v877, %v877
        %v894 = vcombine.high %v884, %v884
        %v895 = vcombine.high %v891, %v891
        %v896 = vcombine.high %v844, %v844
        %v898 = vunpack.c.l.s4 1966171168
        %v899 = vunpack.c.0.s8 %v898
        %v900 = vlaneseq
        %v901 = vshrl.u32 %v900, 7
        %v902 = vsub.s32 %v899, %v901
        %v903 = vrot.slane %v844, %v902
        %v905 = vunpack.c.l.s4 1966171168
        %v906 = vunpack.c.0.s8 %v905
        %v907 = vlaneseq
        %v908 = vshrl.u32 %v907, 7
        %v909 = vsub.s32 %v906, %v908
        %v910 = vrot.slane %v896, %v909
        %v911 = vcombine.high %v903, %v903
        %v912 = vcombine.high %v910, %v910
        %v914 = vunpack.c.l.s4 1966171168
        %v915 = vunpack.c.0.s8 %v914
        %v916 = vlaneseq
        %v917 = vshrl.u32 %v916, 7
        %v918 = vsub.s32 %v915, %v917
        %v919 = vrot.slane %v903, %v918
        %v921 = vunpack.c.l.s4 1966171168
        %v922 = vunpack.c.0.s8 %v921
        %v923 = vlaneseq
        %v924 = vshrl.u32 %v923, 7
        %v925 = vsub.s32 %v922, %v924
        %v926 = vrot.slane %v910, %v925
        %v928 = vunpack.c.l.s4 1966171168
        %v929 = vunpack.c.0.s8 %v928
        %v930 = vlaneseq
        %v931 = vshrl.u32 %v930, 7
        %v932 = vsub.s32 %v929, %v931
        %v933 = vrot.slane %v911, %v932
        %v935 = vunpack.c.l.s4 1966171168
        %v936 = vunpack.c.0.s8 %v935
        %v937 = vlaneseq
        %v938 = vshrl.u32 %v937, 7
        %v939 = vsub.s32 %v936, %v938
        %v940 = vrot.slane %v912, %v939
        %v941 = vcombine.high %v919, %v919
        %v942 = vcombine.high %v926, %v926
        %v943 = vcombine.high %v933, %v933
        %v944 = vcombine.high %v940, %v940
        %v945 = vcombine.low %v870, %v884
        %v946 = vcombine.low %v892, %v894
        %v947 = vcombine.low %v877, %v891
        %v948 = vcombine.low %v893, %v895
        %v950 = vunpack.c.l.s4 1966171168
        %v951 = vunpack.c.0.s8 %v950
        %v952 = vlaneseq
        %v953 = vshrl.u32 %v952, 7
        %v954 = vsub.s32 %v951, %v953
        %v955 = vrot.slane %v945, %v954
        %v957 = vunpack.c.l.s4 1966171168
        %v958 = vunpack.c.0.s8 %v957
        %v959 = vlaneseq
        %v960 = vshrl.u32 %v959, 7
        %v961 = vsub.s32 %v958, %v960
        %v962 = vrot.slane %v946, %v961
        %v964 = vunpack.c.l.s4 1966171168
        %v965 = vunpack.c.0.s8 %v964
        %v966 = vlaneseq
        %v967 = vshrl.u32 %v966, 7
        %v968 = vsub.s32 %v965, %v967
        %v969 = vrot.slane %v947, %v968
        %v971 = vunpack.c.l.s4 1966171168
        %v972 = vunpack.c.0.s8 %v971
        %v973 = vlaneseq
        %v974 = vshrl.u32 %v973, 7
        %v975 = vsub.s32 %v972, %v974
        %v976 = vrot.slane %v948, %v975
        %v977 = vcombine.low %v955, %v962
        %v978 = vcombine.low %v969, %v976
        %v980 = vunpack.c.l.s4 1966171168
        %v981 = vunpack.c.0.s8 %v980
        %v982 = vlaneseq
        %v983 = vshrl.u32 %v982, 7
        %v984 = vsub.s32 %v981, %v983
        %v985 = vrot.slane %v977, %v984
        %v987 = vunpack.c.l.s4 1966171168
        %v988 = vunpack.c.0.s8 %v987
        %v989 = vlaneseq
        %v990 = vshrl.u32 %v989, 7
        %v991 = vsub.s32 %v988, %v990
        %v992 = vrot.slane %v978, %v991
        %v993 = vcombine.low %v985, %v992
        %v994 = vcombine.low %v919, %v933
        %v995 = vcombine.low %v941, %v943
        %v996 = vcombine.low %v926, %v940
        %v997 = vcombine.low %v942, %v944
        %v999 = vunpack.c.l.s4 1966171168
        %v1000 = vunpack.c.0.s8 %v999
        %v1001 = vlaneseq
        %v1002 = vshrl.u32 %v1001, 7
        %v1003 = vsub.s32 %v1000, %v1002
        %v1004 = vrot.slane %v994, %v1003
        %v1006 = vunpack.c.l.s4 1966171168
        %v1007 = vunpack.c.0.s8 %v1006
        %v1008 = vlaneseq
        %v1009 = vshrl.u32 %v1008, 7
        %v1010 = vsub.s32 %v1007, %v1009
        %v1011 = vrot.slane %v995, %v1010
        %v1013 = vunpack.c.l.s4 1966171168
        %v1014 = vunpack.c.0.s8 %v1013
        %v1015 = vlaneseq
        %v1016 = vshrl.u32 %v1015, 7
        %v1017 = vsub.s32 %v1014, %v1016
        %v1018 = vrot.slane %v996, %v1017
        %v1020 = vunpack.c.l.s4 1966171168
        %v1021 = vunpack.c.0.s8 %v1020
        %v1022 = vlaneseq
        %v1023 = vshrl.u32 %v1022, 7
        %v1024 = vsub.s32 %v1021, %v1023
        %v1025 = vrot.slane %v997, %v1024
        %v1026 = vcombine.low %v1004, %v1011
        %v1027 = vcombine.low %v1018, %v1025
        %v1029 = vunpack.c.l.s4 1966171168
        %v1030 = vunpack.c.0.s8 %v1029
        %v1031 = vlaneseq
        %v1032 = vshrl.u32 %v1031, 7
        %v1033 = vsub.s32 %v1030, %v1032
        %v1034 = vrot.slane %v1026, %v1033
        %v1036 = vunpack.c.l.s4 1966171168
        %v1037 = vunpack.c.0.s8 %v1036
        %v1038 = vlaneseq
        %v1039 = vshrl.u32 %v1038, 7
        %v1040 = vsub.s32 %v1037, %v1039
        %v1041 = vrot.slane %v1027, %v1040
        %v1042 = vcombine.low %v1034, %v1041
        %1043 = vset.pattern.permute.xlu0 0
        %1044 = vperm.xlu0 %1043, %v993
        %v1045 = vpop.permute.xlu0 %1044
        %1046 = vset.pattern.permute.xlu0 0
        %1047 = vperm.xlu0 %1046, %v1042
        %v1048 = vpop.permute.xlu0 %1047
        %v1049 = vlaneseq
        %v1050 = vshrl.u32 %v1049, 7
        %v1051 = vsub.s32 %v263, %v1050
        %v1052 = vrot.slane %v1045, %v1051
        %v1053 = vlaneseq
        %v1054 = vshrl.u32 %v1053, 7
        %v1055 = vsub.s32 %v511, %v1054
        %v1056 = vrot.slane %v1048, %v1055
        %v1057 = vsel %vm516, %v1056, %v1052
        %v1059 = vunpack.c.l.s4 1966171168
        %v1060 = vunpack.c.0.s8 %v1059
        %v1061 = vlaneseq
        %v1062 = vshrl.u32 %v1061, 7
        %v1063 = vsub.s32 %v1060, %v1062
        %v1064 = vrot.slane %v1057, %v1063
        %v1066 = vunpack.c.l.s4 1966171168
        %v1067 = vunpack.c.0.s8 %v1066
        %v1068 = vlaneseq
        %v1069 = vshrl.u32 %v1068, 7
        %v1070 = vsub.s32 %v1067, %v1069
        %v1071 = vrot.slane %v1064, %v1070
        %v1073 = vsub.f32 %v260, %v1071
        %v1074 = vmul.f32 %v1073, %v1073
        %v1075 = vsel %vm266, %v1074, 0.0
        %1076 = vadd.xlane.f32.xlu0 %v1075
        %v1077 = vpop.xlane.xlu0 %1076
        %vm1078 = vcmp.eq.s32.totalorder %v263, 3
        %v1079 = vsel %vm1078, %v1077, %v812
        %1080 = vset.pattern.permute.xlu0 0
        %1081 = vperm.xlu0 %1080, %v843
        %v1082 = vpop.permute.xlu0 %1081
        %1083 = vset.pattern.permute.xlu0 0
        %1084 = vperm.xlu0 %1083, %v844
        %v1085 = vpop.permute.xlu0 %1084
        %v1086 = vlaneseq
        %v1087 = vshrl.u32 %v1086, 7
        %v1088 = vsub.s32 %v263, %v1087
        %v1089 = vrot.slane %v1082, %v1088
        %v1090 = vlaneseq
        %v1091 = vshrl.u32 %v1090, 7
        %v1092 = vsub.s32 %v511, %v1091
        %v1093 = vrot.slane %v1085, %v1092
        %v1094 = vsel %vm516, %v1093, %v1089
        %v1095 = vsel %vm555, %v1094, %v1094
        %v1096 = vsel %vm557, %v1094, %v1095
        %v1097 = vsel %vm559, %v1094, %v1096
        %v1098 = vsel %vm561, %v1094, %v1097
        %v1099 = vsel %vm563, %v1094, %v1098
        %v1100 = vsel %vm565, %v1094, %v1099
        %v1102 = vmul.f32 %v257, %v1100
        %v1103 = vmul.f32 %v258, %v1100
        %v1104 = vsel %vm280, %v1102, 0.0
        %1105 = vadd.xlane.f32.xlu0 %v1104
        %v1106 = vpop.xlane.xlu0 %1105
        %v1107 = vsel %vm280, %v1103, 0.0
        %1108 = vadd.xlane.f32.xlu0 %v1107
        %v1109 = vpop.xlane.xlu0 %1108
        %v1110 = vadd.f32 %v1106, %v294
        %v1111 = vadd.f32 %v1109, %v298
        %v1114 = vcombine.high %v1110, %v1110
        %v1116 = vunpack.c.l.s4 1966171168
        %v1117 = vunpack.c.0.s8 %v1116
        %v1118 = vlaneseq
        %v1119 = vshrl.u32 %v1118, 7
        %v1120 = vsub.s32 %v1117, %v1119
        %v1121 = vrot.slane %v1110, %v1120
        %v1123 = vunpack.c.l.s4 1966171168
        %v1124 = vunpack.c.0.s8 %v1123
        %v1125 = vlaneseq
        %v1126 = vshrl.u32 %v1125, 7
        %v1127 = vsub.s32 %v1124, %v1126
        %v1128 = vrot.slane %v1114, %v1127
        %v1129 = vcombine.high %v1121, %v1121
        %v1130 = vcombine.high %v1128, %v1128
        %v1132 = vunpack.c.l.s4 1966171168
        %v1133 = vunpack.c.0.s8 %v1132
        %v1134 = vlaneseq
        %v1135 = vshrl.u32 %v1134, 7
        %v1136 = vsub.s32 %v1133, %v1135
        %v1137 = vrot.slane %v1121, %v1136
        %v1139 = vunpack.c.l.s4 1966171168
        %v1140 = vunpack.c.0.s8 %v1139
        %v1141 = vlaneseq
        %v1142 = vshrl.u32 %v1141, 7
        %v1143 = vsub.s32 %v1140, %v1142
        %v1144 = vrot.slane %v1128, %v1143
        %v1146 = vunpack.c.l.s4 1966171168
        %v1147 = vunpack.c.0.s8 %v1146
        %v1148 = vlaneseq
        %v1149 = vshrl.u32 %v1148, 7
        %v1150 = vsub.s32 %v1147, %v1149
        %v1151 = vrot.slane %v1129, %v1150
        %v1153 = vunpack.c.l.s4 1966171168
        %v1154 = vunpack.c.0.s8 %v1153
        %v1155 = vlaneseq
        %v1156 = vshrl.u32 %v1155, 7
        %v1157 = vsub.s32 %v1154, %v1156
        %v1158 = vrot.slane %v1130, %v1157
        %v1159 = vcombine.high %v1137, %v1137
        %v1160 = vcombine.high %v1144, %v1144
        %v1161 = vcombine.high %v1151, %v1151
        %v1162 = vcombine.high %v1158, %v1158
        %v1163 = vcombine.high %v1111, %v1111
        %v1165 = vunpack.c.l.s4 1966171168
        %v1166 = vunpack.c.0.s8 %v1165
        %v1167 = vlaneseq
        %v1168 = vshrl.u32 %v1167, 7
        %v1169 = vsub.s32 %v1166, %v1168
        %v1170 = vrot.slane %v1111, %v1169
        %v1172 = vunpack.c.l.s4 1966171168
        %v1173 = vunpack.c.0.s8 %v1172
        %v1174 = vlaneseq
        %v1175 = vshrl.u32 %v1174, 7
        %v1176 = vsub.s32 %v1173, %v1175
        %v1177 = vrot.slane %v1163, %v1176
        %v1178 = vcombine.high %v1170, %v1170
        %v1179 = vcombine.high %v1177, %v1177
        %v1181 = vunpack.c.l.s4 1966171168
        %v1182 = vunpack.c.0.s8 %v1181
        %v1183 = vlaneseq
        %v1184 = vshrl.u32 %v1183, 7
        %v1185 = vsub.s32 %v1182, %v1184
        %v1186 = vrot.slane %v1170, %v1185
        %v1188 = vunpack.c.l.s4 1966171168
        %v1189 = vunpack.c.0.s8 %v1188
        %v1190 = vlaneseq
        %v1191 = vshrl.u32 %v1190, 7
        %v1192 = vsub.s32 %v1189, %v1191
        %v1193 = vrot.slane %v1177, %v1192
        %v1195 = vunpack.c.l.s4 1966171168
        %v1196 = vunpack.c.0.s8 %v1195
        %v1197 = vlaneseq
        %v1198 = vshrl.u32 %v1197, 7
        %v1199 = vsub.s32 %v1196, %v1198
        %v1200 = vrot.slane %v1178, %v1199
        %v1202 = vunpack.c.l.s4 1966171168
        %v1203 = vunpack.c.0.s8 %v1202
        %v1204 = vlaneseq
        %v1205 = vshrl.u32 %v1204, 7
        %v1206 = vsub.s32 %v1203, %v1205
        %v1207 = vrot.slane %v1179, %v1206
        %v1208 = vcombine.high %v1186, %v1186
        %v1209 = vcombine.high %v1193, %v1193
        %v1210 = vcombine.high %v1200, %v1200
        %v1211 = vcombine.high %v1207, %v1207
        %v1212 = vcombine.low %v1137, %v1151
        %v1213 = vcombine.low %v1159, %v1161
        %v1214 = vcombine.low %v1144, %v1158
        %v1215 = vcombine.low %v1160, %v1162
        %v1217 = vunpack.c.l.s4 1966171168
        %v1218 = vunpack.c.0.s8 %v1217
        %v1219 = vlaneseq
        %v1220 = vshrl.u32 %v1219, 7
        %v1221 = vsub.s32 %v1218, %v1220
        %v1222 = vrot.slane %v1212, %v1221
        %v1224 = vunpack.c.l.s4 1966171168
        %v1225 = vunpack.c.0.s8 %v1224
        %v1226 = vlaneseq
        %v1227 = vshrl.u32 %v1226, 7
        %v1228 = vsub.s32 %v1225, %v1227
        %v1229 = vrot.slane %v1213, %v1228
        %v1231 = vunpack.c.l.s4 1966171168
        %v1232 = vunpack.c.0.s8 %v1231
        %v1233 = vlaneseq
        %v1234 = vshrl.u32 %v1233, 7
        %v1235 = vsub.s32 %v1232, %v1234
        %v1236 = vrot.slane %v1214, %v1235
        %v1238 = vunpack.c.l.s4 1966171168
        %v1239 = vunpack.c.0.s8 %v1238
        %v1240 = vlaneseq
        %v1241 = vshrl.u32 %v1240, 7
        %v1242 = vsub.s32 %v1239, %v1241
        %v1243 = vrot.slane %v1215, %v1242
        %v1244 = vcombine.low %v1222, %v1229
        %v1245 = vcombine.low %v1236, %v1243
        %v1247 = vunpack.c.l.s4 1966171168
        %v1248 = vunpack.c.0.s8 %v1247
        %v1249 = vlaneseq
        %v1250 = vshrl.u32 %v1249, 7
        %v1251 = vsub.s32 %v1248, %v1250
        %v1252 = vrot.slane %v1244, %v1251
        %v1254 = vunpack.c.l.s4 1966171168
        %v1255 = vunpack.c.0.s8 %v1254
        %v1256 = vlaneseq
        %v1257 = vshrl.u32 %v1256, 7
        %v1258 = vsub.s32 %v1255, %v1257
        %v1259 = vrot.slane %v1245, %v1258
        %v1260 = vcombine.low %v1252, %v1259
        %v1261 = vcombine.low %v1186, %v1200
        %v1262 = vcombine.low %v1208, %v1210
        %v1263 = vcombine.low %v1193, %v1207
        %v1264 = vcombine.low %v1209, %v1211
        %v1266 = vunpack.c.l.s4 1966171168
        %v1267 = vunpack.c.0.s8 %v1266
        %v1268 = vlaneseq
        %v1269 = vshrl.u32 %v1268, 7
        %v1270 = vsub.s32 %v1267, %v1269
        %v1271 = vrot.slane %v1261, %v1270
        %v1273 = vunpack.c.l.s4 1966171168
        %v1274 = vunpack.c.0.s8 %v1273
        %v1275 = vlaneseq
        %v1276 = vshrl.u32 %v1275, 7
        %v1277 = vsub.s32 %v1274, %v1276
        %v1278 = vrot.slane %v1262, %v1277
        %v1280 = vunpack.c.l.s4 1966171168
        %v1281 = vunpack.c.0.s8 %v1280
        %v1282 = vlaneseq
        %v1283 = vshrl.u32 %v1282, 7
        %v1284 = vsub.s32 %v1281, %v1283
        %v1285 = vrot.slane %v1263, %v1284
        %v1287 = vunpack.c.l.s4 1966171168
        %v1288 = vunpack.c.0.s8 %v1287
        %v1289 = vlaneseq
        %v1290 = vshrl.u32 %v1289, 7
        %v1291 = vsub.s32 %v1288, %v1290
        %v1292 = vrot.slane %v1264, %v1291
        %v1293 = vcombine.low %v1271, %v1278
        %v1294 = vcombine.low %v1285, %v1292
        %v1296 = vunpack.c.l.s4 1966171168
        %v1297 = vunpack.c.0.s8 %v1296
        %v1298 = vlaneseq
        %v1299 = vshrl.u32 %v1298, 7
        %v1300 = vsub.s32 %v1297, %v1299
        %v1301 = vrot.slane %v1293, %v1300
        %v1303 = vunpack.c.l.s4 1966171168
        %v1304 = vunpack.c.0.s8 %v1303
        %v1305 = vlaneseq
        %v1306 = vshrl.u32 %v1305, 7
        %v1307 = vsub.s32 %v1304, %v1306
        %v1308 = vrot.slane %v1294, %v1307
        %v1309 = vcombine.low %v1301, %v1308
        %1310 = vset.pattern.permute.xlu0 0
        %1311 = vperm.xlu0 %1310, %v1260
        %v1312 = vpop.permute.xlu0 %1311
        %1313 = vset.pattern.permute.xlu0 0
        %1314 = vperm.xlu0 %1313, %v1309
        %v1315 = vpop.permute.xlu0 %1314
        %v1316 = vlaneseq
        %v1317 = vshrl.u32 %v1316, 7
        %v1318 = vsub.s32 %v263, %v1317
        %v1319 = vrot.slane %v1312, %v1318
        %v1320 = vlaneseq
        %v1321 = vshrl.u32 %v1320, 7
        %v1322 = vsub.s32 %v511, %v1321
        %v1323 = vrot.slane %v1315, %v1322
        %v1324 = vsel %vm516, %v1323, %v1319
        %v1326 = vunpack.c.l.s4 1966171168
        %v1327 = vunpack.c.0.s8 %v1326
        %v1328 = vlaneseq
        %v1329 = vshrl.u32 %v1328, 7
        %v1330 = vsub.s32 %v1327, %v1329
        %v1331 = vrot.slane %v1324, %v1330
        %v1333 = vunpack.c.l.s4 1966171168
        %v1334 = vunpack.c.0.s8 %v1333
        %v1335 = vlaneseq
        %v1336 = vshrl.u32 %v1335, 7
        %v1337 = vsub.s32 %v1334, %v1336
        %v1338 = vrot.slane %v1331, %v1337
        %v1340 = vsub.f32 %v260, %v1338
        %v1341 = vmul.f32 %v1340, %v1340
        %v1342 = vsel %vm266, %v1341, 0.0
        %1343 = vadd.xlane.f32.xlu0 %v1342
        %v1344 = vpop.xlane.xlu0 %1343
        %vm1345 = vcmp.eq.s32.totalorder %v263, 4
        %v1346 = vsel %vm1345, %v1344, %v1079
        %1347 = vset.pattern.permute.xlu0 0
        %1348 = vperm.xlu0 %1347, %v1110
        %v1349 = vpop.permute.xlu0 %1348
        %1350 = vset.pattern.permute.xlu0 0
        %1351 = vperm.xlu0 %1350, %v1111
        %v1352 = vpop.permute.xlu0 %1351
        %v1353 = vlaneseq
        %v1354 = vshrl.u32 %v1353, 7
        %v1355 = vsub.s32 %v263, %v1354
        %v1356 = vrot.slane %v1349, %v1355
        %v1357 = vlaneseq
        %v1358 = vshrl.u32 %v1357, 7
        %v1359 = vsub.s32 %v511, %v1358
        %v1360 = vrot.slane %v1352, %v1359
        %v1361 = vsel %vm516, %v1360, %v1356
        %v1362 = vsel %vm555, %v1361, %v1361
        %v1363 = vsel %vm557, %v1361, %v1362
        %v1364 = vsel %vm559, %v1361, %v1363
        %v1365 = vsel %vm561, %v1361, %v1364
        %v1366 = vsel %vm563, %v1361, %v1365
        %v1367 = vsel %vm565, %v1361, %v1366
        %v1369 = vmul.f32 %v257, %v1367
        %v1370 = vmul.f32 %v258, %v1367
        %v1371 = vsel %vm280, %v1369, 0.0
        %1372 = vadd.xlane.f32.xlu0 %v1371
        %v1373 = vpop.xlane.xlu0 %1372
        %v1374 = vsel %vm280, %v1370, 0.0
        %1375 = vadd.xlane.f32.xlu0 %v1374
        %v1376 = vpop.xlane.xlu0 %1375
        %v1377 = vadd.f32 %v1373, %v294
        %v1378 = vadd.f32 %v1376, %v298
        %v1381 = vcombine.high %v1377, %v1377
        %v1383 = vunpack.c.l.s4 1966171168
        %v1384 = vunpack.c.0.s8 %v1383
        %v1385 = vlaneseq
        %v1386 = vshrl.u32 %v1385, 7
        %v1387 = vsub.s32 %v1384, %v1386
        %v1388 = vrot.slane %v1377, %v1387
        %v1390 = vunpack.c.l.s4 1966171168
        %v1391 = vunpack.c.0.s8 %v1390
        %v1392 = vlaneseq
        %v1393 = vshrl.u32 %v1392, 7
        %v1394 = vsub.s32 %v1391, %v1393
        %v1395 = vrot.slane %v1381, %v1394
        %v1396 = vcombine.high %v1388, %v1388
        %v1397 = vcombine.high %v1395, %v1395
        %v1399 = vunpack.c.l.s4 1966171168
        %v1400 = vunpack.c.0.s8 %v1399
        %v1401 = vlaneseq
        %v1402 = vshrl.u32 %v1401, 7
        %v1403 = vsub.s32 %v1400, %v1402
        %v1404 = vrot.slane %v1388, %v1403
        %v1406 = vunpack.c.l.s4 1966171168
        %v1407 = vunpack.c.0.s8 %v1406
        %v1408 = vlaneseq
        %v1409 = vshrl.u32 %v1408, 7
        %v1410 = vsub.s32 %v1407, %v1409
        %v1411 = vrot.slane %v1395, %v1410
        %v1413 = vunpack.c.l.s4 1966171168
        %v1414 = vunpack.c.0.s8 %v1413
        %v1415 = vlaneseq
        %v1416 = vshrl.u32 %v1415, 7
        %v1417 = vsub.s32 %v1414, %v1416
        %v1418 = vrot.slane %v1396, %v1417
        %v1420 = vunpack.c.l.s4 1966171168
        %v1421 = vunpack.c.0.s8 %v1420
        %v1422 = vlaneseq
        %v1423 = vshrl.u32 %v1422, 7
        %v1424 = vsub.s32 %v1421, %v1423
        %v1425 = vrot.slane %v1397, %v1424
        %v1426 = vcombine.high %v1404, %v1404
        %v1427 = vcombine.high %v1411, %v1411
        %v1428 = vcombine.high %v1418, %v1418
        %v1429 = vcombine.high %v1425, %v1425
        %v1430 = vcombine.high %v1378, %v1378
        %v1432 = vunpack.c.l.s4 1966171168
        %v1433 = vunpack.c.0.s8 %v1432
        %v1434 = vlaneseq
        %v1435 = vshrl.u32 %v1434, 7
        %v1436 = vsub.s32 %v1433, %v1435
        %v1437 = vrot.slane %v1378, %v1436
        %v1439 = vunpack.c.l.s4 1966171168
        %v1440 = vunpack.c.0.s8 %v1439
        %v1441 = vlaneseq
        %v1442 = vshrl.u32 %v1441, 7
        %v1443 = vsub.s32 %v1440, %v1442
        %v1444 = vrot.slane %v1430, %v1443
        %v1445 = vcombine.high %v1437, %v1437
        %v1446 = vcombine.high %v1444, %v1444
        %v1448 = vunpack.c.l.s4 1966171168
        %v1449 = vunpack.c.0.s8 %v1448
        %v1450 = vlaneseq
        %v1451 = vshrl.u32 %v1450, 7
        %v1452 = vsub.s32 %v1449, %v1451
        %v1453 = vrot.slane %v1437, %v1452
        %v1455 = vunpack.c.l.s4 1966171168
        %v1456 = vunpack.c.0.s8 %v1455
        %v1457 = vlaneseq
        %v1458 = vshrl.u32 %v1457, 7
        %v1459 = vsub.s32 %v1456, %v1458
        %v1460 = vrot.slane %v1444, %v1459
        %v1462 = vunpack.c.l.s4 1966171168
        %v1463 = vunpack.c.0.s8 %v1462
        %v1464 = vlaneseq
        %v1465 = vshrl.u32 %v1464, 7
        %v1466 = vsub.s32 %v1463, %v1465
        %v1467 = vrot.slane %v1445, %v1466
        %v1469 = vunpack.c.l.s4 1966171168
        %v1470 = vunpack.c.0.s8 %v1469
        %v1471 = vlaneseq
        %v1472 = vshrl.u32 %v1471, 7
        %v1473 = vsub.s32 %v1470, %v1472
        %v1474 = vrot.slane %v1446, %v1473
        %v1475 = vcombine.high %v1453, %v1453
        %v1476 = vcombine.high %v1460, %v1460
        %v1477 = vcombine.high %v1467, %v1467
        %v1478 = vcombine.high %v1474, %v1474
        %v1479 = vcombine.low %v1404, %v1418
        %v1480 = vcombine.low %v1426, %v1428
        %v1481 = vcombine.low %v1411, %v1425
        %v1482 = vcombine.low %v1427, %v1429
        %v1484 = vunpack.c.l.s4 1966171168
        %v1485 = vunpack.c.0.s8 %v1484
        %v1486 = vlaneseq
        %v1487 = vshrl.u32 %v1486, 7
        %v1488 = vsub.s32 %v1485, %v1487
        %v1489 = vrot.slane %v1479, %v1488
        %v1491 = vunpack.c.l.s4 1966171168
        %v1492 = vunpack.c.0.s8 %v1491
        %v1493 = vlaneseq
        %v1494 = vshrl.u32 %v1493, 7
        %v1495 = vsub.s32 %v1492, %v1494
        %v1496 = vrot.slane %v1480, %v1495
        %v1498 = vunpack.c.l.s4 1966171168
        %v1499 = vunpack.c.0.s8 %v1498
        %v1500 = vlaneseq
        %v1501 = vshrl.u32 %v1500, 7
        %v1502 = vsub.s32 %v1499, %v1501
        %v1503 = vrot.slane %v1481, %v1502
        %v1505 = vunpack.c.l.s4 1966171168
        %v1506 = vunpack.c.0.s8 %v1505
        %v1507 = vlaneseq
        %v1508 = vshrl.u32 %v1507, 7
        %v1509 = vsub.s32 %v1506, %v1508
        %v1510 = vrot.slane %v1482, %v1509
        %v1511 = vcombine.low %v1489, %v1496
        %v1512 = vcombine.low %v1503, %v1510
        %v1514 = vunpack.c.l.s4 1966171168
        %v1515 = vunpack.c.0.s8 %v1514
        %v1516 = vlaneseq
        %v1517 = vshrl.u32 %v1516, 7
        %v1518 = vsub.s32 %v1515, %v1517
        %v1519 = vrot.slane %v1511, %v1518
        %v1521 = vunpack.c.l.s4 1966171168
        %v1522 = vunpack.c.0.s8 %v1521
        %v1523 = vlaneseq
        %v1524 = vshrl.u32 %v1523, 7
        %v1525 = vsub.s32 %v1522, %v1524
        %v1526 = vrot.slane %v1512, %v1525
        %v1527 = vcombine.low %v1519, %v1526
        %v1528 = vcombine.low %v1453, %v1467
        %v1529 = vcombine.low %v1475, %v1477
        %v1530 = vcombine.low %v1460, %v1474
        %v1531 = vcombine.low %v1476, %v1478
        %v1533 = vunpack.c.l.s4 1966171168
        %v1534 = vunpack.c.0.s8 %v1533
        %v1535 = vlaneseq
        %v1536 = vshrl.u32 %v1535, 7
        %v1537 = vsub.s32 %v1534, %v1536
        %v1538 = vrot.slane %v1528, %v1537
        %v1540 = vunpack.c.l.s4 1966171168
        %v1541 = vunpack.c.0.s8 %v1540
        %v1542 = vlaneseq
        %v1543 = vshrl.u32 %v1542, 7
        %v1544 = vsub.s32 %v1541, %v1543
        %v1545 = vrot.slane %v1529, %v1544
        %v1547 = vunpack.c.l.s4 1966171168
        %v1548 = vunpack.c.0.s8 %v1547
        %v1549 = vlaneseq
        %v1550 = vshrl.u32 %v1549, 7
        %v1551 = vsub.s32 %v1548, %v1550
        %v1552 = vrot.slane %v1530, %v1551
        %v1554 = vunpack.c.l.s4 1966171168
        %v1555 = vunpack.c.0.s8 %v1554
        %v1556 = vlaneseq
        %v1557 = vshrl.u32 %v1556, 7
        %v1558 = vsub.s32 %v1555, %v1557
        %v1559 = vrot.slane %v1531, %v1558
        %v1560 = vcombine.low %v1538, %v1545
        %v1561 = vcombine.low %v1552, %v1559
        %v1563 = vunpack.c.l.s4 1966171168
        %v1564 = vunpack.c.0.s8 %v1563
        %v1565 = vlaneseq
        %v1566 = vshrl.u32 %v1565, 7
        %v1567 = vsub.s32 %v1564, %v1566
        %v1568 = vrot.slane %v1560, %v1567
        %v1570 = vunpack.c.l.s4 1966171168
        %v1571 = vunpack.c.0.s8 %v1570
        %v1572 = vlaneseq
        %v1573 = vshrl.u32 %v1572, 7
        %v1574 = vsub.s32 %v1571, %v1573
        %v1575 = vrot.slane %v1561, %v1574
        %v1576 = vcombine.low %v1568, %v1575
        %1577 = vset.pattern.permute.xlu0 0
        %1578 = vperm.xlu0 %1577, %v1527
        %v1579 = vpop.permute.xlu0 %1578
        %1580 = vset.pattern.permute.xlu0 0
        %1581 = vperm.xlu0 %1580, %v1576
        %v1582 = vpop.permute.xlu0 %1581
        %v1583 = vlaneseq
        %v1584 = vshrl.u32 %v1583, 7
        %v1585 = vsub.s32 %v263, %v1584
        %v1586 = vrot.slane %v1579, %v1585
        %v1587 = vlaneseq
        %v1588 = vshrl.u32 %v1587, 7
        %v1589 = vsub.s32 %v511, %v1588
        %v1590 = vrot.slane %v1582, %v1589
        %v1591 = vsel %vm516, %v1590, %v1586
        %v1593 = vunpack.c.l.s4 1966171168
        %v1594 = vunpack.c.0.s8 %v1593
        %v1595 = vlaneseq
        %v1596 = vshrl.u32 %v1595, 7
        %v1597 = vsub.s32 %v1594, %v1596
        %v1598 = vrot.slane %v1591, %v1597
        %v1600 = vunpack.c.l.s4 1966171168
        %v1601 = vunpack.c.0.s8 %v1600
        %v1602 = vlaneseq
        %v1603 = vshrl.u32 %v1602, 7
        %v1604 = vsub.s32 %v1601, %v1603
        %v1605 = vrot.slane %v1598, %v1604
        %v1607 = vsub.f32 %v260, %v1605
        %v1608 = vmul.f32 %v1607, %v1607
        %v1609 = vsel %vm266, %v1608, 0.0
        %1610 = vadd.xlane.f32.xlu0 %v1609
        %v1611 = vpop.xlane.xlu0 %1610
        %vm1612 = vcmp.eq.s32.totalorder %v263, 5
        %v1613 = vsel %vm1612, %v1611, %v1346
        %1614 = vset.pattern.permute.xlu0 0
        %1615 = vperm.xlu0 %1614, %v1377
        %v1616 = vpop.permute.xlu0 %1615
        %1617 = vset.pattern.permute.xlu0 0
        %1618 = vperm.xlu0 %1617, %v1378
        %v1619 = vpop.permute.xlu0 %1618
        %v1620 = vlaneseq
        %v1621 = vshrl.u32 %v1620, 7
        %v1622 = vsub.s32 %v263, %v1621
        %v1623 = vrot.slane %v1616, %v1622
        %v1624 = vlaneseq
        %v1625 = vshrl.u32 %v1624, 7
        %v1626 = vsub.s32 %v511, %v1625
        %v1627 = vrot.slane %v1619, %v1626
        %v1628 = vsel %vm516, %v1627, %v1623
        %v1629 = vsel %vm555, %v1628, %v1628
        %v1630 = vsel %vm557, %v1628, %v1629
        %v1631 = vsel %vm559, %v1628, %v1630
        %v1632 = vsel %vm561, %v1628, %v1631
        %v1633 = vsel %vm563, %v1628, %v1632
        %v1634 = vsel %vm565, %v1628, %v1633
        %v1636 = vmul.f32 %v257, %v1634
        %v1637 = vmul.f32 %v258, %v1634
        %v1638 = vsel %vm280, %v1636, 0.0
        %1639 = vadd.xlane.f32.xlu0 %v1638
        %v1640 = vpop.xlane.xlu0 %1639
        %v1641 = vsel %vm280, %v1637, 0.0
        %1642 = vadd.xlane.f32.xlu0 %v1641
        %v1643 = vpop.xlane.xlu0 %1642
        %v1644 = vadd.f32 %v1640, %v294
        %v1645 = vadd.f32 %v1643, %v298
        %v1648 = vcombine.high %v1644, %v1644
        %v1650 = vunpack.c.l.s4 1966171168
        %v1651 = vunpack.c.0.s8 %v1650
        %v1652 = vlaneseq
        %v1653 = vshrl.u32 %v1652, 7
        %v1654 = vsub.s32 %v1651, %v1653
        %v1655 = vrot.slane %v1644, %v1654
        %v1657 = vunpack.c.l.s4 1966171168
        %v1658 = vunpack.c.0.s8 %v1657
        %v1659 = vlaneseq
        %v1660 = vshrl.u32 %v1659, 7
        %v1661 = vsub.s32 %v1658, %v1660
        %v1662 = vrot.slane %v1648, %v1661
        %v1663 = vcombine.high %v1655, %v1655
        %v1664 = vcombine.high %v1662, %v1662
        %v1666 = vunpack.c.l.s4 1966171168
        %v1667 = vunpack.c.0.s8 %v1666
        %v1668 = vlaneseq
        %v1669 = vshrl.u32 %v1668, 7
        %v1670 = vsub.s32 %v1667, %v1669
        %v1671 = vrot.slane %v1655, %v1670
        %v1673 = vunpack.c.l.s4 1966171168
        %v1674 = vunpack.c.0.s8 %v1673
        %v1675 = vlaneseq
        %v1676 = vshrl.u32 %v1675, 7
        %v1677 = vsub.s32 %v1674, %v1676
        %v1678 = vrot.slane %v1662, %v1677
        %v1680 = vunpack.c.l.s4 1966171168
        %v1681 = vunpack.c.0.s8 %v1680
        %v1682 = vlaneseq
        %v1683 = vshrl.u32 %v1682, 7
        %v1684 = vsub.s32 %v1681, %v1683
        %v1685 = vrot.slane %v1663, %v1684
        %v1687 = vunpack.c.l.s4 1966171168
        %v1688 = vunpack.c.0.s8 %v1687
        %v1689 = vlaneseq
        %v1690 = vshrl.u32 %v1689, 7
        %v1691 = vsub.s32 %v1688, %v1690
        %v1692 = vrot.slane %v1664, %v1691
        %v1693 = vcombine.high %v1671, %v1671
        %v1694 = vcombine.high %v1678, %v1678
        %v1695 = vcombine.high %v1685, %v1685
        %v1696 = vcombine.high %v1692, %v1692
        %v1697 = vcombine.high %v1645, %v1645
        %v1699 = vunpack.c.l.s4 1966171168
        %v1700 = vunpack.c.0.s8 %v1699
        %v1701 = vlaneseq
        %v1702 = vshrl.u32 %v1701, 7
        %v1703 = vsub.s32 %v1700, %v1702
        %v1704 = vrot.slane %v1645, %v1703
        %v1706 = vunpack.c.l.s4 1966171168
        %v1707 = vunpack.c.0.s8 %v1706
        %v1708 = vlaneseq
        %v1709 = vshrl.u32 %v1708, 7
        %v1710 = vsub.s32 %v1707, %v1709
        %v1711 = vrot.slane %v1697, %v1710
        %v1712 = vcombine.high %v1704, %v1704
        %v1713 = vcombine.high %v1711, %v1711
        %v1715 = vunpack.c.l.s4 1966171168
        %v1716 = vunpack.c.0.s8 %v1715
        %v1717 = vlaneseq
        %v1718 = vshrl.u32 %v1717, 7
        %v1719 = vsub.s32 %v1716, %v1718
        %v1720 = vrot.slane %v1704, %v1719
        %v1722 = vunpack.c.l.s4 1966171168
        %v1723 = vunpack.c.0.s8 %v1722
        %v1724 = vlaneseq
        %v1725 = vshrl.u32 %v1724, 7
        %v1726 = vsub.s32 %v1723, %v1725
        %v1727 = vrot.slane %v1711, %v1726
        %v1729 = vunpack.c.l.s4 1966171168
        %v1730 = vunpack.c.0.s8 %v1729
        %v1731 = vlaneseq
        %v1732 = vshrl.u32 %v1731, 7
        %v1733 = vsub.s32 %v1730, %v1732
        %v1734 = vrot.slane %v1712, %v1733
        %v1736 = vunpack.c.l.s4 1966171168
        %v1737 = vunpack.c.0.s8 %v1736
        %v1738 = vlaneseq
        %v1739 = vshrl.u32 %v1738, 7
        %v1740 = vsub.s32 %v1737, %v1739
        %v1741 = vrot.slane %v1713, %v1740
        %v1742 = vcombine.high %v1720, %v1720
        %v1743 = vcombine.high %v1727, %v1727
        %v1744 = vcombine.high %v1734, %v1734
        %v1745 = vcombine.high %v1741, %v1741
        %v1746 = vcombine.low %v1671, %v1685
        %v1747 = vcombine.low %v1693, %v1695
        %v1748 = vcombine.low %v1678, %v1692
        %v1749 = vcombine.low %v1694, %v1696
        %v1751 = vunpack.c.l.s4 1966171168
        %v1752 = vunpack.c.0.s8 %v1751
        %v1753 = vlaneseq
        %v1754 = vshrl.u32 %v1753, 7
        %v1755 = vsub.s32 %v1752, %v1754
        %v1756 = vrot.slane %v1746, %v1755
        %v1758 = vunpack.c.l.s4 1966171168
        %v1759 = vunpack.c.0.s8 %v1758
        %v1760 = vlaneseq
        %v1761 = vshrl.u32 %v1760, 7
        %v1762 = vsub.s32 %v1759, %v1761
        %v1763 = vrot.slane %v1747, %v1762
        %v1765 = vunpack.c.l.s4 1966171168
        %v1766 = vunpack.c.0.s8 %v1765
        %v1767 = vlaneseq
        %v1768 = vshrl.u32 %v1767, 7
        %v1769 = vsub.s32 %v1766, %v1768
        %v1770 = vrot.slane %v1748, %v1769
        %v1772 = vunpack.c.l.s4 1966171168
        %v1773 = vunpack.c.0.s8 %v1772
        %v1774 = vlaneseq
        %v1775 = vshrl.u32 %v1774, 7
        %v1776 = vsub.s32 %v1773, %v1775
        %v1777 = vrot.slane %v1749, %v1776
        %v1778 = vcombine.low %v1756, %v1763
        %v1779 = vcombine.low %v1770, %v1777
        %v1781 = vunpack.c.l.s4 1966171168
        %v1782 = vunpack.c.0.s8 %v1781
        %v1783 = vlaneseq
        %v1784 = vshrl.u32 %v1783, 7
        %v1785 = vsub.s32 %v1782, %v1784
        %v1786 = vrot.slane %v1778, %v1785
        %v1788 = vunpack.c.l.s4 1966171168
        %v1789 = vunpack.c.0.s8 %v1788
        %v1790 = vlaneseq
        %v1791 = vshrl.u32 %v1790, 7
        %v1792 = vsub.s32 %v1789, %v1791
        %v1793 = vrot.slane %v1779, %v1792
        %v1794 = vcombine.low %v1786, %v1793
        %v1795 = vcombine.low %v1720, %v1734
        %v1796 = vcombine.low %v1742, %v1744
        %v1797 = vcombine.low %v1727, %v1741
        %v1798 = vcombine.low %v1743, %v1745
        %v1800 = vunpack.c.l.s4 1966171168
        %v1801 = vunpack.c.0.s8 %v1800
        %v1802 = vlaneseq
        %v1803 = vshrl.u32 %v1802, 7
        %v1804 = vsub.s32 %v1801, %v1803
        %v1805 = vrot.slane %v1795, %v1804
        %v1807 = vunpack.c.l.s4 1966171168
        %v1808 = vunpack.c.0.s8 %v1807
        %v1809 = vlaneseq
        %v1810 = vshrl.u32 %v1809, 7
        %v1811 = vsub.s32 %v1808, %v1810
        %v1812 = vrot.slane %v1796, %v1811
        %v1814 = vunpack.c.l.s4 1966171168
        %v1815 = vunpack.c.0.s8 %v1814
        %v1816 = vlaneseq
        %v1817 = vshrl.u32 %v1816, 7
        %v1818 = vsub.s32 %v1815, %v1817
        %v1819 = vrot.slane %v1797, %v1818
        %v1821 = vunpack.c.l.s4 1966171168
        %v1822 = vunpack.c.0.s8 %v1821
        %v1823 = vlaneseq
        %v1824 = vshrl.u32 %v1823, 7
        %v1825 = vsub.s32 %v1822, %v1824
        %v1826 = vrot.slane %v1798, %v1825
        %v1827 = vcombine.low %v1805, %v1812
        %v1828 = vcombine.low %v1819, %v1826
        %v1830 = vunpack.c.l.s4 1966171168
        %v1831 = vunpack.c.0.s8 %v1830
        %v1832 = vlaneseq
        %v1833 = vshrl.u32 %v1832, 7
        %v1834 = vsub.s32 %v1831, %v1833
        %v1835 = vrot.slane %v1827, %v1834
        %v1837 = vunpack.c.l.s4 1966171168
        %v1838 = vunpack.c.0.s8 %v1837
        %v1839 = vlaneseq
        %v1840 = vshrl.u32 %v1839, 7
        %v1841 = vsub.s32 %v1838, %v1840
        %v1842 = vrot.slane %v1828, %v1841
        %v1843 = vcombine.low %v1835, %v1842
        %1844 = vset.pattern.permute.xlu0 0
        %1845 = vperm.xlu0 %1844, %v1794
        %v1846 = vpop.permute.xlu0 %1845
        %1847 = vset.pattern.permute.xlu0 0
        %1848 = vperm.xlu0 %1847, %v1843
        %v1849 = vpop.permute.xlu0 %1848
        %v1850 = vlaneseq
        %v1851 = vshrl.u32 %v1850, 7
        %v1852 = vsub.s32 %v263, %v1851
        %v1853 = vrot.slane %v1846, %v1852
        %v1854 = vlaneseq
        %v1855 = vshrl.u32 %v1854, 7
        %v1856 = vsub.s32 %v511, %v1855
        %v1857 = vrot.slane %v1849, %v1856
        %v1858 = vsel %vm516, %v1857, %v1853
        %v1860 = vunpack.c.l.s4 1966171168
        %v1861 = vunpack.c.0.s8 %v1860
        %v1862 = vlaneseq
        %v1863 = vshrl.u32 %v1862, 7
        %v1864 = vsub.s32 %v1861, %v1863
        %v1865 = vrot.slane %v1858, %v1864
        %v1867 = vunpack.c.l.s4 1966171168
        %v1868 = vunpack.c.0.s8 %v1867
        %v1869 = vlaneseq
        %v1870 = vshrl.u32 %v1869, 7
        %v1871 = vsub.s32 %v1868, %v1870
        %v1872 = vrot.slane %v1865, %v1871
        %v1874 = vsub.f32 %v260, %v1872
        %v1875 = vmul.f32 %v1874, %v1874
        %v1876 = vsel %vm266, %v1875, 0.0
        %1877 = vadd.xlane.f32.xlu0 %v1876
        %v1878 = vpop.xlane.xlu0 %1877
        %vm1879 = vcmp.eq.s32.totalorder %v263, 6
        %v1880 = vsel %vm1879, %v1878, %v1613
        %1881 = vset.pattern.permute.xlu0 0
        %1882 = vperm.xlu0 %1881, %v1644
        %v1883 = vpop.permute.xlu0 %1882
        %1884 = vset.pattern.permute.xlu0 0
        %1885 = vperm.xlu0 %1884, %v1645
        %v1886 = vpop.permute.xlu0 %1885
        %v1887 = vlaneseq
        %v1888 = vshrl.u32 %v1887, 7
        %v1889 = vsub.s32 %v263, %v1888
        %v1890 = vrot.slane %v1883, %v1889
        %v1891 = vlaneseq
        %v1892 = vshrl.u32 %v1891, 7
        %v1893 = vsub.s32 %v511, %v1892
        %v1894 = vrot.slane %v1886, %v1893
        %v1895 = vsel %vm516, %v1894, %v1890
        %v1896 = vsel %vm555, %v1895, %v1895
        %v1897 = vsel %vm557, %v1895, %v1896
        %v1898 = vsel %vm559, %v1895, %v1897
        %v1899 = vsel %vm561, %v1895, %v1898
        %v1900 = vsel %vm563, %v1895, %v1899
        %v1901 = vsel %vm565, %v1895, %v1900
        %v1903 = vmul.f32 %v257, %v1901
        %v1904 = vmul.f32 %v258, %v1901
        %v1905 = vsel %vm280, %v1903, 0.0
        %1906 = vadd.xlane.f32.xlu0 %v1905
        %v1907 = vpop.xlane.xlu0 %1906
        %v1908 = vsel %vm280, %v1904, 0.0
        %1909 = vadd.xlane.f32.xlu0 %v1908
        %v1910 = vpop.xlane.xlu0 %1909
        %v1911 = vadd.f32 %v1907, %v294
        %v1912 = vadd.f32 %v1910, %v298
        %v1915 = vcombine.high %v1911, %v1911
        %v1917 = vunpack.c.l.s4 1966171168
        %v1918 = vunpack.c.0.s8 %v1917
        %v1919 = vlaneseq
        %v1920 = vshrl.u32 %v1919, 7
        %v1921 = vsub.s32 %v1918, %v1920
        %v1922 = vrot.slane %v1911, %v1921
        %v1924 = vunpack.c.l.s4 1966171168
        %v1925 = vunpack.c.0.s8 %v1924
        %v1926 = vlaneseq
        %v1927 = vshrl.u32 %v1926, 7
        %v1928 = vsub.s32 %v1925, %v1927
        %v1929 = vrot.slane %v1915, %v1928
        %v1930 = vcombine.high %v1922, %v1922
        %v1931 = vcombine.high %v1929, %v1929
        %v1933 = vunpack.c.l.s4 1966171168
        %v1934 = vunpack.c.0.s8 %v1933
        %v1935 = vlaneseq
        %v1936 = vshrl.u32 %v1935, 7
        %v1937 = vsub.s32 %v1934, %v1936
        %v1938 = vrot.slane %v1922, %v1937
        %v1940 = vunpack.c.l.s4 1966171168
        %v1941 = vunpack.c.0.s8 %v1940
        %v1942 = vlaneseq
        %v1943 = vshrl.u32 %v1942, 7
        %v1944 = vsub.s32 %v1941, %v1943
        %v1945 = vrot.slane %v1929, %v1944
        %v1947 = vunpack.c.l.s4 1966171168
        %v1948 = vunpack.c.0.s8 %v1947
        %v1949 = vlaneseq
        %v1950 = vshrl.u32 %v1949, 7
        %v1951 = vsub.s32 %v1948, %v1950
        %v1952 = vrot.slane %v1930, %v1951
        %v1954 = vunpack.c.l.s4 1966171168
        %v1955 = vunpack.c.0.s8 %v1954
        %v1956 = vlaneseq
        %v1957 = vshrl.u32 %v1956, 7
        %v1958 = vsub.s32 %v1955, %v1957
        %v1959 = vrot.slane %v1931, %v1958
        %v1960 = vcombine.high %v1938, %v1938
        %v1961 = vcombine.high %v1945, %v1945
        %v1962 = vcombine.high %v1952, %v1952
        %v1963 = vcombine.high %v1959, %v1959
        %v1964 = vcombine.high %v1912, %v1912
        %v1966 = vunpack.c.l.s4 1966171168
        %v1967 = vunpack.c.0.s8 %v1966
        %v1968 = vlaneseq
        %v1969 = vshrl.u32 %v1968, 7
        %v1970 = vsub.s32 %v1967, %v1969
        %v1971 = vrot.slane %v1912, %v1970
        %v1973 = vunpack.c.l.s4 1966171168
        %v1974 = vunpack.c.0.s8 %v1973
        %v1975 = vlaneseq
        %v1976 = vshrl.u32 %v1975, 7
        %v1977 = vsub.s32 %v1974, %v1976
        %v1978 = vrot.slane %v1964, %v1977
        %v1979 = vcombine.high %v1971, %v1971
        %v1980 = vcombine.high %v1978, %v1978
        %v1982 = vunpack.c.l.s4 1966171168
        %v1983 = vunpack.c.0.s8 %v1982
        %v1984 = vlaneseq
        %v1985 = vshrl.u32 %v1984, 7
        %v1986 = vsub.s32 %v1983, %v1985
        %v1987 = vrot.slane %v1971, %v1986
        %v1989 = vunpack.c.l.s4 1966171168
        %v1990 = vunpack.c.0.s8 %v1989
        %v1991 = vlaneseq
        %v1992 = vshrl.u32 %v1991, 7
        %v1993 = vsub.s32 %v1990, %v1992
        %v1994 = vrot.slane %v1978, %v1993
        %v1996 = vunpack.c.l.s4 1966171168
        %v1997 = vunpack.c.0.s8 %v1996
        %v1998 = vlaneseq
        %v1999 = vshrl.u32 %v1998, 7
        %v2000 = vsub.s32 %v1997, %v1999
        %v2001 = vrot.slane %v1979, %v2000
        %v2003 = vunpack.c.l.s4 1966171168
        %v2004 = vunpack.c.0.s8 %v2003
        %v2005 = vlaneseq
        %v2006 = vshrl.u32 %v2005, 7
        %v2007 = vsub.s32 %v2004, %v2006
        %v2008 = vrot.slane %v1980, %v2007
        %v2009 = vcombine.high %v1987, %v1987
        %v2010 = vcombine.high %v1994, %v1994
        %v2011 = vcombine.high %v2001, %v2001
        %v2012 = vcombine.high %v2008, %v2008
        %v2013 = vcombine.low %v1938, %v1952
        %v2014 = vcombine.low %v1960, %v1962
        %v2015 = vcombine.low %v1945, %v1959
        %v2016 = vcombine.low %v1961, %v1963
        %v2018 = vunpack.c.l.s4 1966171168
        %v2019 = vunpack.c.0.s8 %v2018
        %v2020 = vlaneseq
        %v2021 = vshrl.u32 %v2020, 7
        %v2022 = vsub.s32 %v2019, %v2021
        %v2023 = vrot.slane %v2013, %v2022
        %v2025 = vunpack.c.l.s4 1966171168
        %v2026 = vunpack.c.0.s8 %v2025
        %v2027 = vlaneseq
        %v2028 = vshrl.u32 %v2027, 7
        %v2029 = vsub.s32 %v2026, %v2028
        %v2030 = vrot.slane %v2014, %v2029
        %v2032 = vunpack.c.l.s4 1966171168
        %v2033 = vunpack.c.0.s8 %v2032
        %v2034 = vlaneseq
        %v2035 = vshrl.u32 %v2034, 7
        %v2036 = vsub.s32 %v2033, %v2035
        %v2037 = vrot.slane %v2015, %v2036
        %v2039 = vunpack.c.l.s4 1966171168
        %v2040 = vunpack.c.0.s8 %v2039
        %v2041 = vlaneseq
        %v2042 = vshrl.u32 %v2041, 7
        %v2043 = vsub.s32 %v2040, %v2042
        %v2044 = vrot.slane %v2016, %v2043
        %v2045 = vcombine.low %v2023, %v2030
        %v2046 = vcombine.low %v2037, %v2044
        %v2048 = vunpack.c.l.s4 1966171168
        %v2049 = vunpack.c.0.s8 %v2048
        %v2050 = vlaneseq
        %v2051 = vshrl.u32 %v2050, 7
        %v2052 = vsub.s32 %v2049, %v2051
        %v2053 = vrot.slane %v2045, %v2052
        %v2055 = vunpack.c.l.s4 1966171168
        %v2056 = vunpack.c.0.s8 %v2055
        %v2057 = vlaneseq
        %v2058 = vshrl.u32 %v2057, 7
        %v2059 = vsub.s32 %v2056, %v2058
        %v2060 = vrot.slane %v2046, %v2059
        %v2061 = vcombine.low %v2053, %v2060
        %v2062 = vcombine.low %v1987, %v2001
        %v2063 = vcombine.low %v2009, %v2011
        %v2064 = vcombine.low %v1994, %v2008
        %v2065 = vcombine.low %v2010, %v2012
        %v2067 = vunpack.c.l.s4 1966171168
        %v2068 = vunpack.c.0.s8 %v2067
        %v2069 = vlaneseq
        %v2070 = vshrl.u32 %v2069, 7
        %v2071 = vsub.s32 %v2068, %v2070
        %v2072 = vrot.slane %v2062, %v2071
        %v2074 = vunpack.c.l.s4 1966171168
        %v2075 = vunpack.c.0.s8 %v2074
        %v2076 = vlaneseq
        %v2077 = vshrl.u32 %v2076, 7
        %v2078 = vsub.s32 %v2075, %v2077
        %v2079 = vrot.slane %v2063, %v2078
        %v2081 = vunpack.c.l.s4 1966171168
        %v2082 = vunpack.c.0.s8 %v2081
        %v2083 = vlaneseq
        %v2084 = vshrl.u32 %v2083, 7
        %v2085 = vsub.s32 %v2082, %v2084
        %v2086 = vrot.slane %v2064, %v2085
        %v2088 = vunpack.c.l.s4 1966171168
        %v2089 = vunpack.c.0.s8 %v2088
        %v2090 = vlaneseq
        %v2091 = vshrl.u32 %v2090, 7
        %v2092 = vsub.s32 %v2089, %v2091
        %v2093 = vrot.slane %v2065, %v2092
        %v2094 = vcombine.low %v2072, %v2079
        %v2095 = vcombine.low %v2086, %v2093
        %v2097 = vunpack.c.l.s4 1966171168
        %v2098 = vunpack.c.0.s8 %v2097
        %v2099 = vlaneseq
        %v2100 = vshrl.u32 %v2099, 7
        %v2101 = vsub.s32 %v2098, %v2100
        %v2102 = vrot.slane %v2094, %v2101
        %v2104 = vunpack.c.l.s4 1966171168
        %v2105 = vunpack.c.0.s8 %v2104
        %v2106 = vlaneseq
        %v2107 = vshrl.u32 %v2106, 7
        %v2108 = vsub.s32 %v2105, %v2107
        %v2109 = vrot.slane %v2095, %v2108
        %v2110 = vcombine.low %v2102, %v2109
        %2111 = vset.pattern.permute.xlu0 0
        %2112 = vperm.xlu0 %2111, %v2061
        %v2113 = vpop.permute.xlu0 %2112
        %2114 = vset.pattern.permute.xlu0 0
        %2115 = vperm.xlu0 %2114, %v2110
        %v2116 = vpop.permute.xlu0 %2115
        %v2117 = vlaneseq
        %v2118 = vshrl.u32 %v2117, 7
        %v2119 = vsub.s32 %v263, %v2118
        %v2120 = vrot.slane %v2113, %v2119
        %v2121 = vlaneseq
        %v2122 = vshrl.u32 %v2121, 7
        %v2123 = vsub.s32 %v511, %v2122
        %v2124 = vrot.slane %v2116, %v2123
        %v2125 = vsel %vm516, %v2124, %v2120
        %v2127 = vunpack.c.l.s4 1966171168
        %v2128 = vunpack.c.0.s8 %v2127
        %v2129 = vlaneseq
        %v2130 = vshrl.u32 %v2129, 7
        %v2131 = vsub.s32 %v2128, %v2130
        %v2132 = vrot.slane %v2125, %v2131
        %v2134 = vunpack.c.l.s4 1966171168
        %v2135 = vunpack.c.0.s8 %v2134
        %v2136 = vlaneseq
        %v2137 = vshrl.u32 %v2136, 7
        %v2138 = vsub.s32 %v2135, %v2137
        %v2139 = vrot.slane %v2132, %v2138
        %v2141 = vsub.f32 %v260, %v2139
        %v2142 = vmul.f32 %v2141, %v2141
        %v2143 = vsel %vm266, %v2142, 0.0
        %2144 = vadd.xlane.f32.xlu0 %v2143
        %v2145 = vpop.xlane.xlu0 %2144
        %vm2146 = vcmp.eq.s32.totalorder %v263, 7
        %v2147 = vsel %vm2146, %v2145, %v1880
        %2148 = vset.pattern.permute.xlu0 0
        %2149 = vperm.xlu0 %2148, %v1911
        %v2150 = vpop.permute.xlu0 %2149
        %2151 = vset.pattern.permute.xlu0 0
        %2152 = vperm.xlu0 %2151, %v1912
        %v2153 = vpop.permute.xlu0 %2152
        %v2154 = vlaneseq
        %v2155 = vshrl.u32 %v2154, 7
        %v2156 = vsub.s32 %v263, %v2155
        %v2157 = vrot.slane %v2150, %v2156
        %v2158 = vlaneseq
        %v2159 = vshrl.u32 %v2158, 7
        %v2160 = vsub.s32 %v511, %v2159
        %v2161 = vrot.slane %v2153, %v2160
        %v2162 = vsel %vm516, %v2161, %v2157
        %v2163 = vsel %vm555, %v2162, %v2162
        %v2164 = vsel %vm557, %v2162, %v2163
        %v2165 = vsel %vm559, %v2162, %v2164
        %v2166 = vsel %vm561, %v2162, %v2165
        %v2167 = vsel %vm563, %v2162, %v2166
        %v2168 = vsel %vm565, %v2162, %v2167
        %v2170 = vmul.f32 %v257, %v2168
        %v2171 = vmul.f32 %v258, %v2168
        %v2172 = vsel %vm280, %v2170, 0.0
        %2173 = vadd.xlane.f32.xlu0 %v2172
        %v2174 = vpop.xlane.xlu0 %2173
        %v2175 = vsel %vm280, %v2171, 0.0
        %2176 = vadd.xlane.f32.xlu0 %v2175
        %v2177 = vpop.xlane.xlu0 %2176
        %v2178 = vadd.f32 %v2174, %v294
        %v2179 = vadd.f32 %v2177, %v298
        %v2182 = vcombine.high %v2178, %v2178
        %v2184 = vunpack.c.l.s4 1966171168
        %v2185 = vunpack.c.0.s8 %v2184
        %v2186 = vlaneseq
        %v2187 = vshrl.u32 %v2186, 7
        %v2188 = vsub.s32 %v2185, %v2187
        %v2189 = vrot.slane %v2178, %v2188
        %v2191 = vunpack.c.l.s4 1966171168
        %v2192 = vunpack.c.0.s8 %v2191
        %v2193 = vlaneseq
        %v2194 = vshrl.u32 %v2193, 7
        %v2195 = vsub.s32 %v2192, %v2194
        %v2196 = vrot.slane %v2182, %v2195
        %v2197 = vcombine.high %v2189, %v2189
        %v2198 = vcombine.high %v2196, %v2196
        %v2200 = vunpack.c.l.s4 1966171168
        %v2201 = vunpack.c.0.s8 %v2200
        %v2202 = vlaneseq
        %v2203 = vshrl.u32 %v2202, 7
        %v2204 = vsub.s32 %v2201, %v2203
        %v2205 = vrot.slane %v2189, %v2204
        %v2207 = vunpack.c.l.s4 1966171168
        %v2208 = vunpack.c.0.s8 %v2207
        %v2209 = vlaneseq
        %v2210 = vshrl.u32 %v2209, 7
        %v2211 = vsub.s32 %v2208, %v2210
        %v2212 = vrot.slane %v2196, %v2211
        %v2214 = vunpack.c.l.s4 1966171168
        %v2215 = vunpack.c.0.s8 %v2214
        %v2216 = vlaneseq
        %v2217 = vshrl.u32 %v2216, 7
        %v2218 = vsub.s32 %v2215, %v2217
        %v2219 = vrot.slane %v2197, %v2218
        %v2221 = vunpack.c.l.s4 1966171168
        %v2222 = vunpack.c.0.s8 %v2221
        %v2223 = vlaneseq
        %v2224 = vshrl.u32 %v2223, 7
        %v2225 = vsub.s32 %v2222, %v2224
        %v2226 = vrot.slane %v2198, %v2225
        %v2227 = vcombine.high %v2205, %v2205
        %v2228 = vcombine.high %v2212, %v2212
        %v2229 = vcombine.high %v2219, %v2219
        %v2230 = vcombine.high %v2226, %v2226
        %v2231 = vcombine.high %v2179, %v2179
        %v2233 = vunpack.c.l.s4 1966171168
        %v2234 = vunpack.c.0.s8 %v2233
        %v2235 = vlaneseq
        %v2236 = vshrl.u32 %v2235, 7
        %v2237 = vsub.s32 %v2234, %v2236
        %v2238 = vrot.slane %v2179, %v2237
        %v2240 = vunpack.c.l.s4 1966171168
        %v2241 = vunpack.c.0.s8 %v2240
        %v2242 = vlaneseq
        %v2243 = vshrl.u32 %v2242, 7
        %v2244 = vsub.s32 %v2241, %v2243
        %v2245 = vrot.slane %v2231, %v2244
        %v2246 = vcombine.high %v2238, %v2238
        %v2247 = vcombine.high %v2245, %v2245
        %v2249 = vunpack.c.l.s4 1966171168
        %v2250 = vunpack.c.0.s8 %v2249
        %v2251 = vlaneseq
        %v2252 = vshrl.u32 %v2251, 7
        %v2253 = vsub.s32 %v2250, %v2252
        %v2254 = vrot.slane %v2238, %v2253
        %v2256 = vunpack.c.l.s4 1966171168
        %v2257 = vunpack.c.0.s8 %v2256
        %v2258 = vlaneseq
        %v2259 = vshrl.u32 %v2258, 7
        %v2260 = vsub.s32 %v2257, %v2259
        %v2261 = vrot.slane %v2245, %v2260
        %v2263 = vunpack.c.l.s4 1966171168
        %v2264 = vunpack.c.0.s8 %v2263
        %v2265 = vlaneseq
        %v2266 = vshrl.u32 %v2265, 7
        %v2267 = vsub.s32 %v2264, %v2266
        %v2268 = vrot.slane %v2246, %v2267
        %v2270 = vunpack.c.l.s4 1966171168
        %v2271 = vunpack.c.0.s8 %v2270
        %v2272 = vlaneseq
        %v2273 = vshrl.u32 %v2272, 7
        %v2274 = vsub.s32 %v2271, %v2273
        %v2275 = vrot.slane %v2247, %v2274
        %v2276 = vcombine.high %v2254, %v2254
        %v2277 = vcombine.high %v2261, %v2261
        %v2278 = vcombine.high %v2268, %v2268
        %v2279 = vcombine.high %v2275, %v2275
        %v2280 = vcombine.low %v2205, %v2219
        %v2281 = vcombine.low %v2227, %v2229
        %v2282 = vcombine.low %v2212, %v2226
        %v2283 = vcombine.low %v2228, %v2230
        %v2285 = vunpack.c.l.s4 1966171168
        %v2286 = vunpack.c.0.s8 %v2285
        %v2287 = vlaneseq
        %v2288 = vshrl.u32 %v2287, 7
        %v2289 = vsub.s32 %v2286, %v2288
        %v2290 = vrot.slane %v2280, %v2289
        %v2292 = vunpack.c.l.s4 1966171168
        %v2293 = vunpack.c.0.s8 %v2292
        %v2294 = vlaneseq
        %v2295 = vshrl.u32 %v2294, 7
        %v2296 = vsub.s32 %v2293, %v2295
        %v2297 = vrot.slane %v2281, %v2296
        %v2299 = vunpack.c.l.s4 1966171168
        %v2300 = vunpack.c.0.s8 %v2299
        %v2301 = vlaneseq
        %v2302 = vshrl.u32 %v2301, 7
        %v2303 = vsub.s32 %v2300, %v2302
        %v2304 = vrot.slane %v2282, %v2303
        %v2306 = vunpack.c.l.s4 1966171168
        %v2307 = vunpack.c.0.s8 %v2306
        %v2308 = vlaneseq
        %v2309 = vshrl.u32 %v2308, 7
        %v2310 = vsub.s32 %v2307, %v2309
        %v2311 = vrot.slane %v2283, %v2310
        %v2312 = vcombine.low %v2290, %v2297
        %v2313 = vcombine.low %v2304, %v2311
        %v2315 = vunpack.c.l.s4 1966171168
        %v2316 = vunpack.c.0.s8 %v2315
        %v2317 = vlaneseq
        %v2318 = vshrl.u32 %v2317, 7
        %v2319 = vsub.s32 %v2316, %v2318
        %v2320 = vrot.slane %v2312, %v2319
        %v2322 = vunpack.c.l.s4 1966171168
        %v2323 = vunpack.c.0.s8 %v2322
        %v2324 = vlaneseq
        %v2325 = vshrl.u32 %v2324, 7
        %v2326 = vsub.s32 %v2323, %v2325
        %v2327 = vrot.slane %v2313, %v2326
        %v2328 = vcombine.low %v2320, %v2327
        %v2329 = vcombine.low %v2254, %v2268
        %v2330 = vcombine.low %v2276, %v2278
        %v2331 = vcombine.low %v2261, %v2275
        %v2332 = vcombine.low %v2277, %v2279
        %v2334 = vunpack.c.l.s4 1966171168
        %v2335 = vunpack.c.0.s8 %v2334
        %v2336 = vlaneseq
        %v2337 = vshrl.u32 %v2336, 7
        %v2338 = vsub.s32 %v2335, %v2337
        %v2339 = vrot.slane %v2329, %v2338
        %v2341 = vunpack.c.l.s4 1966171168
        %v2342 = vunpack.c.0.s8 %v2341
        %v2343 = vlaneseq
        %v2344 = vshrl.u32 %v2343, 7
        %v2345 = vsub.s32 %v2342, %v2344
        %v2346 = vrot.slane %v2330, %v2345
        %v2348 = vunpack.c.l.s4 1966171168
        %v2349 = vunpack.c.0.s8 %v2348
        %v2350 = vlaneseq
        %v2351 = vshrl.u32 %v2350, 7
        %v2352 = vsub.s32 %v2349, %v2351
        %v2353 = vrot.slane %v2331, %v2352
        %v2355 = vunpack.c.l.s4 1966171168
        %v2356 = vunpack.c.0.s8 %v2355
        %v2357 = vlaneseq
        %v2358 = vshrl.u32 %v2357, 7
        %v2359 = vsub.s32 %v2356, %v2358
        %v2360 = vrot.slane %v2332, %v2359
        %v2361 = vcombine.low %v2339, %v2346
        %v2362 = vcombine.low %v2353, %v2360
        %v2364 = vunpack.c.l.s4 1966171168
        %v2365 = vunpack.c.0.s8 %v2364
        %v2366 = vlaneseq
        %v2367 = vshrl.u32 %v2366, 7
        %v2368 = vsub.s32 %v2365, %v2367
        %v2369 = vrot.slane %v2361, %v2368
        %v2371 = vunpack.c.l.s4 1966171168
        %v2372 = vunpack.c.0.s8 %v2371
        %v2373 = vlaneseq
        %v2374 = vshrl.u32 %v2373, 7
        %v2375 = vsub.s32 %v2372, %v2374
        %v2376 = vrot.slane %v2362, %v2375
        %v2377 = vcombine.low %v2369, %v2376
        %2378 = vset.pattern.permute.xlu0 0
        %2379 = vperm.xlu0 %2378, %v2328
        %v2380 = vpop.permute.xlu0 %2379
        %2381 = vset.pattern.permute.xlu0 0
        %2382 = vperm.xlu0 %2381, %v2377
        %v2383 = vpop.permute.xlu0 %2382
        %v2384 = vlaneseq
        %v2385 = vshrl.u32 %v2384, 7
        %v2386 = vsub.s32 %v263, %v2385
        %v2387 = vrot.slane %v2380, %v2386
        %v2388 = vlaneseq
        %v2389 = vshrl.u32 %v2388, 7
        %v2390 = vsub.s32 %v511, %v2389
        %v2391 = vrot.slane %v2383, %v2390
        %v2392 = vsel %vm516, %v2391, %v2387
        %v2394 = vunpack.c.l.s4 1966171168
        %v2395 = vunpack.c.0.s8 %v2394
        %v2396 = vlaneseq
        %v2397 = vshrl.u32 %v2396, 7
        %v2398 = vsub.s32 %v2395, %v2397
        %v2399 = vrot.slane %v2392, %v2398
        %v2401 = vunpack.c.l.s4 1966171168
        %v2402 = vunpack.c.0.s8 %v2401
        %v2403 = vlaneseq
        %v2404 = vshrl.u32 %v2403, 7
        %v2405 = vsub.s32 %v2402, %v2404
        %v2406 = vrot.slane %v2399, %v2405
        %v2408 = vsub.f32 %v260, %v2406
        %v2409 = vmul.f32 %v2408, %v2408
        %v2410 = vsel %vm266, %v2409, 0.0
        %2411 = vadd.xlane.f32.xlu0 %v2410
        %v2412 = vpop.xlane.xlu0 %2411
        %vm2413 = vcmp.eq.s32.totalorder %v263, 8
        %v2414 = vsel %vm2413, %v2412, %v2147
        %2415 = vset.pattern.permute.xlu0 0
        %2416 = vperm.xlu0 %2415, %v2178
        %v2417 = vpop.permute.xlu0 %2416
        %2418 = vset.pattern.permute.xlu0 0
        %2419 = vperm.xlu0 %2418, %v2179
        %v2420 = vpop.permute.xlu0 %2419
        %v2421 = vlaneseq
        %v2422 = vshrl.u32 %v2421, 7
        %v2423 = vsub.s32 %v263, %v2422
        %v2424 = vrot.slane %v2417, %v2423
        %v2425 = vlaneseq
        %v2426 = vshrl.u32 %v2425, 7
        %v2427 = vsub.s32 %v511, %v2426
        %v2428 = vrot.slane %v2420, %v2427
        %v2429 = vsel %vm516, %v2428, %v2424
        %v2430 = vsel %vm555, %v2429, %v2429
        %v2431 = vsel %vm557, %v2429, %v2430
        %v2432 = vsel %vm559, %v2429, %v2431
        %v2433 = vsel %vm561, %v2429, %v2432
        %v2434 = vsel %vm563, %v2429, %v2433
        %v2435 = vsel %vm565, %v2429, %v2434
        %v2437 = vmul.f32 %v257, %v2435
        %v2438 = vmul.f32 %v258, %v2435
        %v2439 = vsel %vm280, %v2437, 0.0
        %2440 = vadd.xlane.f32.xlu0 %v2439
        %v2441 = vpop.xlane.xlu0 %2440
        %v2442 = vsel %vm280, %v2438, 0.0
        %2443 = vadd.xlane.f32.xlu0 %v2442
        %v2444 = vpop.xlane.xlu0 %2443
        %v2445 = vadd.f32 %v2441, %v294
        %v2446 = vadd.f32 %v2444, %v298
        %v2449 = vcombine.high %v2445, %v2445
        %v2451 = vunpack.c.l.s4 1966171168
        %v2452 = vunpack.c.0.s8 %v2451
        %v2453 = vlaneseq
        %v2454 = vshrl.u32 %v2453, 7
        %v2455 = vsub.s32 %v2452, %v2454
        %v2456 = vrot.slane %v2445, %v2455
        %v2458 = vunpack.c.l.s4 1966171168
        %v2459 = vunpack.c.0.s8 %v2458
        %v2460 = vlaneseq
        %v2461 = vshrl.u32 %v2460, 7
        %v2462 = vsub.s32 %v2459, %v2461
        %v2463 = vrot.slane %v2449, %v2462
        %v2464 = vcombine.high %v2456, %v2456
        %v2465 = vcombine.high %v2463, %v2463
        %v2467 = vunpack.c.l.s4 1966171168
        %v2468 = vunpack.c.0.s8 %v2467
        %v2469 = vlaneseq
        %v2470 = vshrl.u32 %v2469, 7
        %v2471 = vsub.s32 %v2468, %v2470
        %v2472 = vrot.slane %v2456, %v2471
        %v2474 = vunpack.c.l.s4 1966171168
        %v2475 = vunpack.c.0.s8 %v2474
        %v2476 = vlaneseq
        %v2477 = vshrl.u32 %v2476, 7
        %v2478 = vsub.s32 %v2475, %v2477
        %v2479 = vrot.slane %v2463, %v2478
        %v2481 = vunpack.c.l.s4 1966171168
        %v2482 = vunpack.c.0.s8 %v2481
        %v2483 = vlaneseq
        %v2484 = vshrl.u32 %v2483, 7
        %v2485 = vsub.s32 %v2482, %v2484
        %v2486 = vrot.slane %v2464, %v2485
        %v2488 = vunpack.c.l.s4 1966171168
        %v2489 = vunpack.c.0.s8 %v2488
        %v2490 = vlaneseq
        %v2491 = vshrl.u32 %v2490, 7
        %v2492 = vsub.s32 %v2489, %v2491
        %v2493 = vrot.slane %v2465, %v2492
        %v2494 = vcombine.high %v2472, %v2472
        %v2495 = vcombine.high %v2479, %v2479
        %v2496 = vcombine.high %v2486, %v2486
        %v2497 = vcombine.high %v2493, %v2493
        %v2498 = vcombine.high %v2446, %v2446
        %v2500 = vunpack.c.l.s4 1966171168
        %v2501 = vunpack.c.0.s8 %v2500
        %v2502 = vlaneseq
        %v2503 = vshrl.u32 %v2502, 7
        %v2504 = vsub.s32 %v2501, %v2503
        %v2505 = vrot.slane %v2446, %v2504
        %v2507 = vunpack.c.l.s4 1966171168
        %v2508 = vunpack.c.0.s8 %v2507
        %v2509 = vlaneseq
        %v2510 = vshrl.u32 %v2509, 7
        %v2511 = vsub.s32 %v2508, %v2510
        %v2512 = vrot.slane %v2498, %v2511
        %v2513 = vcombine.high %v2505, %v2505
        %v2514 = vcombine.high %v2512, %v2512
        %v2516 = vunpack.c.l.s4 1966171168
        %v2517 = vunpack.c.0.s8 %v2516
        %v2518 = vlaneseq
        %v2519 = vshrl.u32 %v2518, 7
        %v2520 = vsub.s32 %v2517, %v2519
        %v2521 = vrot.slane %v2505, %v2520
        %v2523 = vunpack.c.l.s4 1966171168
        %v2524 = vunpack.c.0.s8 %v2523
        %v2525 = vlaneseq
        %v2526 = vshrl.u32 %v2525, 7
        %v2527 = vsub.s32 %v2524, %v2526
        %v2528 = vrot.slane %v2512, %v2527
        %v2530 = vunpack.c.l.s4 1966171168
        %v2531 = vunpack.c.0.s8 %v2530
        %v2532 = vlaneseq
        %v2533 = vshrl.u32 %v2532, 7
        %v2534 = vsub.s32 %v2531, %v2533
        %v2535 = vrot.slane %v2513, %v2534
        %v2537 = vunpack.c.l.s4 1966171168
        %v2538 = vunpack.c.0.s8 %v2537
        %v2539 = vlaneseq
        %v2540 = vshrl.u32 %v2539, 7
        %v2541 = vsub.s32 %v2538, %v2540
        %v2542 = vrot.slane %v2514, %v2541
        %v2543 = vcombine.high %v2521, %v2521
        %v2544 = vcombine.high %v2528, %v2528
        %v2545 = vcombine.high %v2535, %v2535
        %v2546 = vcombine.high %v2542, %v2542
        %v2547 = vcombine.low %v2472, %v2486
        %v2548 = vcombine.low %v2494, %v2496
        %v2549 = vcombine.low %v2479, %v2493
        %v2550 = vcombine.low %v2495, %v2497
        %v2552 = vunpack.c.l.s4 1966171168
        %v2553 = vunpack.c.0.s8 %v2552
        %v2554 = vlaneseq
        %v2555 = vshrl.u32 %v2554, 7
        %v2556 = vsub.s32 %v2553, %v2555
        %v2557 = vrot.slane %v2547, %v2556
        %v2559 = vunpack.c.l.s4 1966171168
        %v2560 = vunpack.c.0.s8 %v2559
        %v2561 = vlaneseq
        %v2562 = vshrl.u32 %v2561, 7
        %v2563 = vsub.s32 %v2560, %v2562
        %v2564 = vrot.slane %v2548, %v2563
        %v2566 = vunpack.c.l.s4 1966171168
        %v2567 = vunpack.c.0.s8 %v2566
        %v2568 = vlaneseq
        %v2569 = vshrl.u32 %v2568, 7
        %v2570 = vsub.s32 %v2567, %v2569
        %v2571 = vrot.slane %v2549, %v2570
        %v2573 = vunpack.c.l.s4 1966171168
        %v2574 = vunpack.c.0.s8 %v2573
        %v2575 = vlaneseq
        %v2576 = vshrl.u32 %v2575, 7
        %v2577 = vsub.s32 %v2574, %v2576
        %v2578 = vrot.slane %v2550, %v2577
        %v2579 = vcombine.low %v2557, %v2564
        %v2580 = vcombine.low %v2571, %v2578
        %v2582 = vunpack.c.l.s4 1966171168
        %v2583 = vunpack.c.0.s8 %v2582
        %v2584 = vlaneseq
        %v2585 = vshrl.u32 %v2584, 7
        %v2586 = vsub.s32 %v2583, %v2585
        %v2587 = vrot.slane %v2579, %v2586
        %v2589 = vunpack.c.l.s4 1966171168
        %v2590 = vunpack.c.0.s8 %v2589
        %v2591 = vlaneseq
        %v2592 = vshrl.u32 %v2591, 7
        %v2593 = vsub.s32 %v2590, %v2592
        %v2594 = vrot.slane %v2580, %v2593
        %v2595 = vcombine.low %v2587, %v2594
        %v2596 = vcombine.low %v2521, %v2535
        %v2597 = vcombine.low %v2543, %v2545
        %v2598 = vcombine.low %v2528, %v2542
        %v2599 = vcombine.low %v2544, %v2546
        %v2601 = vunpack.c.l.s4 1966171168
        %v2602 = vunpack.c.0.s8 %v2601
        %v2603 = vlaneseq
        %v2604 = vshrl.u32 %v2603, 7
        %v2605 = vsub.s32 %v2602, %v2604
        %v2606 = vrot.slane %v2596, %v2605
        %v2608 = vunpack.c.l.s4 1966171168
        %v2609 = vunpack.c.0.s8 %v2608
        %v2610 = vlaneseq
        %v2611 = vshrl.u32 %v2610, 7
        %v2612 = vsub.s32 %v2609, %v2611
        %v2613 = vrot.slane %v2597, %v2612
        %v2615 = vunpack.c.l.s4 1966171168
        %v2616 = vunpack.c.0.s8 %v2615
        %v2617 = vlaneseq
        %v2618 = vshrl.u32 %v2617, 7
        %v2619 = vsub.s32 %v2616, %v2618
        %v2620 = vrot.slane %v2598, %v2619
        %v2622 = vunpack.c.l.s4 1966171168
        %v2623 = vunpack.c.0.s8 %v2622
        %v2624 = vlaneseq
        %v2625 = vshrl.u32 %v2624, 7
        %v2626 = vsub.s32 %v2623, %v2625
        %v2627 = vrot.slane %v2599, %v2626
        %v2628 = vcombine.low %v2606, %v2613
        %v2629 = vcombine.low %v2620, %v2627
        %v2631 = vunpack.c.l.s4 1966171168
        %v2632 = vunpack.c.0.s8 %v2631
        %v2633 = vlaneseq
        %v2634 = vshrl.u32 %v2633, 7
        %v2635 = vsub.s32 %v2632, %v2634
        %v2636 = vrot.slane %v2628, %v2635
        %v2638 = vunpack.c.l.s4 1966171168
        %v2639 = vunpack.c.0.s8 %v2638
        %v2640 = vlaneseq
        %v2641 = vshrl.u32 %v2640, 7
        %v2642 = vsub.s32 %v2639, %v2641
        %v2643 = vrot.slane %v2629, %v2642
        %v2644 = vcombine.low %v2636, %v2643
        %2645 = vset.pattern.permute.xlu0 0
        %2646 = vperm.xlu0 %2645, %v2595
        %v2647 = vpop.permute.xlu0 %2646
        %2648 = vset.pattern.permute.xlu0 0
        %2649 = vperm.xlu0 %2648, %v2644
        %v2650 = vpop.permute.xlu0 %2649
        %v2651 = vlaneseq
        %v2652 = vshrl.u32 %v2651, 7
        %v2653 = vsub.s32 %v263, %v2652
        %v2654 = vrot.slane %v2647, %v2653
        %v2655 = vlaneseq
        %v2656 = vshrl.u32 %v2655, 7
        %v2657 = vsub.s32 %v511, %v2656
        %v2658 = vrot.slane %v2650, %v2657
        %v2659 = vsel %vm516, %v2658, %v2654
        %v2661 = vunpack.c.l.s4 1966171168
        %v2662 = vunpack.c.0.s8 %v2661
        %v2663 = vlaneseq
        %v2664 = vshrl.u32 %v2663, 7
        %v2665 = vsub.s32 %v2662, %v2664
        %v2666 = vrot.slane %v2659, %v2665
        %v2668 = vunpack.c.l.s4 1966171168
        %v2669 = vunpack.c.0.s8 %v2668
        %v2670 = vlaneseq
        %v2671 = vshrl.u32 %v2670, 7
        %v2672 = vsub.s32 %v2669, %v2671
        %v2673 = vrot.slane %v2666, %v2672
        %v2675 = vsub.f32 %v260, %v2673
        %v2676 = vmul.f32 %v2675, %v2675
        %v2677 = vsel %vm266, %v2676, 0.0
        %2678 = vadd.xlane.f32.xlu0 %v2677
        %v2679 = vpop.xlane.xlu0 %2678
        %vm2680 = vcmp.eq.s32.totalorder %v263, 9
        %v2681 = vsel %vm2680, %v2679, %v2414
        %2682 = vset.pattern.permute.xlu0 0
        %2683 = vperm.xlu0 %2682, %v2445
        %v2684 = vpop.permute.xlu0 %2683
        %2685 = vset.pattern.permute.xlu0 0
        %2686 = vperm.xlu0 %2685, %v2446
        %v2687 = vpop.permute.xlu0 %2686
        %v2688 = vlaneseq
        %v2689 = vshrl.u32 %v2688, 7
        %v2690 = vsub.s32 %v263, %v2689
        %v2691 = vrot.slane %v2684, %v2690
        %v2692 = vlaneseq
        %v2693 = vshrl.u32 %v2692, 7
        %v2694 = vsub.s32 %v511, %v2693
        %v2695 = vrot.slane %v2687, %v2694
        %v2696 = vsel %vm516, %v2695, %v2691
        %v2697 = vsel %vm555, %v2696, %v2696
        %v2698 = vsel %vm557, %v2696, %v2697
        %v2699 = vsel %vm559, %v2696, %v2698
        %v2700 = vsel %vm561, %v2696, %v2699
        %v2701 = vsel %vm563, %v2696, %v2700
        %v2702 = vsel %vm565, %v2696, %v2701
        %v2704 = vmul.f32 %v257, %v2702
        %v2705 = vmul.f32 %v258, %v2702
        %v2706 = vsel %vm280, %v2704, 0.0
        %2707 = vadd.xlane.f32.xlu0 %v2706
        %v2708 = vpop.xlane.xlu0 %2707
        %v2709 = vsel %vm280, %v2705, 0.0
        %2710 = vadd.xlane.f32.xlu0 %v2709
        %v2711 = vpop.xlane.xlu0 %2710
        %v2712 = vadd.f32 %v2708, %v294
        %v2713 = vadd.f32 %v2711, %v298
        %v2716 = vcombine.high %v2712, %v2712
        %v2718 = vunpack.c.l.s4 1966171168
        %v2719 = vunpack.c.0.s8 %v2718
        %v2720 = vlaneseq
        %v2721 = vshrl.u32 %v2720, 7
        %v2722 = vsub.s32 %v2719, %v2721
        %v2723 = vrot.slane %v2712, %v2722
        %v2725 = vunpack.c.l.s4 1966171168
        %v2726 = vunpack.c.0.s8 %v2725
        %v2727 = vlaneseq
        %v2728 = vshrl.u32 %v2727, 7
        %v2729 = vsub.s32 %v2726, %v2728
        %v2730 = vrot.slane %v2716, %v2729
        %v2731 = vcombine.high %v2723, %v2723
        %v2732 = vcombine.high %v2730, %v2730
        %v2734 = vunpack.c.l.s4 1966171168
        %v2735 = vunpack.c.0.s8 %v2734
        %v2736 = vlaneseq
        %v2737 = vshrl.u32 %v2736, 7
        %v2738 = vsub.s32 %v2735, %v2737
        %v2739 = vrot.slane %v2723, %v2738
        %v2741 = vunpack.c.l.s4 1966171168
        %v2742 = vunpack.c.0.s8 %v2741
        %v2743 = vlaneseq
        %v2744 = vshrl.u32 %v2743, 7
        %v2745 = vsub.s32 %v2742, %v2744
        %v2746 = vrot.slane %v2730, %v2745
        %v2748 = vunpack.c.l.s4 1966171168
        %v2749 = vunpack.c.0.s8 %v2748
        %v2750 = vlaneseq
        %v2751 = vshrl.u32 %v2750, 7
        %v2752 = vsub.s32 %v2749, %v2751
        %v2753 = vrot.slane %v2731, %v2752
        %v2755 = vunpack.c.l.s4 1966171168
        %v2756 = vunpack.c.0.s8 %v2755
        %v2757 = vlaneseq
        %v2758 = vshrl.u32 %v2757, 7
        %v2759 = vsub.s32 %v2756, %v2758
        %v2760 = vrot.slane %v2732, %v2759
        %v2761 = vcombine.high %v2739, %v2739
        %v2762 = vcombine.high %v2746, %v2746
        %v2763 = vcombine.high %v2753, %v2753
        %v2764 = vcombine.high %v2760, %v2760
        %v2765 = vcombine.high %v2713, %v2713
        %v2767 = vunpack.c.l.s4 1966171168
        %v2768 = vunpack.c.0.s8 %v2767
        %v2769 = vlaneseq
        %v2770 = vshrl.u32 %v2769, 7
        %v2771 = vsub.s32 %v2768, %v2770
        %v2772 = vrot.slane %v2713, %v2771
        %v2774 = vunpack.c.l.s4 1966171168
        %v2775 = vunpack.c.0.s8 %v2774
        %v2776 = vlaneseq
        %v2777 = vshrl.u32 %v2776, 7
        %v2778 = vsub.s32 %v2775, %v2777
        %v2779 = vrot.slane %v2765, %v2778
        %v2780 = vcombine.high %v2772, %v2772
        %v2781 = vcombine.high %v2779, %v2779
        %v2783 = vunpack.c.l.s4 1966171168
        %v2784 = vunpack.c.0.s8 %v2783
        %v2785 = vlaneseq
        %v2786 = vshrl.u32 %v2785, 7
        %v2787 = vsub.s32 %v2784, %v2786
        %v2788 = vrot.slane %v2772, %v2787
        %v2790 = vunpack.c.l.s4 1966171168
        %v2791 = vunpack.c.0.s8 %v2790
        %v2792 = vlaneseq
        %v2793 = vshrl.u32 %v2792, 7
        %v2794 = vsub.s32 %v2791, %v2793
        %v2795 = vrot.slane %v2779, %v2794
        %v2797 = vunpack.c.l.s4 1966171168
        %v2798 = vunpack.c.0.s8 %v2797
        %v2799 = vlaneseq
        %v2800 = vshrl.u32 %v2799, 7
        %v2801 = vsub.s32 %v2798, %v2800
        %v2802 = vrot.slane %v2780, %v2801
        %v2804 = vunpack.c.l.s4 1966171168
        %v2805 = vunpack.c.0.s8 %v2804
        %v2806 = vlaneseq
        %v2807 = vshrl.u32 %v2806, 7
        %v2808 = vsub.s32 %v2805, %v2807
        %v2809 = vrot.slane %v2781, %v2808
        %v2810 = vcombine.high %v2788, %v2788
        %v2811 = vcombine.high %v2795, %v2795
        %v2812 = vcombine.high %v2802, %v2802
        %v2813 = vcombine.high %v2809, %v2809
        %v2814 = vcombine.low %v2739, %v2753
        %v2815 = vcombine.low %v2761, %v2763
        %v2816 = vcombine.low %v2746, %v2760
        %v2817 = vcombine.low %v2762, %v2764
        %v2819 = vunpack.c.l.s4 1966171168
        %v2820 = vunpack.c.0.s8 %v2819
        %v2821 = vlaneseq
        %v2822 = vshrl.u32 %v2821, 7
        %v2823 = vsub.s32 %v2820, %v2822
        %v2824 = vrot.slane %v2814, %v2823
        %v2826 = vunpack.c.l.s4 1966171168
        %v2827 = vunpack.c.0.s8 %v2826
        %v2828 = vlaneseq
        %v2829 = vshrl.u32 %v2828, 7
        %v2830 = vsub.s32 %v2827, %v2829
        %v2831 = vrot.slane %v2815, %v2830
        %v2833 = vunpack.c.l.s4 1966171168
        %v2834 = vunpack.c.0.s8 %v2833
        %v2835 = vlaneseq
        %v2836 = vshrl.u32 %v2835, 7
        %v2837 = vsub.s32 %v2834, %v2836
        %v2838 = vrot.slane %v2816, %v2837
        %v2840 = vunpack.c.l.s4 1966171168
        %v2841 = vunpack.c.0.s8 %v2840
        %v2842 = vlaneseq
        %v2843 = vshrl.u32 %v2842, 7
        %v2844 = vsub.s32 %v2841, %v2843
        %v2845 = vrot.slane %v2817, %v2844
        %v2846 = vcombine.low %v2824, %v2831
        %v2847 = vcombine.low %v2838, %v2845
        %v2849 = vunpack.c.l.s4 1966171168
        %v2850 = vunpack.c.0.s8 %v2849
        %v2851 = vlaneseq
        %v2852 = vshrl.u32 %v2851, 7
        %v2853 = vsub.s32 %v2850, %v2852
        %v2854 = vrot.slane %v2846, %v2853
        %v2856 = vunpack.c.l.s4 1966171168
        %v2857 = vunpack.c.0.s8 %v2856
        %v2858 = vlaneseq
        %v2859 = vshrl.u32 %v2858, 7
        %v2860 = vsub.s32 %v2857, %v2859
        %v2861 = vrot.slane %v2847, %v2860
        %v2862 = vcombine.low %v2854, %v2861
        %v2863 = vcombine.low %v2788, %v2802
        %v2864 = vcombine.low %v2810, %v2812
        %v2865 = vcombine.low %v2795, %v2809
        %v2866 = vcombine.low %v2811, %v2813
        %v2868 = vunpack.c.l.s4 1966171168
        %v2869 = vunpack.c.0.s8 %v2868
        %v2870 = vlaneseq
        %v2871 = vshrl.u32 %v2870, 7
        %v2872 = vsub.s32 %v2869, %v2871
        %v2873 = vrot.slane %v2863, %v2872
        %v2875 = vunpack.c.l.s4 1966171168
        %v2876 = vunpack.c.0.s8 %v2875
        %v2877 = vlaneseq
        %v2878 = vshrl.u32 %v2877, 7
        %v2879 = vsub.s32 %v2876, %v2878
        %v2880 = vrot.slane %v2864, %v2879
        %v2882 = vunpack.c.l.s4 1966171168
        %v2883 = vunpack.c.0.s8 %v2882
        %v2884 = vlaneseq
        %v2885 = vshrl.u32 %v2884, 7
        %v2886 = vsub.s32 %v2883, %v2885
        %v2887 = vrot.slane %v2865, %v2886
        %v2889 = vunpack.c.l.s4 1966171168
        %v2890 = vunpack.c.0.s8 %v2889
        %v2891 = vlaneseq
        %v2892 = vshrl.u32 %v2891, 7
        %v2893 = vsub.s32 %v2890, %v2892
        %v2894 = vrot.slane %v2866, %v2893
        %v2895 = vcombine.low %v2873, %v2880
        %v2896 = vcombine.low %v2887, %v2894
        %v2898 = vunpack.c.l.s4 1966171168
        %v2899 = vunpack.c.0.s8 %v2898
        %v2900 = vlaneseq
        %v2901 = vshrl.u32 %v2900, 7
        %v2902 = vsub.s32 %v2899, %v2901
        %v2903 = vrot.slane %v2895, %v2902
        %v2905 = vunpack.c.l.s4 1966171168
        %v2906 = vunpack.c.0.s8 %v2905
        %v2907 = vlaneseq
        %v2908 = vshrl.u32 %v2907, 7
        %v2909 = vsub.s32 %v2906, %v2908
        %v2910 = vrot.slane %v2896, %v2909
        %v2911 = vcombine.low %v2903, %v2910
        %2912 = vset.pattern.permute.xlu0 0
        %2913 = vperm.xlu0 %2912, %v2862
        %v2914 = vpop.permute.xlu0 %2913
        %2915 = vset.pattern.permute.xlu0 0
        %2916 = vperm.xlu0 %2915, %v2911
        %v2917 = vpop.permute.xlu0 %2916
        %v2918 = vlaneseq
        %v2919 = vshrl.u32 %v2918, 7
        %v2920 = vsub.s32 %v263, %v2919
        %v2921 = vrot.slane %v2914, %v2920
        %v2922 = vlaneseq
        %v2923 = vshrl.u32 %v2922, 7
        %v2924 = vsub.s32 %v511, %v2923
        %v2925 = vrot.slane %v2917, %v2924
        %v2926 = vsel %vm516, %v2925, %v2921
        %v2928 = vunpack.c.l.s4 1966171168
        %v2929 = vunpack.c.0.s8 %v2928
        %v2930 = vlaneseq
        %v2931 = vshrl.u32 %v2930, 7
        %v2932 = vsub.s32 %v2929, %v2931
        %v2933 = vrot.slane %v2926, %v2932
        %v2935 = vunpack.c.l.s4 1966171168
        %v2936 = vunpack.c.0.s8 %v2935
        %v2937 = vlaneseq
        %v2938 = vshrl.u32 %v2937, 7
        %v2939 = vsub.s32 %v2936, %v2938
        %v2940 = vrot.slane %v2933, %v2939
        %v2942 = vsub.f32 %v260, %v2940
        %v2943 = vmul.f32 %v2942, %v2942
        %v2944 = vsel %vm266, %v2943, 0.0
        %2945 = vadd.xlane.f32.xlu0 %v2944
        %v2946 = vpop.xlane.xlu0 %2945
        %vm2947 = vcmp.eq.s32.totalorder %v263, 10
        %v2948 = vsel %vm2947, %v2946, %v2681
        %2949 = vset.pattern.permute.xlu0 0
        %2950 = vperm.xlu0 %2949, %v2712
        %v2951 = vpop.permute.xlu0 %2950
        %2952 = vset.pattern.permute.xlu0 0
        %2953 = vperm.xlu0 %2952, %v2713
        %v2954 = vpop.permute.xlu0 %2953
        %v2955 = vlaneseq
        %v2956 = vshrl.u32 %v2955, 7
        %v2957 = vsub.s32 %v263, %v2956
        %v2958 = vrot.slane %v2951, %v2957
        %v2959 = vlaneseq
        %v2960 = vshrl.u32 %v2959, 7
        %v2961 = vsub.s32 %v511, %v2960
        %v2962 = vrot.slane %v2954, %v2961
        %v2963 = vsel %vm516, %v2962, %v2958
        %v2964 = vsel %vm555, %v2963, %v2963
        %v2965 = vsel %vm557, %v2963, %v2964
        %v2966 = vsel %vm559, %v2963, %v2965
        %v2967 = vsel %vm561, %v2963, %v2966
        %v2968 = vsel %vm563, %v2963, %v2967
        %v2969 = vsel %vm565, %v2963, %v2968
        %v2971 = vmul.f32 %v257, %v2969
        %v2972 = vmul.f32 %v258, %v2969
        %v2973 = vsel %vm280, %v2971, 0.0
        %2974 = vadd.xlane.f32.xlu0 %v2973
        %v2975 = vpop.xlane.xlu0 %2974
        %v2976 = vsel %vm280, %v2972, 0.0
        %2977 = vadd.xlane.f32.xlu0 %v2976
        %v2978 = vpop.xlane.xlu0 %2977
        %v2979 = vadd.f32 %v2975, %v294
        %v2980 = vadd.f32 %v2978, %v298
        %v2983 = vcombine.high %v2979, %v2979
        %v2985 = vunpack.c.l.s4 1966171168
        %v2986 = vunpack.c.0.s8 %v2985
        %v2987 = vlaneseq
        %v2988 = vshrl.u32 %v2987, 7
        %v2989 = vsub.s32 %v2986, %v2988
        %v2990 = vrot.slane %v2979, %v2989
        %v2992 = vunpack.c.l.s4 1966171168
        %v2993 = vunpack.c.0.s8 %v2992
        %v2994 = vlaneseq
        %v2995 = vshrl.u32 %v2994, 7
        %v2996 = vsub.s32 %v2993, %v2995
        %v2997 = vrot.slane %v2983, %v2996
        %v2998 = vcombine.high %v2990, %v2990
        %v2999 = vcombine.high %v2997, %v2997
        %v3001 = vunpack.c.l.s4 1966171168
        %v3002 = vunpack.c.0.s8 %v3001
        %v3003 = vlaneseq
        %v3004 = vshrl.u32 %v3003, 7
        %v3005 = vsub.s32 %v3002, %v3004
        %v3006 = vrot.slane %v2990, %v3005
        %v3008 = vunpack.c.l.s4 1966171168
        %v3009 = vunpack.c.0.s8 %v3008
        %v3010 = vlaneseq
        %v3011 = vshrl.u32 %v3010, 7
        %v3012 = vsub.s32 %v3009, %v3011
        %v3013 = vrot.slane %v2997, %v3012
        %v3015 = vunpack.c.l.s4 1966171168
        %v3016 = vunpack.c.0.s8 %v3015
        %v3017 = vlaneseq
        %v3018 = vshrl.u32 %v3017, 7
        %v3019 = vsub.s32 %v3016, %v3018
        %v3020 = vrot.slane %v2998, %v3019
        %v3022 = vunpack.c.l.s4 1966171168
        %v3023 = vunpack.c.0.s8 %v3022
        %v3024 = vlaneseq
        %v3025 = vshrl.u32 %v3024, 7
        %v3026 = vsub.s32 %v3023, %v3025
        %v3027 = vrot.slane %v2999, %v3026
        %v3028 = vcombine.high %v3006, %v3006
        %v3029 = vcombine.high %v3013, %v3013
        %v3030 = vcombine.high %v3020, %v3020
        %v3031 = vcombine.high %v3027, %v3027
        %v3032 = vcombine.high %v2980, %v2980
        %v3034 = vunpack.c.l.s4 1966171168
        %v3035 = vunpack.c.0.s8 %v3034
        %v3036 = vlaneseq
        %v3037 = vshrl.u32 %v3036, 7
        %v3038 = vsub.s32 %v3035, %v3037
        %v3039 = vrot.slane %v2980, %v3038
        %v3041 = vunpack.c.l.s4 1966171168
        %v3042 = vunpack.c.0.s8 %v3041
        %v3043 = vlaneseq
        %v3044 = vshrl.u32 %v3043, 7
        %v3045 = vsub.s32 %v3042, %v3044
        %v3046 = vrot.slane %v3032, %v3045
        %v3047 = vcombine.high %v3039, %v3039
        %v3048 = vcombine.high %v3046, %v3046
        %v3050 = vunpack.c.l.s4 1966171168
        %v3051 = vunpack.c.0.s8 %v3050
        %v3052 = vlaneseq
        %v3053 = vshrl.u32 %v3052, 7
        %v3054 = vsub.s32 %v3051, %v3053
        %v3055 = vrot.slane %v3039, %v3054
        %v3057 = vunpack.c.l.s4 1966171168
        %v3058 = vunpack.c.0.s8 %v3057
        %v3059 = vlaneseq
        %v3060 = vshrl.u32 %v3059, 7
        %v3061 = vsub.s32 %v3058, %v3060
        %v3062 = vrot.slane %v3046, %v3061
        %v3064 = vunpack.c.l.s4 1966171168
        %v3065 = vunpack.c.0.s8 %v3064
        %v3066 = vlaneseq
        %v3067 = vshrl.u32 %v3066, 7
        %v3068 = vsub.s32 %v3065, %v3067
        %v3069 = vrot.slane %v3047, %v3068
        %v3071 = vunpack.c.l.s4 1966171168
        %v3072 = vunpack.c.0.s8 %v3071
        %v3073 = vlaneseq
        %v3074 = vshrl.u32 %v3073, 7
        %v3075 = vsub.s32 %v3072, %v3074
        %v3076 = vrot.slane %v3048, %v3075
        %v3077 = vcombine.high %v3055, %v3055
        %v3078 = vcombine.high %v3062, %v3062
        %v3079 = vcombine.high %v3069, %v3069
        %v3080 = vcombine.high %v3076, %v3076
        %v3081 = vcombine.low %v3006, %v3020
        %v3082 = vcombine.low %v3028, %v3030
        %v3083 = vcombine.low %v3013, %v3027
        %v3084 = vcombine.low %v3029, %v3031
        %v3086 = vunpack.c.l.s4 1966171168
        %v3087 = vunpack.c.0.s8 %v3086
        %v3088 = vlaneseq
        %v3089 = vshrl.u32 %v3088, 7
        %v3090 = vsub.s32 %v3087, %v3089
        %v3091 = vrot.slane %v3081, %v3090
        %v3093 = vunpack.c.l.s4 1966171168
        %v3094 = vunpack.c.0.s8 %v3093
        %v3095 = vlaneseq
        %v3096 = vshrl.u32 %v3095, 7
        %v3097 = vsub.s32 %v3094, %v3096
        %v3098 = vrot.slane %v3082, %v3097
        %v3100 = vunpack.c.l.s4 1966171168
        %v3101 = vunpack.c.0.s8 %v3100
        %v3102 = vlaneseq
        %v3103 = vshrl.u32 %v3102, 7
        %v3104 = vsub.s32 %v3101, %v3103
        %v3105 = vrot.slane %v3083, %v3104
        %v3107 = vunpack.c.l.s4 1966171168
        %v3108 = vunpack.c.0.s8 %v3107
        %v3109 = vlaneseq
        %v3110 = vshrl.u32 %v3109, 7
        %v3111 = vsub.s32 %v3108, %v3110
        %v3112 = vrot.slane %v3084, %v3111
        %v3113 = vcombine.low %v3091, %v3098
        %v3114 = vcombine.low %v3105, %v3112
        %v3116 = vunpack.c.l.s4 1966171168
        %v3117 = vunpack.c.0.s8 %v3116
        %v3118 = vlaneseq
        %v3119 = vshrl.u32 %v3118, 7
        %v3120 = vsub.s32 %v3117, %v3119
        %v3121 = vrot.slane %v3113, %v3120
        %v3123 = vunpack.c.l.s4 1966171168
        %v3124 = vunpack.c.0.s8 %v3123
        %v3125 = vlaneseq
        %v3126 = vshrl.u32 %v3125, 7
        %v3127 = vsub.s32 %v3124, %v3126
        %v3128 = vrot.slane %v3114, %v3127
        %v3129 = vcombine.low %v3121, %v3128
        %v3130 = vcombine.low %v3055, %v3069
        %v3131 = vcombine.low %v3077, %v3079
        %v3132 = vcombine.low %v3062, %v3076
        %v3133 = vcombine.low %v3078, %v3080
        %v3135 = vunpack.c.l.s4 1966171168
        %v3136 = vunpack.c.0.s8 %v3135
        %v3137 = vlaneseq
        %v3138 = vshrl.u32 %v3137, 7
        %v3139 = vsub.s32 %v3136, %v3138
        %v3140 = vrot.slane %v3130, %v3139
        %v3142 = vunpack.c.l.s4 1966171168
        %v3143 = vunpack.c.0.s8 %v3142
        %v3144 = vlaneseq
        %v3145 = vshrl.u32 %v3144, 7
        %v3146 = vsub.s32 %v3143, %v3145
        %v3147 = vrot.slane %v3131, %v3146
        %v3149 = vunpack.c.l.s4 1966171168
        %v3150 = vunpack.c.0.s8 %v3149
        %v3151 = vlaneseq
        %v3152 = vshrl.u32 %v3151, 7
        %v3153 = vsub.s32 %v3150, %v3152
        %v3154 = vrot.slane %v3132, %v3153
        %v3156 = vunpack.c.l.s4 1966171168
        %v3157 = vunpack.c.0.s8 %v3156
        %v3158 = vlaneseq
        %v3159 = vshrl.u32 %v3158, 7
        %v3160 = vsub.s32 %v3157, %v3159
        %v3161 = vrot.slane %v3133, %v3160
        %v3162 = vcombine.low %v3140, %v3147
        %v3163 = vcombine.low %v3154, %v3161
        %v3165 = vunpack.c.l.s4 1966171168
        %v3166 = vunpack.c.0.s8 %v3165
        %v3167 = vlaneseq
        %v3168 = vshrl.u32 %v3167, 7
        %v3169 = vsub.s32 %v3166, %v3168
        %v3170 = vrot.slane %v3162, %v3169
        %v3172 = vunpack.c.l.s4 1966171168
        %v3173 = vunpack.c.0.s8 %v3172
        %v3174 = vlaneseq
        %v3175 = vshrl.u32 %v3174, 7
        %v3176 = vsub.s32 %v3173, %v3175
        %v3177 = vrot.slane %v3163, %v3176
        %v3178 = vcombine.low %v3170, %v3177
        %3179 = vset.pattern.permute.xlu0 0
        %3180 = vperm.xlu0 %3179, %v3129
        %v3181 = vpop.permute.xlu0 %3180
        %3182 = vset.pattern.permute.xlu0 0
        %3183 = vperm.xlu0 %3182, %v3178
        %v3184 = vpop.permute.xlu0 %3183
        %v3185 = vlaneseq
        %v3186 = vshrl.u32 %v3185, 7
        %v3187 = vsub.s32 %v263, %v3186
        %v3188 = vrot.slane %v3181, %v3187
        %v3189 = vlaneseq
        %v3190 = vshrl.u32 %v3189, 7
        %v3191 = vsub.s32 %v511, %v3190
        %v3192 = vrot.slane %v3184, %v3191
        %v3193 = vsel %vm516, %v3192, %v3188
        %v3195 = vunpack.c.l.s4 1966171168
        %v3196 = vunpack.c.0.s8 %v3195
        %v3197 = vlaneseq
        %v3198 = vshrl.u32 %v3197, 7
        %v3199 = vsub.s32 %v3196, %v3198
        %v3200 = vrot.slane %v3193, %v3199
        %v3202 = vunpack.c.l.s4 1966171168
        %v3203 = vunpack.c.0.s8 %v3202
        %v3204 = vlaneseq
        %v3205 = vshrl.u32 %v3204, 7
        %v3206 = vsub.s32 %v3203, %v3205
        %v3207 = vrot.slane %v3200, %v3206
        %v3209 = vsub.f32 %v260, %v3207
        %v3210 = vmul.f32 %v3209, %v3209
        %v3211 = vsel %vm266, %v3210, 0.0
        %3212 = vadd.xlane.f32.xlu0 %v3211
        %v3213 = vpop.xlane.xlu0 %3212
        %vm3214 = vcmp.eq.s32.totalorder %v263, 11
        %v3215 = vsel %vm3214, %v3213, %v2948
        %3216 = vset.pattern.permute.xlu0 0
        %3217 = vperm.xlu0 %3216, %v2979
        %v3218 = vpop.permute.xlu0 %3217
        %3219 = vset.pattern.permute.xlu0 0
        %3220 = vperm.xlu0 %3219, %v2980
        %v3221 = vpop.permute.xlu0 %3220
        %v3222 = vlaneseq
        %v3223 = vshrl.u32 %v3222, 7
        %v3224 = vsub.s32 %v263, %v3223
        %v3225 = vrot.slane %v3218, %v3224
        %v3226 = vlaneseq
        %v3227 = vshrl.u32 %v3226, 7
        %v3228 = vsub.s32 %v511, %v3227
        %v3229 = vrot.slane %v3221, %v3228
        %v3230 = vsel %vm516, %v3229, %v3225
        %v3231 = vsel %vm555, %v3230, %v3230
        %v3232 = vsel %vm557, %v3230, %v3231
        %v3233 = vsel %vm559, %v3230, %v3232
        %v3234 = vsel %vm561, %v3230, %v3233
        %v3235 = vsel %vm563, %v3230, %v3234
        %v3236 = vsel %vm565, %v3230, %v3235
        %v3238 = vmul.f32 %v257, %v3236
        %v3239 = vmul.f32 %v258, %v3236
        %v3240 = vsel %vm280, %v3238, 0.0
        %3241 = vadd.xlane.f32.xlu0 %v3240
        %v3242 = vpop.xlane.xlu0 %3241
        %v3243 = vsel %vm280, %v3239, 0.0
        %3244 = vadd.xlane.f32.xlu0 %v3243
        %v3245 = vpop.xlane.xlu0 %3244
        %v3246 = vadd.f32 %v3242, %v294
        %v3247 = vadd.f32 %v3245, %v298
        %v3250 = vcombine.high %v3246, %v3246
        %v3252 = vunpack.c.l.s4 1966171168
        %v3253 = vunpack.c.0.s8 %v3252
        %v3254 = vlaneseq
        %v3255 = vshrl.u32 %v3254, 7
        %v3256 = vsub.s32 %v3253, %v3255
        %v3257 = vrot.slane %v3246, %v3256
        %v3259 = vunpack.c.l.s4 1966171168
        %v3260 = vunpack.c.0.s8 %v3259
        %v3261 = vlaneseq
        %v3262 = vshrl.u32 %v3261, 7
        %v3263 = vsub.s32 %v3260, %v3262
        %v3264 = vrot.slane %v3250, %v3263
        %v3265 = vcombine.high %v3257, %v3257
        %v3266 = vcombine.high %v3264, %v3264
        %v3268 = vunpack.c.l.s4 1966171168
        %v3269 = vunpack.c.0.s8 %v3268
        %v3270 = vlaneseq
        %v3271 = vshrl.u32 %v3270, 7
        %v3272 = vsub.s32 %v3269, %v3271
        %v3273 = vrot.slane %v3257, %v3272
        %v3275 = vunpack.c.l.s4 1966171168
        %v3276 = vunpack.c.0.s8 %v3275
        %v3277 = vlaneseq
        %v3278 = vshrl.u32 %v3277, 7
        %v3279 = vsub.s32 %v3276, %v3278
        %v3280 = vrot.slane %v3264, %v3279
        %v3282 = vunpack.c.l.s4 1966171168
        %v3283 = vunpack.c.0.s8 %v3282
        %v3284 = vlaneseq
        %v3285 = vshrl.u32 %v3284, 7
        %v3286 = vsub.s32 %v3283, %v3285
        %v3287 = vrot.slane %v3265, %v3286
        %v3289 = vunpack.c.l.s4 1966171168
        %v3290 = vunpack.c.0.s8 %v3289
        %v3291 = vlaneseq
        %v3292 = vshrl.u32 %v3291, 7
        %v3293 = vsub.s32 %v3290, %v3292
        %v3294 = vrot.slane %v3266, %v3293
        %v3295 = vcombine.high %v3273, %v3273
        %v3296 = vcombine.high %v3280, %v3280
        %v3297 = vcombine.high %v3287, %v3287
        %v3298 = vcombine.high %v3294, %v3294
        %v3299 = vcombine.high %v3247, %v3247
        %v3301 = vunpack.c.l.s4 1966171168
        %v3302 = vunpack.c.0.s8 %v3301
        %v3303 = vlaneseq
        %v3304 = vshrl.u32 %v3303, 7
        %v3305 = vsub.s32 %v3302, %v3304
        %v3306 = vrot.slane %v3247, %v3305
        %v3308 = vunpack.c.l.s4 1966171168
        %v3309 = vunpack.c.0.s8 %v3308
        %v3310 = vlaneseq
        %v3311 = vshrl.u32 %v3310, 7
        %v3312 = vsub.s32 %v3309, %v3311
        %v3313 = vrot.slane %v3299, %v3312
        %v3314 = vcombine.high %v3306, %v3306
        %v3315 = vcombine.high %v3313, %v3313
        %v3317 = vunpack.c.l.s4 1966171168
        %v3318 = vunpack.c.0.s8 %v3317
        %v3319 = vlaneseq
        %v3320 = vshrl.u32 %v3319, 7
        %v3321 = vsub.s32 %v3318, %v3320
        %v3322 = vrot.slane %v3306, %v3321
        %v3324 = vunpack.c.l.s4 1966171168
        %v3325 = vunpack.c.0.s8 %v3324
        %v3326 = vlaneseq
        %v3327 = vshrl.u32 %v3326, 7
        %v3328 = vsub.s32 %v3325, %v3327
        %v3329 = vrot.slane %v3313, %v3328
        %v3331 = vunpack.c.l.s4 1966171168
        %v3332 = vunpack.c.0.s8 %v3331
        %v3333 = vlaneseq
        %v3334 = vshrl.u32 %v3333, 7
        %v3335 = vsub.s32 %v3332, %v3334
        %v3336 = vrot.slane %v3314, %v3335
        %v3338 = vunpack.c.l.s4 1966171168
        %v3339 = vunpack.c.0.s8 %v3338
        %v3340 = vlaneseq
        %v3341 = vshrl.u32 %v3340, 7
        %v3342 = vsub.s32 %v3339, %v3341
        %v3343 = vrot.slane %v3315, %v3342
        %v3344 = vcombine.high %v3322, %v3322
        %v3345 = vcombine.high %v3329, %v3329
        %v3346 = vcombine.high %v3336, %v3336
        %v3347 = vcombine.high %v3343, %v3343
        %v3348 = vcombine.low %v3273, %v3287
        %v3349 = vcombine.low %v3295, %v3297
        %v3350 = vcombine.low %v3280, %v3294
        %v3351 = vcombine.low %v3296, %v3298
        %v3353 = vunpack.c.l.s4 1966171168
        %v3354 = vunpack.c.0.s8 %v3353
        %v3355 = vlaneseq
        %v3356 = vshrl.u32 %v3355, 7
        %v3357 = vsub.s32 %v3354, %v3356
        %v3358 = vrot.slane %v3348, %v3357
        %v3360 = vunpack.c.l.s4 1966171168
        %v3361 = vunpack.c.0.s8 %v3360
        %v3362 = vlaneseq
        %v3363 = vshrl.u32 %v3362, 7
        %v3364 = vsub.s32 %v3361, %v3363
        %v3365 = vrot.slane %v3349, %v3364
        %v3367 = vunpack.c.l.s4 1966171168
        %v3368 = vunpack.c.0.s8 %v3367
        %v3369 = vlaneseq
        %v3370 = vshrl.u32 %v3369, 7
        %v3371 = vsub.s32 %v3368, %v3370
        %v3372 = vrot.slane %v3350, %v3371
        %v3374 = vunpack.c.l.s4 1966171168
        %v3375 = vunpack.c.0.s8 %v3374
        %v3376 = vlaneseq
        %v3377 = vshrl.u32 %v3376, 7
        %v3378 = vsub.s32 %v3375, %v3377
        %v3379 = vrot.slane %v3351, %v3378
        %v3380 = vcombine.low %v3358, %v3365
        %v3381 = vcombine.low %v3372, %v3379
        %v3383 = vunpack.c.l.s4 1966171168
        %v3384 = vunpack.c.0.s8 %v3383
        %v3385 = vlaneseq
        %v3386 = vshrl.u32 %v3385, 7
        %v3387 = vsub.s32 %v3384, %v3386
        %v3388 = vrot.slane %v3380, %v3387
        %v3390 = vunpack.c.l.s4 1966171168
        %v3391 = vunpack.c.0.s8 %v3390
        %v3392 = vlaneseq
        %v3393 = vshrl.u32 %v3392, 7
        %v3394 = vsub.s32 %v3391, %v3393
        %v3395 = vrot.slane %v3381, %v3394
        %v3396 = vcombine.low %v3388, %v3395
        %v3397 = vcombine.low %v3322, %v3336
        %v3398 = vcombine.low %v3344, %v3346
        %v3399 = vcombine.low %v3329, %v3343
        %v3400 = vcombine.low %v3345, %v3347
        %v3402 = vunpack.c.l.s4 1966171168
        %v3403 = vunpack.c.0.s8 %v3402
        %v3404 = vlaneseq
        %v3405 = vshrl.u32 %v3404, 7
        %v3406 = vsub.s32 %v3403, %v3405
        %v3407 = vrot.slane %v3397, %v3406
        %v3409 = vunpack.c.l.s4 1966171168
        %v3410 = vunpack.c.0.s8 %v3409
        %v3411 = vlaneseq
        %v3412 = vshrl.u32 %v3411, 7
        %v3413 = vsub.s32 %v3410, %v3412
        %v3414 = vrot.slane %v3398, %v3413
        %v3416 = vunpack.c.l.s4 1966171168
        %v3417 = vunpack.c.0.s8 %v3416
        %v3418 = vlaneseq
        %v3419 = vshrl.u32 %v3418, 7
        %v3420 = vsub.s32 %v3417, %v3419
        %v3421 = vrot.slane %v3399, %v3420
        %v3423 = vunpack.c.l.s4 1966171168
        %v3424 = vunpack.c.0.s8 %v3423
        %v3425 = vlaneseq
        %v3426 = vshrl.u32 %v3425, 7
        %v3427 = vsub.s32 %v3424, %v3426
        %v3428 = vrot.slane %v3400, %v3427
        %v3429 = vcombine.low %v3407, %v3414
        %v3430 = vcombine.low %v3421, %v3428
        %v3432 = vunpack.c.l.s4 1966171168
        %v3433 = vunpack.c.0.s8 %v3432
        %v3434 = vlaneseq
        %v3435 = vshrl.u32 %v3434, 7
        %v3436 = vsub.s32 %v3433, %v3435
        %v3437 = vrot.slane %v3429, %v3436
        %v3439 = vunpack.c.l.s4 1966171168
        %v3440 = vunpack.c.0.s8 %v3439
        %v3441 = vlaneseq
        %v3442 = vshrl.u32 %v3441, 7
        %v3443 = vsub.s32 %v3440, %v3442
        %v3444 = vrot.slane %v3430, %v3443
        %v3445 = vcombine.low %v3437, %v3444
        %3446 = vset.pattern.permute.xlu0 0
        %3447 = vperm.xlu0 %3446, %v3396
        %v3448 = vpop.permute.xlu0 %3447
        %3449 = vset.pattern.permute.xlu0 0
        %3450 = vperm.xlu0 %3449, %v3445
        %v3451 = vpop.permute.xlu0 %3450
        %v3452 = vlaneseq
        %v3453 = vshrl.u32 %v3452, 7
        %v3454 = vsub.s32 %v263, %v3453
        %v3455 = vrot.slane %v3448, %v3454
        %v3456 = vlaneseq
        %v3457 = vshrl.u32 %v3456, 7
        %v3458 = vsub.s32 %v511, %v3457
        %v3459 = vrot.slane %v3451, %v3458
        %v3460 = vsel %vm516, %v3459, %v3455
        %v3462 = vunpack.c.l.s4 1966171168
        %v3463 = vunpack.c.0.s8 %v3462
        %v3464 = vlaneseq
        %v3465 = vshrl.u32 %v3464, 7
        %v3466 = vsub.s32 %v3463, %v3465
        %v3467 = vrot.slane %v3460, %v3466
        %v3469 = vunpack.c.l.s4 1966171168
        %v3470 = vunpack.c.0.s8 %v3469
        %v3471 = vlaneseq
        %v3472 = vshrl.u32 %v3471, 7
        %v3473 = vsub.s32 %v3470, %v3472
        %v3474 = vrot.slane %v3467, %v3473
        %v3476 = vsub.f32 %v260, %v3474
        %v3477 = vmul.f32 %v3476, %v3476
        %v3478 = vsel %vm266, %v3477, 0.0
        %3479 = vadd.xlane.f32.xlu0 %v3478
        %v3480 = vpop.xlane.xlu0 %3479
        %vm3481 = vcmp.eq.s32.totalorder %v263, 12
        %v3482 = vsel %vm3481, %v3480, %v3215
        %v3483 = vrsqrt.pop %v3482
        %v3484 = vmul.f32 %v3482, %v3483
        %vm3485 = vcmp.eq.f32.partialorder %v3482, inf
        %v3486 = vsel %vm3485, %v3482, %v3484
        %vm3487 = vcmp.eq.f32.partialorder %v3482, 0.0
        %v3488 = vand.u32 %v3482, 2147483648
        %v3489 = vsel %vm3487, %v3488, %v3486
        %3490 = vst [vmem:[%s247] sm:$0x1] %v3489
        %s3491 = sand.u32 %s133, 1
        %s3492 = scalar_lea.sflag [#allocation4], %s3491
        %s3493 = sand.u32 %s133, 1
        %s3494 = scalar_lea.vmem [#allocation5], %s3493
        // Predicated region
        $region41: #{tpu_custom_call.1} parent=35 // pred_check
          %p3495 = pneg %p143
        $region42: #{tpu_custom_call.1} parent=35 // pred_check_branch
          %3497 = sbr.rel (%p3495) target = $region44
        $region43: #{tpu_custom_call.1} parent=35 // pred_region
          %s3499 = ssub.s32 16, 16
          %3500 = vsyncadd %s3492, %s3499
          %s3501 = smul.addr %s21, 16
          %s3502 = scalar_lea.hbm %s4, %s3501
          %s3504 = sshll.u32 %s3494, 4
          %s3505 = int_to_ptr.vmem [resolvable:$true] %s3504
          %3507 = dma.vmem_to_hbm [thread:$0]  %s3505, 16, %s3502, %s3492
        $region44: #{tpu_custom_call.1} parent=35 // pred_fallthru
          _
      $region36: #{tpu_custom_call.1} parent=5 // pred_fallthru
        _
      %p3508 = scmp.le.s32.totalorder 2, %s16
      // Predicated region
      $region45: #{tpu_custom_call.1} parent=5 // pred_check
        %p3509 = pneg %p3508
      $region46: #{tpu_custom_call.1} parent=5 // pred_check_branch
        %3511 = sbr.rel (%p3509) target = $region48
      $region47: #{tpu_custom_call.1} parent=5 // pred_region
        %s3512 = ssub.s32 %s16, 2
        // Predicated region
        $region49: #{tpu_custom_call.1} parent=47 // pred_check
          %p3513 = pneg %p149
        $region50: #{tpu_custom_call.1} parent=47 // pred_check_branch
          %3515 = sbr.rel (%p3513) target = $region52
        $region51: #{tpu_custom_call.1} parent=47 // pred_region
          %s3516 = sand.u32 %s134, 1
          %s3517 = scalar_lea.sflag [#allocation4], %s3516
          %s3518 = sand.u32 %s134, 1
          %s3519 = scalar_lea.vmem [#allocation5], %s3518
          %3520 = dma.done %s3517, 16
        $region52: #{tpu_custom_call.1} parent=47 // pred_fallthru
          _
      $region48: #{tpu_custom_call.1} parent=5 // pred_fallthru
        _
    $region6: #{tpu_custom_call.1} parent=1 // loop_footer
      %s20 = sadd.s32 1, %s16
    $region7: #{tpu_custom_call.1} parent=1 // loop_footer_branch
      %15 = sbr.rel target = $region3
    $region8: #{tpu_custom_call.1} parent=1 // loop_exit
      _
    %3521 = vsyncpa [#allocation3], 1
    %s3522 = scalar_lea.sflag [#allocation3], 1
    %3523 = vsyncpa %s3522, 1
    %3524 = vsyncpa [#allocation4], 1
    %s3525 = scalar_lea.sflag [#allocation4], 1
    %3526 = vsyncpa %s3525, 1

</llo_original>
